<compile_context>
chip_gen: v6e
topology: v6e:2x2x1
jax: 0.10.0
libtpu: 0.0.40
codegen_flags: <defaults>
</compile_context>

<pallas_src>
import functools

import jax
import jax.numpy as jnp
from jax.experimental import pallas as pl
from jax.experimental.pallas import tpu as pltpu


def _round_up(x, m):
    return (x + m - 1) // m * m


# ----------------------- fused GRU + predict kernel -------------------------
def _fused_gru_kernel(x_ref, *refs, n_layers, T, B_pad, H_pad, chunk):
    """Fused L-layer GRU recurrence + Linear + Softmax (no grid, all VMEM).

    refs layout:
      per layer l : wih (Din_l, 3*H_pad) bf16, whh (H_pad, 3*H_pad) bf16,
                    gi_bias (1, 3*H_pad) f32,  b_hn (1, H_pad) f32
      then        : w_pred (H_pad, C) f32, b_pred (1, C) f32
      then        : out_ref (B_pad, C) f32
      scratch     : seq (T*B_pad or 8, H_pad) f32   # layer output sequence
                    gi  (chunk*B_pad, 3*H_pad) f32  # hoisted projection (chunked)
                    h   (B_pad, H_pad) f32          # hidden state
    """
    layer_refs = refs[: 4 * n_layers]
    w_pred_ref, b_pred_ref, out_ref, seq_ref, gi_ref, h_ref = refs[4 * n_layers:]
    HP = H_pad
    n_chunks = (T + chunk - 1) // chunk

    for l in range(n_layers):
        wih_ref, whh_ref, gib_ref, bhn_ref = layer_refs[4 * l: 4 * l + 4]
        is_last = (l == n_layers - 1)

        # Loop-invariant loads / broadcasts hoisted out of the serial recurrence
        # (JAX does not CSE broadcast_in_dim inside the unrolled body).
        wih = wih_ref[...]                                    # bf16 (Din, 3HP)
        whh = whh_ref[...]                                    # bf16 (HP, 3HP)
        gib = gib_ref[...]                                    # f32  (1, 3HP)
        bhn_b = jnp.broadcast_to(bhn_ref[...], (B_pad, HP))   # f32, hoisted

        h_ref[...] = jnp.zeros_like(h_ref)                    # initHidden: zeros

        for c in range(n_chunks):                             # static chunk loop
            t0 = c * chunk
            steps = min(chunk, T - t0)
            rows = steps * B_pad
            base = t0 * B_pad

            # Hoisted input projection for this chunk of timesteps:
            # one (rows, Din) x (Din, 3*HP) bf16 MXU matmul, f32 accumulate.
            if l == 0:
                inp = x_ref[pl.ds(base, rows), :].astype(jnp.bfloat16)
            else:
                inp = seq_ref[pl.ds(base, rows), :].astype(jnp.bfloat16)
            gi_ref[pl.ds(0, rows), :] = (
                jnp.dot(inp, wih, preferred_element_type=jnp.float32) + gib)

            # TODO(synk): hold whh in MXU staging registers across the time loop
            # (pltpu.matmul_push_rhs / matmul_acc_lhs / matmul_pop) to remove the
            # per-step RHS push from the latency-bound serial chain.
            def step(tt, carry):
                h = h_ref[...]                                            # f32
                gh = jnp.dot(h.astype(jnp.bfloat16), whh,
                             preferred_element_type=jnp.float32)          # f32
                grow = pl.multiple_of(tt * B_pad, B_pad)
                gi = gi_ref[pl.ds(grow, B_pad), :]
                # gate order r, z, n; gi carries (b_ih+b_hh) for r,z and b_in.
                r = jax.nn.sigmoid(gi[:, 0 * HP:1 * HP] + gh[:, 0 * HP:1 * HP])
                z = jax.nn.sigmoid(gi[:, 1 * HP:2 * HP] + gh[:, 1 * HP:2 * HP])
                n = jnp.tanh(gi[:, 2 * HP:3 * HP]
                             + r * (gh[:, 2 * HP:3 * HP] + bhn_b))
                h_new = (1.0 - z) * n + z * h
                h_ref[...] = h_new
                if not is_last:
                    # lane-dense (width H_pad=128) store into VMEM scratch only.
                    # TODO(synk): store seq in bf16 on v7x once packed-dtype
                    # dynamic-sublane stores are validated for this layout.
                    srow = pl.multiple_of(base + tt * B_pad, B_pad)
                    seq_ref[pl.ds(srow, B_pad), :] = h_new
                return carry

            unroll = steps if steps <= 16 else 8   # bounded unroll for large T
            jax.lax.fori_loop(0, steps, step, 0, unroll=unroll)

    # predict: Linear + Softmax(dim=1) on the last hidden state of last layer.
    # (.squeeze() in the reference is a no-op for B>1, C>1.)  Runs once; f32.
    logits = (jnp.dot(h_ref[...], w_pred_ref[...],
                      preferred_element_type=jnp.float32) + b_pred_ref[...])
    m = jnp.max(logits, axis=1, keepdims=True)
    e = jnp.exp(logits - m)
    s = jnp.sum(e, axis=1, keepdims=True)
    out_ref[...] = e / s          # exact divide: rows sum to 1


@functools.partial(jax.jit, static_argnames=("n_layers", "hidden_pad", "feat_pad"))
def _rnn_forward(x, flat_weights, *, n_layers, hidden_pad, feat_pad):
    """x: (T, B, V) float32 -> softmax probabilities (B, C)."""
    T, B, V = x.shape
    H_pad = hidden_pad
    V_pad = feat_pad
    B_pad = max(8, _round_up(B, 8))
    # TODO(synk): at realistic batch, raise B_pad toward the MXU height (128/256)
    # and, on v7x, add a batch-parallel grid dimension ("parallel") so the second
    # TensorCore takes half the batch.
    C = flat_weights[-1].shape[-1]

    # Pad batch/features with zeros and flatten time into rows.
    xp = jnp.zeros((T, B_pad, V_pad), jnp.float32).at[:, :B, :V].set(
        x.astype(jnp.float32))
    x_flat = xp.reshape(T * B_pad, V_pad)

    chunk = min(T, 256)                          # time-chunked projection
    seq_rows = T * B_pad if n_layers > 1 else 8  # seq unused for single layer

    kernel = functools.partial(_fused_gru_kernel, n_layers=n_layers, T=T,
                               B_pad=B_pad, H_pad=H_pad, chunk=chunk)

    scratch = [
        pltpu.VMEM((seq_rows, H_pad), jnp.float32),           # layer output seq
        pltpu.VMEM((chunk * B_pad, 3 * H_pad), jnp.float32),  # chunked gi
        pltpu.VMEM((B_pad, H_pad), jnp.float32),              # hidden state
    ]

    # VMEM budget derived from the actual operand + scratch footprint (+25% and
    # a few MiB of headroom), capped below v5e/v6e's 128 MiB.  The chunked
    # projection keeps realistic configs within v7x's 64 MiB as well.
    operand_bytes = (x_flat.size * 4
                     + sum(int(w.size) * w.dtype.itemsize for w in flat_weights)
                     + B_pad * C * 4)
    scratch_bytes = (seq_rows * H_pad * 4
                     + chunk * B_pad * 3 * H_pad * 4
                     + B_pad * H_pad * 4)
    vmem_limit = int(min(112 * 1024 * 1024,
                         max(16 * 1024 * 1024,
                             (operand_bytes + scratch_bytes) * 5 // 4
                             + 4 * 1024 * 1024)))

    out = pl.pallas_call(
        kernel,
        out_shape=jax.ShapeDtypeStruct((B_pad, C), jnp.float32),
        scratch_shapes=scratch,
        compiler_params=pltpu.CompilerParams(vmem_limit_bytes=vmem_limit),
    )(x_flat, *flat_weights)
    return out[:B]


# --------------------------------- RNN model --------------------------------
class RNNPallas:
    """JAX/Pallas equivalent of the PyTorch RNN module's forward pass."""

    def __init__(self, n_features, hidden_dim, n_layers, n_classes, key):
        self.N_FEATURES = n_features
        self.HIDDEN_DIM = hidden_dim
        self.N_LAYERS = n_layers
        self.N_CLASSES = n_classes
        self.H_pad = max(128, _round_up(hidden_dim, 128))   # lane-align gates
        self.V_pad = max(8, _round_up(n_features, 8))       # sublane-align feats
        # TODO(synk): for realistic N_FEATURES, pad V to a multiple of 128.

        bound = 1.0 / (hidden_dim ** 0.5)
        raw = {}
        flat = []
        for layer in range(n_layers):
            din = n_features if layer == 0 else hidden_dim
            key, k1, k2, k3, k4 = jax.random.split(key, 5)
            w_ih = jax.random.uniform(k1, (3 * hidden_dim, din),
                                      jnp.float32, -bound, bound)
            w_hh = jax.random.uniform(k2, (3 * hidden_dim, hidden_dim),
                                      jnp.float32, -bound, bound)
            b_ih = jax.random.uniform(k3, (3 * hidden_dim,),
                                      jnp.float32, -bound, bound)
            b_hh = jax.random.uniform(k4, (3 * hidden_dim,),
                                      jnp.float32, -bound, bound)
            raw[f"w_ih_l{layer}"] = w_ih
            raw[f"w_hh_l{layer}"] = w_hh
            raw[f"b_ih_l{layer}"] = b_ih
            raw[f"b_hh_l{layer}"] = b_hh
            flat.extend(self._prepare_layer(w_ih, w_hh, b_ih, b_hh, din, layer))

        key, k5, k6 = jax.random.split(key, 3)
        w_pred = jax.random.uniform(k5, (n_classes, hidden_dim),
                                    jnp.float32, -bound, bound)
        b_pred = jax.random.uniform(k6, (n_classes,), jnp.float32, -bound, bound)
        raw["w_pred"], raw["b_pred"] = w_pred, b_pred
        wp = jnp.zeros((self.H_pad, n_classes), jnp.float32)
        wp = wp.at[:hidden_dim, :].set(w_pred.T)
        flat.extend([wp, b_pred.reshape(1, n_classes).astype(jnp.float32)])

        self.raw = raw
        self.flat_weights = tuple(flat)

    def _prepare_layer(self, w_ih, w_hh, b_ih, b_hh, din, layer):
        """Transpose, gate-split, lane-pad and bias-combine one GRU layer.

        MXU operands (wih, whh) are stored in bf16; biases stay f32.
        """
        H, HP = self.HIDDEN_DIM, self.H_pad
        din_pad = self.V_pad if layer == 0 else HP
        wih = jnp.zeros((din_pad, 3 * HP), jnp.float32)
        whh = jnp.zeros((HP, 3 * HP), jnp.float32)
        for g in range(3):                     # gate order r, z, n
            wih = wih.at[:din, g * HP: g * HP + H].set(w_ih[g * H:(g + 1) * H, :].T)
            whh = whh.at[:H, g * HP: g * HP + H].set(w_hh[g * H:(g + 1) * H, :].T)
        gib = jnp.zeros((1, 3 * HP), jnp.float32)
        gib = gib.at[0, 0 * HP: 0 * HP + H].set(b_ih[0 * H:1 * H] + b_hh[0 * H:1 * H])
        gib = gib.at[0, 1 * HP: 1 * HP + H].set(b_ih[1 * H:2 * H] + b_hh[1 * H:2 * H])
        gib = gib.at[0, 2 * HP: 2 * HP + H].set(b_ih[2 * H:3 * H])
        bhn = jnp.zeros((1, HP), jnp.float32).at[0, :H].set(b_hh[2 * H:3 * H])
        return [wih.astype(jnp.bfloat16), whh.astype(jnp.bfloat16), gib, bhn]

    def forward(self, X):
        # X: (T, B, V) -> softmax probabilities (B, C)
        return _rnn_forward(jnp.asarray(X, jnp.float32), self.flat_weights,
                            n_layers=self.N_LAYERS, hidden_pad=self.H_pad,
                            feat_pad=self.V_pad)


# ------------------------------ pure-JAX reference ---------------------------
def _reference_forward(X, raw, n_layers, H, matmul_dtype=jnp.float32):
    """Pure-JAX GRU + Linear + Softmax reference.

    matmul_dtype=bfloat16 emulates the kernel's bf16 MXU operands (gate math,
    biases and accumulation stay f32), for a tight numerics-matched check.
    """
    cast = lambda a: a.astype(matmul_dtype)
    seq = X.astype(jnp.float32)
    for l in range(n_layers):
        w_ih, w_hh = raw[f"w_ih_l{l}"], raw[f"w_hh_l{l}"]
        b_ih, b_hh = raw[f"b_ih_l{l}"], raw[f"b_hh_l{l}"]
        T, B, _ = seq.shape
        h = jnp.zeros((B, H), jnp.float32)
        outs = []
        for t in range(T):
            x = seq[t]
            gi = jnp.dot(cast(x), cast(w_ih.T),
                         preferred_element_type=jnp.float32) + b_ih
            gh = jnp.dot(cast(h), cast(w_hh.T),
                         preferred_element_type=jnp.float32) + b_hh
            r = jax.nn.sigmoid(gi[:, :H] + gh[:, :H])
            z = jax.nn.sigmoid(gi[:, H:2 * H] + gh[:, H:2 * H])
            n = jnp.tanh(gi[:, 2 * H:] + r * gh[:, 2 * H:])
            h = (1.0 - z) * n + z * h
            outs.append(h)
        seq = jnp.stack(outs)
    logits = seq[-1] @ raw["w_pred"].T + raw["b_pred"]
    return jax.nn.softmax(logits, axis=1)


if __name__ == "__main__":
    T, B, V = 8, 2, 4          # seq len, batch, N_FEATURES
    H, L, C = 32, 2, 5         # HIDDEN_DIM, N_LAYERS, N_CLASSES

    key = jax.random.PRNGKey(0)
    key, kx, kp = jax.random.split(key, 3)
    X = jax.random.normal(kx, (T, B, V), jnp.float32)

    model = RNNPallas(n_features=V, hidden_dim=H, n_layers=L, n_classes=C, key=kp)
    y_hat = jax.block_until_ready(model.forward(X))

    assert y_hat.shape == (B, C)
    assert bool(jnp.all(jnp.isfinite(y_hat)))
    # exact softmax divide -> rows sum to 1
    assert bool(jnp.allclose(jnp.sum(y_hat, axis=1), 1.0, atol=1e-4))
    # tight check vs a reference with the same bf16-operand matmul numerics
    y_ref_bf16 = _reference_forward(X, model.raw, L, H, matmul_dtype=jnp.bfloat16)
    assert bool(jnp.allclose(y_hat, y_ref_bf16, atol=2e-3, rtol=2e-3))
    # loose semantic check vs the pure-f32 GRU (bf16 rounding compounds over T)
    y_ref_f32 = _reference_forward(X, model.raw, L, H)
    assert bool(jnp.allclose(y_hat, y_ref_f32, atol=2e-2, rtol=2e-2))
    print("KERNEL_OK")
</pallas_src>

<mosaic_0001>
module attributes {stable_mosaic.version = 11 : i64} {
  func.func @_fused_gru_kernel(%arg0: memref<64x8xf32, #tpu.memory_space<vmem>>, %arg1: memref<8x384xbf16, #tpu.memory_space<vmem>>, %arg2: memref<128x384xbf16, #tpu.memory_space<vmem>>, %arg3: memref<1x384xf32, #tpu.memory_space<vmem>>, %arg4: memref<1x128xf32, #tpu.memory_space<vmem>>, %arg5: memref<128x384xbf16, #tpu.memory_space<vmem>>, %arg6: memref<128x384xbf16, #tpu.memory_space<vmem>>, %arg7: memref<1x384xf32, #tpu.memory_space<vmem>>, %arg8: memref<1x128xf32, #tpu.memory_space<vmem>>, %arg9: memref<128x5xf32, #tpu.memory_space<vmem>>, %arg10: memref<1x5xf32, #tpu.memory_space<vmem>>, %arg11: memref<8x5xf32, #tpu.memory_space<vmem>>, %arg12: memref<64x128xf32, #tpu.memory_space<vmem>>, %arg13: memref<64x384xf32, #tpu.memory_space<vmem>>, %arg14: memref<8x128xf32, #tpu.memory_space<vmem>>) attributes {dimension_semantics = [], scalar_prefetch = 0 : i64, scratch_operands = 3 : i64, tpu.core_type = #tpu.core_type<tc>} {
    %c0 = arith.constant 0 : index
    %c0_0 = arith.constant 0 : index
    %0 = vector.load %arg1[%c0, %c0_0] : memref<8x384xbf16, #tpu.memory_space<vmem>>, vector<8x384xbf16>
    %c0_1 = arith.constant 0 : index
    %c0_2 = arith.constant 0 : index
    %1 = vector.load %arg2[%c0_1, %c0_2] : memref<128x384xbf16, #tpu.memory_space<vmem>>, vector<128x384xbf16>
    %c0_3 = arith.constant 0 : index
    %c0_4 = arith.constant 0 : index
    %2 = vector.load %arg3[%c0_3, %c0_4] : memref<1x384xf32, #tpu.memory_space<vmem>>, vector<1x384xf32>
    %c0_5 = arith.constant 0 : index
    %c0_6 = arith.constant 0 : index
    %3 = vector.load %arg4[%c0_5, %c0_6] : memref<1x128xf32, #tpu.memory_space<vmem>>, vector<1x128xf32>
    %4 = vector.shape_cast %3 : vector<1x128xf32> to vector<1x128xf32>
    %5 = vector.broadcast %4 : vector<1x128xf32> to vector<8x128xf32>
    %cst = arith.constant 0.000000e+00 : f32
    %6 = vector.broadcast %cst : f32 to vector<8x128xf32>
    %c0_7 = arith.constant 0 : index
    %c0_8 = arith.constant 0 : index
    %7 = vector.load %arg14[%c0_7, %c0_8] : memref<8x128xf32, #tpu.memory_space<vmem>>, vector<8x128xf32>
    tpu.vector_store %arg14[%c0_7, %c0_8], %6 {strides = array<i32>} : memref<8x128xf32, #tpu.memory_space<vmem>>, vector<8x128xf32>,
    %c0_9 = arith.constant 0 : index
    %c0_10 = arith.constant 0 : index
    %8 = vector.load %arg0[%c0_9, %c0_10] : memref<64x8xf32, #tpu.memory_space<vmem>>, vector<64x8xf32>
    %9 = arith.truncf %8 : vector<64x8xf32> to vector<64x8xbf16>
    %cst_11 = arith.constant dense<0.000000e+00> : vector<64x384xf32>
    %10 = tpu.matmul %9, %0, %cst_11 {dimension_numbers = #tpu.dot_dimension_numbers<[1], [0], [0], [1], [0, 0, 1, 1], [], []>} : vector<64x8xbf16>, vector<8x384xbf16>, vector<64x384xf32> -> vector<64x384xf32>
    %11 = vector.broadcast %2 : vector<1x384xf32> to vector<64x384xf32>
    %12 = arith.addf %10, %11 : vector<64x384xf32>
    %c0_12 = arith.constant 0 : index
    %c0_13 = arith.constant 0 : index
    %13 = vector.load %arg13[%c0_12, %c0_13] : memref<64x384xf32, #tpu.memory_space<vmem>>, vector<64x384xf32>
    tpu.vector_store %arg13[%c0_12, %c0_13], %12 {strides = array<i32>} : memref<64x384xf32, #tpu.memory_space<vmem>>, vector<64x384xf32>,
    %c0_i32 = arith.constant 0 : i32
    %c0_14 = arith.constant 0 : index
    %c0_15 = arith.constant 0 : index
    %14 = vector.load %arg14[%c0_14, %c0_15] : memref<8x128xf32, #tpu.memory_space<vmem>>, vector<8x128xf32>
    %15 = arith.truncf %14 : vector<8x128xf32> to vector<8x128xbf16>
    %cst_16 = arith.constant dense<0.000000e+00> : vector<8x384xf32>
    %16 = tpu.matmul %15, %1, %cst_16 {dimension_numbers = #tpu.dot_dimension_numbers<[1], [0], [0], [1], [0, 0, 1, 1], [], []>} : vector<8x128xbf16>, vector<128x384xbf16>, vector<8x384xf32> -> vector<8x384xf32>
    %c8_i32 = arith.constant 8 : i32
    %17 = arith.muli %c0_i32, %c8_i32 : i32
    %18 = tpu.assume_multiple %17, 8 : i32
    %19 = arith.index_cast %18 : i32 to index
    %c0_17 = arith.constant 0 : index
    %20 = vector.load %arg13[%19, %c0_17] : memref<64x384xf32, #tpu.memory_space<vmem>>, vector<8x384xf32>
    %21 = vector.extract_strided_slice %20 {offsets = [0, 0], sizes = [8, 128], strides = [1, 1]} : vector<8x384xf32> to vector<8x128xf32>
    %22 = vector.extract_strided_slice %16 {offsets = [0, 0], sizes = [8, 128], strides = [1, 1]} : vector<8x384xf32> to vector<8x128xf32>
    %23 = arith.addf %21, %22 : vector<8x128xf32>
    %24 = arith.negf %23 : vector<8x128xf32>
    %25 = math.exp %24 : vector<8x128xf32>
    %cst_18 = arith.constant 1.000000e+00 : f32
    %26 = vector.broadcast %cst_18 : f32 to vector<8x128xf32>
    %27 = arith.addf %26, %25 : vector<8x128xf32>
    %28 = arith.divf %26, %27 : vector<8x128xf32>
    %29 = vector.extract_strided_slice %20 {offsets = [0, 128], sizes = [8, 128], strides = [1, 1]} : vector<8x384xf32> to vector<8x128xf32>
    %30 = vector.extract_strided_slice %16 {offsets = [0, 128], sizes = [8, 128], strides = [1, 1]} : vector<8x384xf32> to vector<8x128xf32>
    %31 = arith.addf %29, %30 : vector<8x128xf32>
    %32 = arith.negf %31 : vector<8x128xf32>
    %33 = math.exp %32 : vector<8x128xf32>
    %cst_19 = arith.constant 1.000000e+00 : f32
    %34 = vector.broadcast %cst_19 : f32 to vector<8x128xf32>
    %35 = arith.addf %34, %33 : vector<8x128xf32>
    %36 = arith.divf %34, %35 : vector<8x128xf32>
    %37 = vector.extract_strided_slice %20 {offsets = [0, 256], sizes = [8, 128], strides = [1, 1]} : vector<8x384xf32> to vector<8x128xf32>
    %38 = vector.extract_strided_slice %16 {offsets = [0, 256], sizes = [8, 128], strides = [1, 1]} : vector<8x384xf32> to vector<8x128xf32>
    %39 = arith.addf %38, %5 : vector<8x128xf32>
    %40 = arith.mulf %28, %39 : vector<8x128xf32>
    %41 = arith.addf %37, %40 : vector<8x128xf32>
    %42 = math.tanh %41 : vector<8x128xf32>
    %cst_20 = arith.constant 1.000000e+00 : f32
    %43 = vector.broadcast %cst_20 : f32 to vector<8x128xf32>
    %44 = arith.subf %43, %36 : vector<8x128xf32>
    %45 = arith.mulf %44, %42 : vector<8x128xf32>
    %46 = arith.mulf %36, %14 : vector<8x128xf32>
    %47 = arith.addf %45, %46 : vector<8x128xf32>
    %c0_21 = arith.constant 0 : index
    %c0_22 = arith.constant 0 : index
    %48 = vector.load %arg14[%c0_21, %c0_22] : memref<8x128xf32, #tpu.memory_space<vmem>>, vector<8x128xf32>
    tpu.vector_store %arg14[%c0_21, %c0_22], %47 {strides = array<i32>} : memref<8x128xf32, #tpu.memory_space<vmem>>, vector<8x128xf32>,
    %c8_i32_23 = arith.constant 8 : i32
    %49 = arith.muli %c0_i32, %c8_i32_23 : i32
    %c0_i32_24 = arith.constant 0 : i32
    %50 = arith.addi %c0_i32_24, %49 : i32
    %51 = tpu.assume_multiple %50, 8 : i32
    %52 = arith.index_cast %51 : i32 to index
    %c0_25 = arith.constant 0 : index
    %53 = vector.load %arg12[%52, %c0_25] : memref<64x128xf32, #tpu.memory_space<vmem>>, vector<8x128xf32>
    tpu.vector_store %arg12[%52, %c0_25], %47 {strides = array<i32>} : memref<64x128xf32, #tpu.memory_space<vmem>>, vector<8x128xf32>,
    %c1_i32 = arith.constant 1 : i32
    %c0_26 = arith.constant 0 : index
    %c0_27 = arith.constant 0 : index
    %54 = vector.load %arg14[%c0_26, %c0_27] : memref<8x128xf32, #tpu.memory_space<vmem>>, vector<8x128xf32>
    %55 = arith.truncf %54 : vector<8x128xf32> to vector<8x128xbf16>
    %cst_28 = arith.constant dense<0.000000e+00> : vector<8x384xf32>
    %56 = tpu.matmul %55, %1, %cst_28 {dimension_numbers = #tpu.dot_dimension_numbers<[1], [0], [0], [1], [0, 0, 1, 1], [], []>} : vector<8x128xbf16>, vector<128x384xbf16>, vector<8x384xf32> -> vector<8x384xf32>
    %c8_i32_29 = arith.constant 8 : i32
    %57 = arith.muli %c1_i32, %c8_i32_29 : i32
    %58 = tpu.assume_multiple %57, 8 : i32
    %59 = arith.index_cast %58 : i32 to index
    %c0_30 = arith.constant 0 : index
    %60 = vector.load %arg13[%59, %c0_30] : memref<64x384xf32, #tpu.memory_space<vmem>>, vector<8x384xf32>
    %61 = vector.extract_strided_slice %60 {offsets = [0, 0], sizes = [8, 128], strides = [1, 1]} : vector<8x384xf32> to vector<8x128xf32>
    %62 = vector.extract_strided_slice %56 {offsets = [0, 0], sizes = [8, 128], strides = [1, 1]} : vector<8x384xf32> to vector<8x128xf32>
    %63 = arith.addf %61, %62 : vector<8x128xf32>
    %64 = arith.negf %63 : vector<8x128xf32>
    %65 = math.exp %64 : vector<8x128xf32>
    %cst_31 = arith.constant 1.000000e+00 : f32
    %66 = vector.broadcast %cst_31 : f32 to vector<8x128xf32>
    %67 = arith.addf %66, %65 : vector<8x128xf32>
    %68 = arith.divf %66, %67 : vector<8x128xf32>
    %69 = vector.extract_strided_slice %60 {offsets = [0, 128], sizes = [8, 128], strides = [1, 1]} : vector<8x384xf32> to vector<8x128xf32>
    %70 = vector.extract_strided_slice %56 {offsets = [0, 128], sizes = [8, 128], strides = [1, 1]} : vector<8x384xf32> to vector<8x128xf32>
    %71 = arith.addf %69, %70 : vector<8x128xf32>
    %72 = arith.negf %71 : vector<8x128xf32>
    %73 = math.exp %72 : vector<8x128xf32>
    %cst_32 = arith.constant 1.000000e+00 : f32
    %74 = vector.broadcast %cst_32 : f32 to vector<8x128xf32>
    %75 = arith.addf %74, %73 : vector<8x128xf32>
    %76 = arith.divf %74, %75 : vector<8x128xf32>
    %77 = vector.extract_strided_slice %60 {offsets = [0, 256], sizes = [8, 128], strides = [1, 1]} : vector<8x384xf32> to vector<8x128xf32>
    %78 = vector.extract_strided_slice %56 {offsets = [0, 256], sizes = [8, 128], strides = [1, 1]} : vector<8x384xf32> to vector<8x128xf32>
    %79 = arith.addf %78, %5 : vector<8x128xf32>
    %80 = arith.mulf %68, %79 : vector<8x128xf32>
    %81 = arith.addf %77, %80 : vector<8x128xf32>
    %82 = math.tanh %81 : vector<8x128xf32>
    %cst_33 = arith.constant 1.000000e+00 : f32
    %83 = vector.broadcast %cst_33 : f32 to vector<8x128xf32>
    %84 = arith.subf %83, %76 : vector<8x128xf32>
    %85 = arith.mulf %84, %82 : vector<8x128xf32>
    %86 = arith.mulf %76, %54 : vector<8x128xf32>
    %87 = arith.addf %85, %86 : vector<8x128xf32>
    %c0_34 = arith.constant 0 : index
    %c0_35 = arith.constant 0 : index
    %88 = vector.load %arg14[%c0_34, %c0_35] : memref<8x128xf32, #tpu.memory_space<vmem>>, vector<8x128xf32>
    tpu.vector_store %arg14[%c0_34, %c0_35], %87 {strides = array<i32>} : memref<8x128xf32, #tpu.memory_space<vmem>>, vector<8x128xf32>,
    %c8_i32_36 = arith.constant 8 : i32
    %89 = arith.muli %c1_i32, %c8_i32_36 : i32
    %c0_i32_37 = arith.constant 0 : i32
    %90 = arith.addi %c0_i32_37, %89 : i32
    %91 = tpu.assume_multiple %90, 8 : i32
    %92 = arith.index_cast %91 : i32 to index
    %c0_38 = arith.constant 0 : index
    %93 = vector.load %arg12[%92, %c0_38] : memref<64x128xf32, #tpu.memory_space<vmem>>, vector<8x128xf32>
    tpu.vector_store %arg12[%92, %c0_38], %87 {strides = array<i32>} : memref<64x128xf32, #tpu.memory_space<vmem>>, vector<8x128xf32>,
    %c2_i32 = arith.constant 2 : i32
    %c0_39 = arith.constant 0 : index
    %c0_40 = arith.constant 0 : index
    %94 = vector.load %arg14[%c0_39, %c0_40] : memref<8x128xf32, #tpu.memory_space<vmem>>, vector<8x128xf32>
    %95 = arith.truncf %94 : vector<8x128xf32> to vector<8x128xbf16>
    %cst_41 = arith.constant dense<0.000000e+00> : vector<8x384xf32>
    %96 = tpu.matmul %95, %1, %cst_41 {dimension_numbers = #tpu.dot_dimension_numbers<[1], [0], [0], [1], [0, 0, 1, 1], [], []>} : vector<8x128xbf16>, vector<128x384xbf16>, vector<8x384xf32> -> vector<8x384xf32>
    %c8_i32_42 = arith.constant 8 : i32
    %97 = arith.muli %c2_i32, %c8_i32_42 : i32
    %98 = tpu.assume_multiple %97, 8 : i32
    %99 = arith.index_cast %98 : i32 to index
    %c0_43 = arith.constant 0 : index
    %100 = vector.load %arg13[%99, %c0_43] : memref<64x384xf32, #tpu.memory_space<vmem>>, vector<8x384xf32>
    %101 = vector.extract_strided_slice %100 {offsets = [0, 0], sizes = [8, 128], strides = [1, 1]} : vector<8x384xf32> to vector<8x128xf32>
    %102 = vector.extract_strided_slice %96 {offsets = [0, 0], sizes = [8, 128], strides = [1, 1]} : vector<8x384xf32> to vector<8x128xf32>
    %103 = arith.addf %101, %102 : vector<8x128xf32>
    %104 = arith.negf %103 : vector<8x128xf32>
    %105 = math.exp %104 : vector<8x128xf32>
    %cst_44 = arith.constant 1.000000e+00 : f32
    %106 = vector.broadcast %cst_44 : f32 to vector<8x128xf32>
    %107 = arith.addf %106, %105 : vector<8x128xf32>
    %108 = arith.divf %106, %107 : vector<8x128xf32>
    %109 = vector.extract_strided_slice %100 {offsets = [0, 128], sizes = [8, 128], strides = [1, 1]} : vector<8x384xf32> to vector<8x128xf32>
    %110 = vector.extract_strided_slice %96 {offsets = [0, 128], sizes = [8, 128], strides = [1, 1]} : vector<8x384xf32> to vector<8x128xf32>
    %111 = arith.addf %109, %110 : vector<8x128xf32>
    %112 = arith.negf %111 : vector<8x128xf32>
    %113 = math.exp %112 : vector<8x128xf32>
    %cst_45 = arith.constant 1.000000e+00 : f32
    %114 = vector.broadcast %cst_45 : f32 to vector<8x128xf32>
    %115 = arith.addf %114, %113 : vector<8x128xf32>
    %116 = arith.divf %114, %115 : vector<8x128xf32>
    %117 = vector.extract_strided_slice %100 {offsets = [0, 256], sizes = [8, 128], strides = [1, 1]} : vector<8x384xf32> to vector<8x128xf32>
    %118 = vector.extract_strided_slice %96 {offsets = [0, 256], sizes = [8, 128], strides = [1, 1]} : vector<8x384xf32> to vector<8x128xf32>
    %119 = arith.addf %118, %5 : vector<8x128xf32>
    %120 = arith.mulf %108, %119 : vector<8x128xf32>
    %121 = arith.addf %117, %120 : vector<8x128xf32>
    %122 = math.tanh %121 : vector<8x128xf32>
    %cst_46 = arith.constant 1.000000e+00 : f32
    %123 = vector.broadcast %cst_46 : f32 to vector<8x128xf32>
    %124 = arith.subf %123, %116 : vector<8x128xf32>
    %125 = arith.mulf %124, %122 : vector<8x128xf32>
    %126 = arith.mulf %116, %94 : vector<8x128xf32>
    %127 = arith.addf %125, %126 : vector<8x128xf32>
    %c0_47 = arith.constant 0 : index
    %c0_48 = arith.constant 0 : index
    %128 = vector.load %arg14[%c0_47, %c0_48] : memref<8x128xf32, #tpu.memory_space<vmem>>, vector<8x128xf32>
    tpu.vector_store %arg14[%c0_47, %c0_48], %127 {strides = array<i32>} : memref<8x128xf32, #tpu.memory_space<vmem>>, vector<8x128xf32>,
    %c8_i32_49 = arith.constant 8 : i32
    %129 = arith.muli %c2_i32, %c8_i32_49 : i32
    %c0_i32_50 = arith.constant 0 : i32
    %130 = arith.addi %c0_i32_50, %129 : i32
    %131 = tpu.assume_multiple %130, 8 : i32
    %132 = arith.index_cast %131 : i32 to index
    %c0_51 = arith.constant 0 : index
    %133 = vector.load %arg12[%132, %c0_51] : memref<64x128xf32, #tpu.memory_space<vmem>>, vector<8x128xf32>
    tpu.vector_store %arg12[%132, %c0_51], %127 {strides = array<i32>} : memref<64x128xf32, #tpu.memory_space<vmem>>, vector<8x128xf32>,
    %c3_i32 = arith.constant 3 : i32
    %c0_52 = arith.constant 0 : index
    %c0_53 = arith.constant 0 : index
    %134 = vector.load %arg14[%c0_52, %c0_53] : memref<8x128xf32, #tpu.memory_space<vmem>>, vector<8x128xf32>
    %135 = arith.truncf %134 : vector<8x128xf32> to vector<8x128xbf16>
    %cst_54 = arith.constant dense<0.000000e+00> : vector<8x384xf32>
    %136 = tpu.matmul %135, %1, %cst_54 {dimension_numbers = #tpu.dot_dimension_numbers<[1], [0], [0], [1], [0, 0, 1, 1], [], []>} : vector<8x128xbf16>, vector<128x384xbf16>, vector<8x384xf32> -> vector<8x384xf32>
    %c8_i32_55 = arith.constant 8 : i32
    %137 = arith.muli %c3_i32, %c8_i32_55 : i32
    %138 = tpu.assume_multiple %137, 8 : i32
    %139 = arith.index_cast %138 : i32 to index
    %c0_56 = arith.constant 0 : index
    %140 = vector.load %arg13[%139, %c0_56] : memref<64x384xf32, #tpu.memory_space<vmem>>, vector<8x384xf32>
    %141 = vector.extract_strided_slice %140 {offsets = [0, 0], sizes = [8, 128], strides = [1, 1]} : vector<8x384xf32> to vector<8x128xf32>
    %142 = vector.extract_strided_slice %136 {offsets = [0, 0], sizes = [8, 128], strides = [1, 1]} : vector<8x384xf32> to vector<8x128xf32>
    %143 = arith.addf %141, %142 : vector<8x128xf32>
    %144 = arith.negf %143 : vector<8x128xf32>
    %145 = math.exp %144 : vector<8x128xf32>
    %cst_57 = arith.constant 1.000000e+00 : f32
    %146 = vector.broadcast %cst_57 : f32 to vector<8x128xf32>
    %147 = arith.addf %146, %145 : vector<8x128xf32>
    %148 = arith.divf %146, %147 : vector<8x128xf32>
    %149 = vector.extract_strided_slice %140 {offsets = [0, 128], sizes = [8, 128], strides = [1, 1]} : vector<8x384xf32> to vector<8x128xf32>
    %150 = vector.extract_strided_slice %136 {offsets = [0, 128], sizes = [8, 128], strides = [1, 1]} : vector<8x384xf32> to vector<8x128xf32>
    %151 = arith.addf %149, %150 : vector<8x128xf32>
    %152 = arith.negf %151 : vector<8x128xf32>
    %153 = math.exp %152 : vector<8x128xf32>
    %cst_58 = arith.constant 1.000000e+00 : f32
    %154 = vector.broadcast %cst_58 : f32 to vector<8x128xf32>
    %155 = arith.addf %154, %153 : vector<8x128xf32>
    %156 = arith.divf %154, %155 : vector<8x128xf32>
    %157 = vector.extract_strided_slice %140 {offsets = [0, 256], sizes = [8, 128], strides = [1, 1]} : vector<8x384xf32> to vector<8x128xf32>
    %158 = vector.extract_strided_slice %136 {offsets = [0, 256], sizes = [8, 128], strides = [1, 1]} : vector<8x384xf32> to vector<8x128xf32>
    %159 = arith.addf %158, %5 : vector<8x128xf32>
    %160 = arith.mulf %148, %159 : vector<8x128xf32>
    %161 = arith.addf %157, %160 : vector<8x128xf32>
    %162 = math.tanh %161 : vector<8x128xf32>
    %cst_59 = arith.constant 1.000000e+00 : f32
    %163 = vector.broadcast %cst_59 : f32 to vector<8x128xf32>
    %164 = arith.subf %163, %156 : vector<8x128xf32>
    %165 = arith.mulf %164, %162 : vector<8x128xf32>
    %166 = arith.mulf %156, %134 : vector<8x128xf32>
    %167 = arith.addf %165, %166 : vector<8x128xf32>
    %c0_60 = arith.constant 0 : index
    %c0_61 = arith.constant 0 : index
    %168 = vector.load %arg14[%c0_60, %c0_61] : memref<8x128xf32, #tpu.memory_space<vmem>>, vector<8x128xf32>
    tpu.vector_store %arg14[%c0_60, %c0_61], %167 {strides = array<i32>} : memref<8x128xf32, #tpu.memory_space<vmem>>, vector<8x128xf32>,
    %c8_i32_62 = arith.constant 8 : i32
    %169 = arith.muli %c3_i32, %c8_i32_62 : i32
    %c0_i32_63 = arith.constant 0 : i32
    %170 = arith.addi %c0_i32_63, %169 : i32
    %171 = tpu.assume_multiple %170, 8 : i32
    %172 = arith.index_cast %171 : i32 to index
    %c0_64 = arith.constant 0 : index
    %173 = vector.load %arg12[%172, %c0_64] : memref<64x128xf32, #tpu.memory_space<vmem>>, vector<8x128xf32>
    tpu.vector_store %arg12[%172, %c0_64], %167 {strides = array<i32>} : memref<64x128xf32, #tpu.memory_space<vmem>>, vector<8x128xf32>,
    %c4_i32 = arith.constant 4 : i32
    %c0_65 = arith.constant 0 : index
    %c0_66 = arith.constant 0 : index
    %174 = vector.load %arg14[%c0_65, %c0_66] : memref<8x128xf32, #tpu.memory_space<vmem>>, vector<8x128xf32>
    %175 = arith.truncf %174 : vector<8x128xf32> to vector<8x128xbf16>
    %cst_67 = arith.constant dense<0.000000e+00> : vector<8x384xf32>
    %176 = tpu.matmul %175, %1, %cst_67 {dimension_numbers = #tpu.dot_dimension_numbers<[1], [0], [0], [1], [0, 0, 1, 1], [], []>} : vector<8x128xbf16>, vector<128x384xbf16>, vector<8x384xf32> -> vector<8x384xf32>
    %c8_i32_68 = arith.constant 8 : i32
    %177 = arith.muli %c4_i32, %c8_i32_68 : i32
    %178 = tpu.assume_multiple %177, 8 : i32
    %179 = arith.index_cast %178 : i32 to index
    %c0_69 = arith.constant 0 : index
    %180 = vector.load %arg13[%179, %c0_69] : memref<64x384xf32, #tpu.memory_space<vmem>>, vector<8x384xf32>
    %181 = vector.extract_strided_slice %180 {offsets = [0, 0], sizes = [8, 128], strides = [1, 1]} : vector<8x384xf32> to vector<8x128xf32>
    %182 = vector.extract_strided_slice %176 {offsets = [0, 0], sizes = [8, 128], strides = [1, 1]} : vector<8x384xf32> to vector<8x128xf32>
    %183 = arith.addf %181, %182 : vector<8x128xf32>
    %184 = arith.negf %183 : vector<8x128xf32>
    %185 = math.exp %184 : vector<8x128xf32>
    %cst_70 = arith.constant 1.000000e+00 : f32
    %186 = vector.broadcast %cst_70 : f32 to vector<8x128xf32>
    %187 = arith.addf %186, %185 : vector<8x128xf32>
    %188 = arith.divf %186, %187 : vector<8x128xf32>
    %189 = vector.extract_strided_slice %180 {offsets = [0, 128], sizes = [8, 128], strides = [1, 1]} : vector<8x384xf32> to vector<8x128xf32>
    %190 = vector.extract_strided_slice %176 {offsets = [0, 128], sizes = [8, 128], strides = [1, 1]} : vector<8x384xf32> to vector<8x128xf32>
    %191 = arith.addf %189, %190 : vector<8x128xf32>
    %192 = arith.negf %191 : vector<8x128xf32>
    %193 = math.exp %192 : vector<8x128xf32>
    %cst_71 = arith.constant 1.000000e+00 : f32
    %194 = vector.broadcast %cst_71 : f32 to vector<8x128xf32>
    %195 = arith.addf %194, %193 : vector<8x128xf32>
    %196 = arith.divf %194, %195 : vector<8x128xf32>
    %197 = vector.extract_strided_slice %180 {offsets = [0, 256], sizes = [8, 128], strides = [1, 1]} : vector<8x384xf32> to vector<8x128xf32>
    %198 = vector.extract_strided_slice %176 {offsets = [0, 256], sizes = [8, 128], strides = [1, 1]} : vector<8x384xf32> to vector<8x128xf32>
    %199 = arith.addf %198, %5 : vector<8x128xf32>
    %200 = arith.mulf %188, %199 : vector<8x128xf32>
    %201 = arith.addf %197, %200 : vector<8x128xf32>
    %202 = math.tanh %201 : vector<8x128xf32>
    %cst_72 = arith.constant 1.000000e+00 : f32
    %203 = vector.broadcast %cst_72 : f32 to vector<8x128xf32>
    %204 = arith.subf %203, %196 : vector<8x128xf32>
    %205 = arith.mulf %204, %202 : vector<8x128xf32>
    %206 = arith.mulf %196, %174 : vector<8x128xf32>
    %207 = arith.addf %205, %206 : vector<8x128xf32>
    %c0_73 = arith.constant 0 : index
    %c0_74 = arith.constant 0 : index
    %208 = vector.load %arg14[%c0_73, %c0_74] : memref<8x128xf32, #tpu.memory_space<vmem>>, vector<8x128xf32>
    tpu.vector_store %arg14[%c0_73, %c0_74], %207 {strides = array<i32>} : memref<8x128xf32, #tpu.memory_space<vmem>>, vector<8x128xf32>,
    %c8_i32_75 = arith.constant 8 : i32
    %209 = arith.muli %c4_i32, %c8_i32_75 : i32
    %c0_i32_76 = arith.constant 0 : i32
    %210 = arith.addi %c0_i32_76, %209 : i32
    %211 = tpu.assume_multiple %210, 8 : i32
    %212 = arith.index_cast %211 : i32 to index
    %c0_77 = arith.constant 0 : index
    %213 = vector.load %arg12[%212, %c0_77] : memref<64x128xf32, #tpu.memory_space<vmem>>, vector<8x128xf32>
    tpu.vector_store %arg12[%212, %c0_77], %207 {strides = array<i32>} : memref<64x128xf32, #tpu.memory_space<vmem>>, vector<8x128xf32>,
    %c5_i32 = arith.constant 5 : i32
    %c0_78 = arith.constant 0 : index
    %c0_79 = arith.constant 0 : index
    %214 = vector.load %arg14[%c0_78, %c0_79] : memref<8x128xf32, #tpu.memory_space<vmem>>, vector<8x128xf32>
    %215 = arith.truncf %214 : vector<8x128xf32> to vector<8x128xbf16>
    %cst_80 = arith.constant dense<0.000000e+00> : vector<8x384xf32>
    %216 = tpu.matmul %215, %1, %cst_80 {dimension_numbers = #tpu.dot_dimension_numbers<[1], [0], [0], [1], [0, 0, 1, 1], [], []>} : vector<8x128xbf16>, vector<128x384xbf16>, vector<8x384xf32> -> vector<8x384xf32>
    %c8_i32_81 = arith.constant 8 : i32
    %217 = arith.muli %c5_i32, %c8_i32_81 : i32
    %218 = tpu.assume_multiple %217, 8 : i32
    %219 = arith.index_cast %218 : i32 to index
    %c0_82 = arith.constant 0 : index
    %220 = vector.load %arg13[%219, %c0_82] : memref<64x384xf32, #tpu.memory_space<vmem>>, vector<8x384xf32>
    %221 = vector.extract_strided_slice %220 {offsets = [0, 0], sizes = [8, 128], strides = [1, 1]} : vector<8x384xf32> to vector<8x128xf32>
    %222 = vector.extract_strided_slice %216 {offsets = [0, 0], sizes = [8, 128], strides = [1, 1]} : vector<8x384xf32> to vector<8x128xf32>
    %223 = arith.addf %221, %222 : vector<8x128xf32>
    %224 = arith.negf %223 : vector<8x128xf32>
    %225 = math.exp %224 : vector<8x128xf32>
    %cst_83 = arith.constant 1.000000e+00 : f32
    %226 = vector.broadcast %cst_83 : f32 to vector<8x128xf32>
    %227 = arith.addf %226, %225 : vector<8x128xf32>
    %228 = arith.divf %226, %227 : vector<8x128xf32>
    %229 = vector.extract_strided_slice %220 {offsets = [0, 128], sizes = [8, 128], strides = [1, 1]} : vector<8x384xf32> to vector<8x128xf32>
    %230 = vector.extract_strided_slice %216 {offsets = [0, 128], sizes = [8, 128], strides = [1, 1]} : vector<8x384xf32> to vector<8x128xf32>
    %231 = arith.addf %229, %230 : vector<8x128xf32>
    %232 = arith.negf %231 : vector<8x128xf32>
    %233 = math.exp %232 : vector<8x128xf32>
    %cst_84 = arith.constant 1.000000e+00 : f32
    %234 = vector.broadcast %cst_84 : f32 to vector<8x128xf32>
    %235 = arith.addf %234, %233 : vector<8x128xf32>
    %236 = arith.divf %234, %235 : vector<8x128xf32>
    %237 = vector.extract_strided_slice %220 {offsets = [0, 256], sizes = [8, 128], strides = [1, 1]} : vector<8x384xf32> to vector<8x128xf32>
    %238 = vector.extract_strided_slice %216 {offsets = [0, 256], sizes = [8, 128], strides = [1, 1]} : vector<8x384xf32> to vector<8x128xf32>
    %239 = arith.addf %238, %5 : vector<8x128xf32>
    %240 = arith.mulf %228, %239 : vector<8x128xf32>
    %241 = arith.addf %237, %240 : vector<8x128xf32>
    %242 = math.tanh %241 : vector<8x128xf32>
    %cst_85 = arith.constant 1.000000e+00 : f32
    %243 = vector.broadcast %cst_85 : f32 to vector<8x128xf32>
    %244 = arith.subf %243, %236 : vector<8x128xf32>
    %245 = arith.mulf %244, %242 : vector<8x128xf32>
    %246 = arith.mulf %236, %214 : vector<8x128xf32>
    %247 = arith.addf %245, %246 : vector<8x128xf32>
    %c0_86 = arith.constant 0 : index
    %c0_87 = arith.constant 0 : index
    %248 = vector.load %arg14[%c0_86, %c0_87] : memref<8x128xf32, #tpu.memory_space<vmem>>, vector<8x128xf32>
    tpu.vector_store %arg14[%c0_86, %c0_87], %247 {strides = array<i32>} : memref<8x128xf32, #tpu.memory_space<vmem>>, vector<8x128xf32>,
    %c8_i32_88 = arith.constant 8 : i32
    %249 = arith.muli %c5_i32, %c8_i32_88 : i32
    %c0_i32_89 = arith.constant 0 : i32
    %250 = arith.addi %c0_i32_89, %249 : i32
    %251 = tpu.assume_multiple %250, 8 : i32
    %252 = arith.index_cast %251 : i32 to index
    %c0_90 = arith.constant 0 : index
    %253 = vector.load %arg12[%252, %c0_90] : memref<64x128xf32, #tpu.memory_space<vmem>>, vector<8x128xf32>
    tpu.vector_store %arg12[%252, %c0_90], %247 {strides = array<i32>} : memref<64x128xf32, #tpu.memory_space<vmem>>, vector<8x128xf32>,
    %c6_i32 = arith.constant 6 : i32
    %c0_91 = arith.constant 0 : index
    %c0_92 = arith.constant 0 : index
    %254 = vector.load %arg14[%c0_91, %c0_92] : memref<8x128xf32, #tpu.memory_space<vmem>>, vector<8x128xf32>
    %255 = arith.truncf %254 : vector<8x128xf32> to vector<8x128xbf16>
    %cst_93 = arith.constant dense<0.000000e+00> : vector<8x384xf32>
    %256 = tpu.matmul %255, %1, %cst_93 {dimension_numbers = #tpu.dot_dimension_numbers<[1], [0], [0], [1], [0, 0, 1, 1], [], []>} : vector<8x128xbf16>, vector<128x384xbf16>, vector<8x384xf32> -> vector<8x384xf32>
    %c8_i32_94 = arith.constant 8 : i32
    %257 = arith.muli %c6_i32, %c8_i32_94 : i32
    %258 = tpu.assume_multiple %257, 8 : i32
    %259 = arith.index_cast %258 : i32 to index
    %c0_95 = arith.constant 0 : index
    %260 = vector.load %arg13[%259, %c0_95] : memref<64x384xf32, #tpu.memory_space<vmem>>, vector<8x384xf32>
    %261 = vector.extract_strided_slice %260 {offsets = [0, 0], sizes = [8, 128], strides = [1, 1]} : vector<8x384xf32> to vector<8x128xf32>
    %262 = vector.extract_strided_slice %256 {offsets = [0, 0], sizes = [8, 128], strides = [1, 1]} : vector<8x384xf32> to vector<8x128xf32>
    %263 = arith.addf %261, %262 : vector<8x128xf32>
    %264 = arith.negf %263 : vector<8x128xf32>
    %265 = math.exp %264 : vector<8x128xf32>
    %cst_96 = arith.constant 1.000000e+00 : f32
    %266 = vector.broadcast %cst_96 : f32 to vector<8x128xf32>
    %267 = arith.addf %266, %265 : vector<8x128xf32>
    %268 = arith.divf %266, %267 : vector<8x128xf32>
    %269 = vector.extract_strided_slice %260 {offsets = [0, 128], sizes = [8, 128], strides = [1, 1]} : vector<8x384xf32> to vector<8x128xf32>
    %270 = vector.extract_strided_slice %256 {offsets = [0, 128], sizes = [8, 128], strides = [1, 1]} : vector<8x384xf32> to vector<8x128xf32>
    %271 = arith.addf %269, %270 : vector<8x128xf32>
    %272 = arith.negf %271 : vector<8x128xf32>
    %273 = math.exp %272 : vector<8x128xf32>
    %cst_97 = arith.constant 1.000000e+00 : f32
    %274 = vector.broadcast %cst_97 : f32 to vector<8x128xf32>
    %275 = arith.addf %274, %273 : vector<8x128xf32>
    %276 = arith.divf %274, %275 : vector<8x128xf32>
    %277 = vector.extract_strided_slice %260 {offsets = [0, 256], sizes = [8, 128], strides = [1, 1]} : vector<8x384xf32> to vector<8x128xf32>
    %278 = vector.extract_strided_slice %256 {offsets = [0, 256], sizes = [8, 128], strides = [1, 1]} : vector<8x384xf32> to vector<8x128xf32>
    %279 = arith.addf %278, %5 : vector<8x128xf32>
    %280 = arith.mulf %268, %279 : vector<8x128xf32>
    %281 = arith.addf %277, %280 : vector<8x128xf32>
    %282 = math.tanh %281 : vector<8x128xf32>
    %cst_98 = arith.constant 1.000000e+00 : f32
    %283 = vector.broadcast %cst_98 : f32 to vector<8x128xf32>
    %284 = arith.subf %283, %276 : vector<8x128xf32>
    %285 = arith.mulf %284, %282 : vector<8x128xf32>
    %286 = arith.mulf %276, %254 : vector<8x128xf32>
    %287 = arith.addf %285, %286 : vector<8x128xf32>
    %c0_99 = arith.constant 0 : index
    %c0_100 = arith.constant 0 : index
    %288 = vector.load %arg14[%c0_99, %c0_100] : memref<8x128xf32, #tpu.memory_space<vmem>>, vector<8x128xf32>
    tpu.vector_store %arg14[%c0_99, %c0_100], %287 {strides = array<i32>} : memref<8x128xf32, #tpu.memory_space<vmem>>, vector<8x128xf32>,
    %c8_i32_101 = arith.constant 8 : i32
    %289 = arith.muli %c6_i32, %c8_i32_101 : i32
    %c0_i32_102 = arith.constant 0 : i32
    %290 = arith.addi %c0_i32_102, %289 : i32
    %291 = tpu.assume_multiple %290, 8 : i32
    %292 = arith.index_cast %291 : i32 to index
    %c0_103 = arith.constant 0 : index
    %293 = vector.load %arg12[%292, %c0_103] : memref<64x128xf32, #tpu.memory_space<vmem>>, vector<8x128xf32>
    tpu.vector_store %arg12[%292, %c0_103], %287 {strides = array<i32>} : memref<64x128xf32, #tpu.memory_space<vmem>>, vector<8x128xf32>,
    %c7_i32 = arith.constant 7 : i32
    %c0_104 = arith.constant 0 : index
    %c0_105 = arith.constant 0 : index
    %294 = vector.load %arg14[%c0_104, %c0_105] : memref<8x128xf32, #tpu.memory_space<vmem>>, vector<8x128xf32>
    %295 = arith.truncf %294 : vector<8x128xf32> to vector<8x128xbf16>
    %cst_106 = arith.constant dense<0.000000e+00> : vector<8x384xf32>
    %296 = tpu.matmul %295, %1, %cst_106 {dimension_numbers = #tpu.dot_dimension_numbers<[1], [0], [0], [1], [0, 0, 1, 1], [], []>} : vector<8x128xbf16>, vector<128x384xbf16>, vector<8x384xf32> -> vector<8x384xf32>
    %c8_i32_107 = arith.constant 8 : i32
    %297 = arith.muli %c7_i32, %c8_i32_107 : i32
    %298 = tpu.assume_multiple %297, 8 : i32
    %299 = arith.index_cast %298 : i32 to index
    %c0_108 = arith.constant 0 : index
    %300 = vector.load %arg13[%299, %c0_108] : memref<64x384xf32, #tpu.memory_space<vmem>>, vector<8x384xf32>
    %301 = vector.extract_strided_slice %300 {offsets = [0, 0], sizes = [8, 128], strides = [1, 1]} : vector<8x384xf32> to vector<8x128xf32>
    %302 = vector.extract_strided_slice %296 {offsets = [0, 0], sizes = [8, 128], strides = [1, 1]} : vector<8x384xf32> to vector<8x128xf32>
    %303 = arith.addf %301, %302 : vector<8x128xf32>
    %304 = arith.negf %303 : vector<8x128xf32>
    %305 = math.exp %304 : vector<8x128xf32>
    %cst_109 = arith.constant 1.000000e+00 : f32
    %306 = vector.broadcast %cst_109 : f32 to vector<8x128xf32>
    %307 = arith.addf %306, %305 : vector<8x128xf32>
    %308 = arith.divf %306, %307 : vector<8x128xf32>
    %309 = vector.extract_strided_slice %300 {offsets = [0, 128], sizes = [8, 128], strides = [1, 1]} : vector<8x384xf32> to vector<8x128xf32>
    %310 = vector.extract_strided_slice %296 {offsets = [0, 128], sizes = [8, 128], strides = [1, 1]} : vector<8x384xf32> to vector<8x128xf32>
    %311 = arith.addf %309, %310 : vector<8x128xf32>
    %312 = arith.negf %311 : vector<8x128xf32>
    %313 = math.exp %312 : vector<8x128xf32>
    %cst_110 = arith.constant 1.000000e+00 : f32
    %314 = vector.broadcast %cst_110 : f32 to vector<8x128xf32>
    %315 = arith.addf %314, %313 : vector<8x128xf32>
    %316 = arith.divf %314, %315 : vector<8x128xf32>
    %317 = vector.extract_strided_slice %300 {offsets = [0, 256], sizes = [8, 128], strides = [1, 1]} : vector<8x384xf32> to vector<8x128xf32>
    %318 = vector.extract_strided_slice %296 {offsets = [0, 256], sizes = [8, 128], strides = [1, 1]} : vector<8x384xf32> to vector<8x128xf32>
    %319 = arith.addf %318, %5 : vector<8x128xf32>
    %320 = arith.mulf %308, %319 : vector<8x128xf32>
    %321 = arith.addf %317, %320 : vector<8x128xf32>
    %322 = math.tanh %321 : vector<8x128xf32>
    %cst_111 = arith.constant 1.000000e+00 : f32
    %323 = vector.broadcast %cst_111 : f32 to vector<8x128xf32>
    %324 = arith.subf %323, %316 : vector<8x128xf32>
    %325 = arith.mulf %324, %322 : vector<8x128xf32>
    %326 = arith.mulf %316, %294 : vector<8x128xf32>
    %327 = arith.addf %325, %326 : vector<8x128xf32>
    %c0_112 = arith.constant 0 : index
    %c0_113 = arith.constant 0 : index
    %328 = vector.load %arg14[%c0_112, %c0_113] : memref<8x128xf32, #tpu.memory_space<vmem>>, vector<8x128xf32>
    tpu.vector_store %arg14[%c0_112, %c0_113], %327 {strides = array<i32>} : memref<8x128xf32, #tpu.memory_space<vmem>>, vector<8x128xf32>,
    %c8_i32_114 = arith.constant 8 : i32
    %329 = arith.muli %c7_i32, %c8_i32_114 : i32
    %c0_i32_115 = arith.constant 0 : i32
    %330 = arith.addi %c0_i32_115, %329 : i32
    %331 = tpu.assume_multiple %330, 8 : i32
    %332 = arith.index_cast %331 : i32 to index
    %c0_116 = arith.constant 0 : index
    %333 = vector.load %arg12[%332, %c0_116] : memref<64x128xf32, #tpu.memory_space<vmem>>, vector<8x128xf32>
    tpu.vector_store %arg12[%332, %c0_116], %327 {strides = array<i32>} : memref<64x128xf32, #tpu.memory_space<vmem>>, vector<8x128xf32>,
    %c8_i32_117 = arith.constant 8 : i32
    %c0_118 = arith.constant 0 : index
    %c0_119 = arith.constant 0 : index
    %334 = vector.load %arg5[%c0_118, %c0_119] : memref<128x384xbf16, #tpu.memory_space<vmem>>, vector<128x384xbf16>
    %c0_120 = arith.constant 0 : index
    %c0_121 = arith.constant 0 : index
    %335 = vector.load %arg6[%c0_120, %c0_121] : memref<128x384xbf16, #tpu.memory_space<vmem>>, vector<128x384xbf16>
    %c0_122 = arith.constant 0 : index
    %c0_123 = arith.constant 0 : index
    %336 = vector.load %arg7[%c0_122, %c0_123] : memref<1x384xf32, #tpu.memory_space<vmem>>, vector<1x384xf32>
    %c0_124 = arith.constant 0 : index
    %c0_125 = arith.constant 0 : index
    %337 = vector.load %arg8[%c0_124, %c0_125] : memref<1x128xf32, #tpu.memory_space<vmem>>, vector<1x128xf32>
    %338 = vector.shape_cast %337 : vector<1x128xf32> to vector<1x128xf32>
    %339 = vector.broadcast %338 : vector<1x128xf32> to vector<8x128xf32>
    %cst_126 = arith.constant 0.000000e+00 : f32
    %340 = vector.broadcast %cst_126 : f32 to vector<8x128xf32>
    %c0_127 = arith.constant 0 : index
    %c0_128 = arith.constant 0 : index
    %341 = vector.load %arg14[%c0_127, %c0_128] : memref<8x128xf32, #tpu.memory_space<vmem>>, vector<8x128xf32>
    tpu.vector_store %arg14[%c0_127, %c0_128], %340 {strides = array<i32>} : memref<8x128xf32, #tpu.memory_space<vmem>>, vector<8x128xf32>,
    %c0_129 = arith.constant 0 : index
    %c0_130 = arith.constant 0 : index
    %342 = vector.load %arg12[%c0_129, %c0_130] : memref<64x128xf32, #tpu.memory_space<vmem>>, vector<64x128xf32>
    %343 = arith.truncf %342 : vector<64x128xf32> to vector<64x128xbf16>
    %cst_131 = arith.constant dense<0.000000e+00> : vector<64x384xf32>
    %344 = tpu.matmul %343, %334, %cst_131 {dimension_numbers = #tpu.dot_dimension_numbers<[1], [0], [0], [1], [0, 0, 1, 1], [], []>} : vector<64x128xbf16>, vector<128x384xbf16>, vector<64x384xf32> -> vector<64x384xf32>
    %345 = vector.broadcast %336 : vector<1x384xf32> to vector<64x384xf32>
    %346 = arith.addf %344, %345 : vector<64x384xf32>
    %c0_132 = arith.constant 0 : index
    %c0_133 = arith.constant 0 : index
    %347 = vector.load %arg13[%c0_132, %c0_133] : memref<64x384xf32, #tpu.memory_space<vmem>>, vector<64x384xf32>
    tpu.vector_store %arg13[%c0_132, %c0_133], %346 {strides = array<i32>} : memref<64x384xf32, #tpu.memory_space<vmem>>, vector<64x384xf32>,
    %c0_i32_134 = arith.constant 0 : i32
    %c0_135 = arith.constant 0 : index
    %c0_136 = arith.constant 0 : index
    %348 = vector.load %arg14[%c0_135, %c0_136] : memref<8x128xf32, #tpu.memory_space<vmem>>, vector<8x128xf32>
    %349 = arith.truncf %348 : vector<8x128xf32> to vector<8x128xbf16>
    %cst_137 = arith.constant dense<0.000000e+00> : vector<8x384xf32>
    %350 = tpu.matmul %349, %335, %cst_137 {dimension_numbers = #tpu.dot_dimension_numbers<[1], [0], [0], [1], [0, 0, 1, 1], [], []>} : vector<8x128xbf16>, vector<128x384xbf16>, vector<8x384xf32> -> vector<8x384xf32>
    %c8_i32_138 = arith.constant 8 : i32
    %351 = arith.muli %c0_i32_134, %c8_i32_138 : i32
    %352 = tpu.assume_multiple %351, 8 : i32
    %353 = arith.index_cast %352 : i32 to index
    %c0_139 = arith.constant 0 : index
    %354 = vector.load %arg13[%353, %c0_139] : memref<64x384xf32, #tpu.memory_space<vmem>>, vector<8x384xf32>
    %355 = vector.extract_strided_slice %354 {offsets = [0, 0], sizes = [8, 128], strides = [1, 1]} : vector<8x384xf32> to vector<8x128xf32>
    %356 = vector.extract_strided_slice %350 {offsets = [0, 0], sizes = [8, 128], strides = [1, 1]} : vector<8x384xf32> to vector<8x128xf32>
    %357 = arith.addf %355, %356 : vector<8x128xf32>
    %358 = arith.negf %357 : vector<8x128xf32>
    %359 = math.exp %358 : vector<8x128xf32>
    %cst_140 = arith.constant 1.000000e+00 : f32
    %360 = vector.broadcast %cst_140 : f32 to vector<8x128xf32>
    %361 = arith.addf %360, %359 : vector<8x128xf32>
    %362 = arith.divf %360, %361 : vector<8x128xf32>
    %363 = vector.extract_strided_slice %354 {offsets = [0, 128], sizes = [8, 128], strides = [1, 1]} : vector<8x384xf32> to vector<8x128xf32>
    %364 = vector.extract_strided_slice %350 {offsets = [0, 128], sizes = [8, 128], strides = [1, 1]} : vector<8x384xf32> to vector<8x128xf32>
    %365 = arith.addf %363, %364 : vector<8x128xf32>
    %366 = arith.negf %365 : vector<8x128xf32>
    %367 = math.exp %366 : vector<8x128xf32>
    %cst_141 = arith.constant 1.000000e+00 : f32
    %368 = vector.broadcast %cst_141 : f32 to vector<8x128xf32>
    %369 = arith.addf %368, %367 : vector<8x128xf32>
    %370 = arith.divf %368, %369 : vector<8x128xf32>
    %371 = vector.extract_strided_slice %354 {offsets = [0, 256], sizes = [8, 128], strides = [1, 1]} : vector<8x384xf32> to vector<8x128xf32>
    %372 = vector.extract_strided_slice %350 {offsets = [0, 256], sizes = [8, 128], strides = [1, 1]} : vector<8x384xf32> to vector<8x128xf32>
    %373 = arith.addf %372, %339 : vector<8x128xf32>
    %374 = arith.mulf %362, %373 : vector<8x128xf32>
    %375 = arith.addf %371, %374 : vector<8x128xf32>
    %376 = math.tanh %375 : vector<8x128xf32>
    %cst_142 = arith.constant 1.000000e+00 : f32
    %377 = vector.broadcast %cst_142 : f32 to vector<8x128xf32>
    %378 = arith.subf %377, %370 : vector<8x128xf32>
    %379 = arith.mulf %378, %376 : vector<8x128xf32>
    %380 = arith.mulf %370, %348 : vector<8x128xf32>
    %381 = arith.addf %379, %380 : vector<8x128xf32>
    %c0_143 = arith.constant 0 : index
    %c0_144 = arith.constant 0 : index
    %382 = vector.load %arg14[%c0_143, %c0_144] : memref<8x128xf32, #tpu.memory_space<vmem>>, vector<8x128xf32>
    tpu.vector_store %arg14[%c0_143, %c0_144], %381 {strides = array<i32>} : memref<8x128xf32, #tpu.memory_space<vmem>>, vector<8x128xf32>,
    %c1_i32_145 = arith.constant 1 : i32
    %c0_146 = arith.constant 0 : index
    %c0_147 = arith.constant 0 : index
    %383 = vector.load %arg14[%c0_146, %c0_147] : memref<8x128xf32, #tpu.memory_space<vmem>>, vector<8x128xf32>
    %384 = arith.truncf %383 : vector<8x128xf32> to vector<8x128xbf16>
    %cst_148 = arith.constant dense<0.000000e+00> : vector<8x384xf32>
    %385 = tpu.matmul %384, %335, %cst_148 {dimension_numbers = #tpu.dot_dimension_numbers<[1], [0], [0], [1], [0, 0, 1, 1], [], []>} : vector<8x128xbf16>, vector<128x384xbf16>, vector<8x384xf32> -> vector<8x384xf32>
    %c8_i32_149 = arith.constant 8 : i32
    %386 = arith.muli %c1_i32_145, %c8_i32_149 : i32
    %387 = tpu.assume_multiple %386, 8 : i32
    %388 = arith.index_cast %387 : i32 to index
    %c0_150 = arith.constant 0 : index
    %389 = vector.load %arg13[%388, %c0_150] : memref<64x384xf32, #tpu.memory_space<vmem>>, vector<8x384xf32>
    %390 = vector.extract_strided_slice %389 {offsets = [0, 0], sizes = [8, 128], strides = [1, 1]} : vector<8x384xf32> to vector<8x128xf32>
    %391 = vector.extract_strided_slice %385 {offsets = [0, 0], sizes = [8, 128], strides = [1, 1]} : vector<8x384xf32> to vector<8x128xf32>
    %392 = arith.addf %390, %391 : vector<8x128xf32>
    %393 = arith.negf %392 : vector<8x128xf32>
    %394 = math.exp %393 : vector<8x128xf32>
    %cst_151 = arith.constant 1.000000e+00 : f32
    %395 = vector.broadcast %cst_151 : f32 to vector<8x128xf32>
    %396 = arith.addf %395, %394 : vector<8x128xf32>
    %397 = arith.divf %395, %396 : vector<8x128xf32>
    %398 = vector.extract_strided_slice %389 {offsets = [0, 128], sizes = [8, 128], strides = [1, 1]} : vector<8x384xf32> to vector<8x128xf32>
    %399 = vector.extract_strided_slice %385 {offsets = [0, 128], sizes = [8, 128], strides = [1, 1]} : vector<8x384xf32> to vector<8x128xf32>
    %400 = arith.addf %398, %399 : vector<8x128xf32>
    %401 = arith.negf %400 : vector<8x128xf32>
    %402 = math.exp %401 : vector<8x128xf32>
    %cst_152 = arith.constant 1.000000e+00 : f32
    %403 = vector.broadcast %cst_152 : f32 to vector<8x128xf32>
    %404 = arith.addf %403, %402 : vector<8x128xf32>
    %405 = arith.divf %403, %404 : vector<8x128xf32>
    %406 = vector.extract_strided_slice %389 {offsets = [0, 256], sizes = [8, 128], strides = [1, 1]} : vector<8x384xf32> to vector<8x128xf32>
    %407 = vector.extract_strided_slice %385 {offsets = [0, 256], sizes = [8, 128], strides = [1, 1]} : vector<8x384xf32> to vector<8x128xf32>
    %408 = arith.addf %407, %339 : vector<8x128xf32>
    %409 = arith.mulf %397, %408 : vector<8x128xf32>
    %410 = arith.addf %406, %409 : vector<8x128xf32>
    %411 = math.tanh %410 : vector<8x128xf32>
    %cst_153 = arith.constant 1.000000e+00 : f32
    %412 = vector.broadcast %cst_153 : f32 to vector<8x128xf32>
    %413 = arith.subf %412, %405 : vector<8x128xf32>
    %414 = arith.mulf %413, %411 : vector<8x128xf32>
    %415 = arith.mulf %405, %383 : vector<8x128xf32>
    %416 = arith.addf %414, %415 : vector<8x128xf32>
    %c0_154 = arith.constant 0 : index
    %c0_155 = arith.constant 0 : index
    %417 = vector.load %arg14[%c0_154, %c0_155] : memref<8x128xf32, #tpu.memory_space<vmem>>, vector<8x128xf32>
    tpu.vector_store %arg14[%c0_154, %c0_155], %416 {strides = array<i32>} : memref<8x128xf32, #tpu.memory_space<vmem>>, vector<8x128xf32>,
    %c2_i32_156 = arith.constant 2 : i32
    %c0_157 = arith.constant 0 : index
    %c0_158 = arith.constant 0 : index
    %418 = vector.load %arg14[%c0_157, %c0_158] : memref<8x128xf32, #tpu.memory_space<vmem>>, vector<8x128xf32>
    %419 = arith.truncf %418 : vector<8x128xf32> to vector<8x128xbf16>
    %cst_159 = arith.constant dense<0.000000e+00> : vector<8x384xf32>
    %420 = tpu.matmul %419, %335, %cst_159 {dimension_numbers = #tpu.dot_dimension_numbers<[1], [0], [0], [1], [0, 0, 1, 1], [], []>} : vector<8x128xbf16>, vector<128x384xbf16>, vector<8x384xf32> -> vector<8x384xf32>
    %c8_i32_160 = arith.constant 8 : i32
    %421 = arith.muli %c2_i32_156, %c8_i32_160 : i32
    %422 = tpu.assume_multiple %421, 8 : i32
    %423 = arith.index_cast %422 : i32 to index
    %c0_161 = arith.constant 0 : index
    %424 = vector.load %arg13[%423, %c0_161] : memref<64x384xf32, #tpu.memory_space<vmem>>, vector<8x384xf32>
    %425 = vector.extract_strided_slice %424 {offsets = [0, 0], sizes = [8, 128], strides = [1, 1]} : vector<8x384xf32> to vector<8x128xf32>
    %426 = vector.extract_strided_slice %420 {offsets = [0, 0], sizes = [8, 128], strides = [1, 1]} : vector<8x384xf32> to vector<8x128xf32>
    %427 = arith.addf %425, %426 : vector<8x128xf32>
    %428 = arith.negf %427 : vector<8x128xf32>
    %429 = math.exp %428 : vector<8x128xf32>
    %cst_162 = arith.constant 1.000000e+00 : f32
    %430 = vector.broadcast %cst_162 : f32 to vector<8x128xf32>
    %431 = arith.addf %430, %429 : vector<8x128xf32>
    %432 = arith.divf %430, %431 : vector<8x128xf32>
    %433 = vector.extract_strided_slice %424 {offsets = [0, 128], sizes = [8, 128], strides = [1, 1]} : vector<8x384xf32> to vector<8x128xf32>
    %434 = vector.extract_strided_slice %420 {offsets = [0, 128], sizes = [8, 128], strides = [1, 1]} : vector<8x384xf32> to vector<8x128xf32>
    %435 = arith.addf %433, %434 : vector<8x128xf32>
    %436 = arith.negf %435 : vector<8x128xf32>
    %437 = math.exp %436 : vector<8x128xf32>
    %cst_163 = arith.constant 1.000000e+00 : f32
    %438 = vector.broadcast %cst_163 : f32 to vector<8x128xf32>
    %439 = arith.addf %438, %437 : vector<8x128xf32>
    %440 = arith.divf %438, %439 : vector<8x128xf32>
    %441 = vector.extract_strided_slice %424 {offsets = [0, 256], sizes = [8, 128], strides = [1, 1]} : vector<8x384xf32> to vector<8x128xf32>
    %442 = vector.extract_strided_slice %420 {offsets = [0, 256], sizes = [8, 128], strides = [1, 1]} : vector<8x384xf32> to vector<8x128xf32>
    %443 = arith.addf %442, %339 : vector<8x128xf32>
    %444 = arith.mulf %432, %443 : vector<8x128xf32>
    %445 = arith.addf %441, %444 : vector<8x128xf32>
    %446 = math.tanh %445 : vector<8x128xf32>
    %cst_164 = arith.constant 1.000000e+00 : f32
    %447 = vector.broadcast %cst_164 : f32 to vector<8x128xf32>
    %448 = arith.subf %447, %440 : vector<8x128xf32>
    %449 = arith.mulf %448, %446 : vector<8x128xf32>
    %450 = arith.mulf %440, %418 : vector<8x128xf32>
    %451 = arith.addf %449, %450 : vector<8x128xf32>
    %c0_165 = arith.constant 0 : index
    %c0_166 = arith.constant 0 : index
    %452 = vector.load %arg14[%c0_165, %c0_166] : memref<8x128xf32, #tpu.memory_space<vmem>>, vector<8x128xf32>
    tpu.vector_store %arg14[%c0_165, %c0_166], %451 {strides = array<i32>} : memref<8x128xf32, #tpu.memory_space<vmem>>, vector<8x128xf32>,
    %c3_i32_167 = arith.constant 3 : i32
    %c0_168 = arith.constant 0 : index
    %c0_169 = arith.constant 0 : index
    %453 = vector.load %arg14[%c0_168, %c0_169] : memref<8x128xf32, #tpu.memory_space<vmem>>, vector<8x128xf32>
    %454 = arith.truncf %453 : vector<8x128xf32> to vector<8x128xbf16>
    %cst_170 = arith.constant dense<0.000000e+00> : vector<8x384xf32>
    %455 = tpu.matmul %454, %335, %cst_170 {dimension_numbers = #tpu.dot_dimension_numbers<[1], [0], [0], [1], [0, 0, 1, 1], [], []>} : vector<8x128xbf16>, vector<128x384xbf16>, vector<8x384xf32> -> vector<8x384xf32>
    %c8_i32_171 = arith.constant 8 : i32
    %456 = arith.muli %c3_i32_167, %c8_i32_171 : i32
    %457 = tpu.assume_multiple %456, 8 : i32
    %458 = arith.index_cast %457 : i32 to index
    %c0_172 = arith.constant 0 : index
    %459 = vector.load %arg13[%458, %c0_172] : memref<64x384xf32, #tpu.memory_space<vmem>>, vector<8x384xf32>
    %460 = vector.extract_strided_slice %459 {offsets = [0, 0], sizes = [8, 128], strides = [1, 1]} : vector<8x384xf32> to vector<8x128xf32>
    %461 = vector.extract_strided_slice %455 {offsets = [0, 0], sizes = [8, 128], strides = [1, 1]} : vector<8x384xf32> to vector<8x128xf32>
    %462 = arith.addf %460, %461 : vector<8x128xf32>
    %463 = arith.negf %462 : vector<8x128xf32>
    %464 = math.exp %463 : vector<8x128xf32>
    %cst_173 = arith.constant 1.000000e+00 : f32
    %465 = vector.broadcast %cst_173 : f32 to vector<8x128xf32>
    %466 = arith.addf %465, %464 : vector<8x128xf32>
    %467 = arith.divf %465, %466 : vector<8x128xf32>
    %468 = vector.extract_strided_slice %459 {offsets = [0, 128], sizes = [8, 128], strides = [1, 1]} : vector<8x384xf32> to vector<8x128xf32>
    %469 = vector.extract_strided_slice %455 {offsets = [0, 128], sizes = [8, 128], strides = [1, 1]} : vector<8x384xf32> to vector<8x128xf32>
    %470 = arith.addf %468, %469 : vector<8x128xf32>
    %471 = arith.negf %470 : vector<8x128xf32>
    %472 = math.exp %471 : vector<8x128xf32>
    %cst_174 = arith.constant 1.000000e+00 : f32
    %473 = vector.broadcast %cst_174 : f32 to vector<8x128xf32>
    %474 = arith.addf %473, %472 : vector<8x128xf32>
    %475 = arith.divf %473, %474 : vector<8x128xf32>
    %476 = vector.extract_strided_slice %459 {offsets = [0, 256], sizes = [8, 128], strides = [1, 1]} : vector<8x384xf32> to vector<8x128xf32>
    %477 = vector.extract_strided_slice %455 {offsets = [0, 256], sizes = [8, 128], strides = [1, 1]} : vector<8x384xf32> to vector<8x128xf32>
    %478 = arith.addf %477, %339 : vector<8x128xf32>
    %479 = arith.mulf %467, %478 : vector<8x128xf32>
    %480 = arith.addf %476, %479 : vector<8x128xf32>
    %481 = math.tanh %480 : vector<8x128xf32>
    %cst_175 = arith.constant 1.000000e+00 : f32
    %482 = vector.broadcast %cst_175 : f32 to vector<8x128xf32>
    %483 = arith.subf %482, %475 : vector<8x128xf32>
    %484 = arith.mulf %483, %481 : vector<8x128xf32>
    %485 = arith.mulf %475, %453 : vector<8x128xf32>
    %486 = arith.addf %484, %485 : vector<8x128xf32>
    %c0_176 = arith.constant 0 : index
    %c0_177 = arith.constant 0 : index
    %487 = vector.load %arg14[%c0_176, %c0_177] : memref<8x128xf32, #tpu.memory_space<vmem>>, vector<8x128xf32>
    tpu.vector_store %arg14[%c0_176, %c0_177], %486 {strides = array<i32>} : memref<8x128xf32, #tpu.memory_space<vmem>>, vector<8x128xf32>,
    %c4_i32_178 = arith.constant 4 : i32
    %c0_179 = arith.constant 0 : index
    %c0_180 = arith.constant 0 : index
    %488 = vector.load %arg14[%c0_179, %c0_180] : memref<8x128xf32, #tpu.memory_space<vmem>>, vector<8x128xf32>
    %489 = arith.truncf %488 : vector<8x128xf32> to vector<8x128xbf16>
    %cst_181 = arith.constant dense<0.000000e+00> : vector<8x384xf32>
    %490 = tpu.matmul %489, %335, %cst_181 {dimension_numbers = #tpu.dot_dimension_numbers<[1], [0], [0], [1], [0, 0, 1, 1], [], []>} : vector<8x128xbf16>, vector<128x384xbf16>, vector<8x384xf32> -> vector<8x384xf32>
    %c8_i32_182 = arith.constant 8 : i32
    %491 = arith.muli %c4_i32_178, %c8_i32_182 : i32
    %492 = tpu.assume_multiple %491, 8 : i32
    %493 = arith.index_cast %492 : i32 to index
    %c0_183 = arith.constant 0 : index
    %494 = vector.load %arg13[%493, %c0_183] : memref<64x384xf32, #tpu.memory_space<vmem>>, vector<8x384xf32>
    %495 = vector.extract_strided_slice %494 {offsets = [0, 0], sizes = [8, 128], strides = [1, 1]} : vector<8x384xf32> to vector<8x128xf32>
    %496 = vector.extract_strided_slice %490 {offsets = [0, 0], sizes = [8, 128], strides = [1, 1]} : vector<8x384xf32> to vector<8x128xf32>
    %497 = arith.addf %495, %496 : vector<8x128xf32>
    %498 = arith.negf %497 : vector<8x128xf32>
    %499 = math.exp %498 : vector<8x128xf32>
    %cst_184 = arith.constant 1.000000e+00 : f32
    %500 = vector.broadcast %cst_184 : f32 to vector<8x128xf32>
    %501 = arith.addf %500, %499 : vector<8x128xf32>
    %502 = arith.divf %500, %501 : vector<8x128xf32>
    %503 = vector.extract_strided_slice %494 {offsets = [0, 128], sizes = [8, 128], strides = [1, 1]} : vector<8x384xf32> to vector<8x128xf32>
    %504 = vector.extract_strided_slice %490 {offsets = [0, 128], sizes = [8, 128], strides = [1, 1]} : vector<8x384xf32> to vector<8x128xf32>
    %505 = arith.addf %503, %504 : vector<8x128xf32>
    %506 = arith.negf %505 : vector<8x128xf32>
    %507 = math.exp %506 : vector<8x128xf32>
    %cst_185 = arith.constant 1.000000e+00 : f32
    %508 = vector.broadcast %cst_185 : f32 to vector<8x128xf32>
    %509 = arith.addf %508, %507 : vector<8x128xf32>
    %510 = arith.divf %508, %509 : vector<8x128xf32>
    %511 = vector.extract_strided_slice %494 {offsets = [0, 256], sizes = [8, 128], strides = [1, 1]} : vector<8x384xf32> to vector<8x128xf32>
    %512 = vector.extract_strided_slice %490 {offsets = [0, 256], sizes = [8, 128], strides = [1, 1]} : vector<8x384xf32> to vector<8x128xf32>
    %513 = arith.addf %512, %339 : vector<8x128xf32>
    %514 = arith.mulf %502, %513 : vector<8x128xf32>
    %515 = arith.addf %511, %514 : vector<8x128xf32>
    %516 = math.tanh %515 : vector<8x128xf32>
    %cst_186 = arith.constant 1.000000e+00 : f32
    %517 = vector.broadcast %cst_186 : f32 to vector<8x128xf32>
    %518 = arith.subf %517, %510 : vector<8x128xf32>
    %519 = arith.mulf %518, %516 : vector<8x128xf32>
    %520 = arith.mulf %510, %488 : vector<8x128xf32>
    %521 = arith.addf %519, %520 : vector<8x128xf32>
    %c0_187 = arith.constant 0 : index
    %c0_188 = arith.constant 0 : index
    %522 = vector.load %arg14[%c0_187, %c0_188] : memref<8x128xf32, #tpu.memory_space<vmem>>, vector<8x128xf32>
    tpu.vector_store %arg14[%c0_187, %c0_188], %521 {strides = array<i32>} : memref<8x128xf32, #tpu.memory_space<vmem>>, vector<8x128xf32>,
    %c5_i32_189 = arith.constant 5 : i32
    %c0_190 = arith.constant 0 : index
    %c0_191 = arith.constant 0 : index
    %523 = vector.load %arg14[%c0_190, %c0_191] : memref<8x128xf32, #tpu.memory_space<vmem>>, vector<8x128xf32>
    %524 = arith.truncf %523 : vector<8x128xf32> to vector<8x128xbf16>
    %cst_192 = arith.constant dense<0.000000e+00> : vector<8x384xf32>
    %525 = tpu.matmul %524, %335, %cst_192 {dimension_numbers = #tpu.dot_dimension_numbers<[1], [0], [0], [1], [0, 0, 1, 1], [], []>} : vector<8x128xbf16>, vector<128x384xbf16>, vector<8x384xf32> -> vector<8x384xf32>
    %c8_i32_193 = arith.constant 8 : i32
    %526 = arith.muli %c5_i32_189, %c8_i32_193 : i32
    %527 = tpu.assume_multiple %526, 8 : i32
    %528 = arith.index_cast %527 : i32 to index
    %c0_194 = arith.constant 0 : index
    %529 = vector.load %arg13[%528, %c0_194] : memref<64x384xf32, #tpu.memory_space<vmem>>, vector<8x384xf32>
    %530 = vector.extract_strided_slice %529 {offsets = [0, 0], sizes = [8, 128], strides = [1, 1]} : vector<8x384xf32> to vector<8x128xf32>
    %531 = vector.extract_strided_slice %525 {offsets = [0, 0], sizes = [8, 128], strides = [1, 1]} : vector<8x384xf32> to vector<8x128xf32>
    %532 = arith.addf %530, %531 : vector<8x128xf32>
    %533 = arith.negf %532 : vector<8x128xf32>
    %534 = math.exp %533 : vector<8x128xf32>
    %cst_195 = arith.constant 1.000000e+00 : f32
    %535 = vector.broadcast %cst_195 : f32 to vector<8x128xf32>
    %536 = arith.addf %535, %534 : vector<8x128xf32>
    %537 = arith.divf %535, %536 : vector<8x128xf32>
    %538 = vector.extract_strided_slice %529 {offsets = [0, 128], sizes = [8, 128], strides = [1, 1]} : vector<8x384xf32> to vector<8x128xf32>
    %539 = vector.extract_strided_slice %525 {offsets = [0, 128], sizes = [8, 128], strides = [1, 1]} : vector<8x384xf32> to vector<8x128xf32>
    %540 = arith.addf %538, %539 : vector<8x128xf32>
    %541 = arith.negf %540 : vector<8x128xf32>
    %542 = math.exp %541 : vector<8x128xf32>
    %cst_196 = arith.constant 1.000000e+00 : f32
    %543 = vector.broadcast %cst_196 : f32 to vector<8x128xf32>
    %544 = arith.addf %543, %542 : vector<8x128xf32>
    %545 = arith.divf %543, %544 : vector<8x128xf32>
    %546 = vector.extract_strided_slice %529 {offsets = [0, 256], sizes = [8, 128], strides = [1, 1]} : vector<8x384xf32> to vector<8x128xf32>
    %547 = vector.extract_strided_slice %525 {offsets = [0, 256], sizes = [8, 128], strides = [1, 1]} : vector<8x384xf32> to vector<8x128xf32>
    %548 = arith.addf %547, %339 : vector<8x128xf32>
    %549 = arith.mulf %537, %548 : vector<8x128xf32>
    %550 = arith.addf %546, %549 : vector<8x128xf32>
    %551 = math.tanh %550 : vector<8x128xf32>
    %cst_197 = arith.constant 1.000000e+00 : f32
    %552 = vector.broadcast %cst_197 : f32 to vector<8x128xf32>
    %553 = arith.subf %552, %545 : vector<8x128xf32>
    %554 = arith.mulf %553, %551 : vector<8x128xf32>
    %555 = arith.mulf %545, %523 : vector<8x128xf32>
    %556 = arith.addf %554, %555 : vector<8x128xf32>
    %c0_198 = arith.constant 0 : index
    %c0_199 = arith.constant 0 : index
    %557 = vector.load %arg14[%c0_198, %c0_199] : memref<8x128xf32, #tpu.memory_space<vmem>>, vector<8x128xf32>
    tpu.vector_store %arg14[%c0_198, %c0_199], %556 {strides = array<i32>} : memref<8x128xf32, #tpu.memory_space<vmem>>, vector<8x128xf32>,
    %c6_i32_200 = arith.constant 6 : i32
    %c0_201 = arith.constant 0 : index
    %c0_202 = arith.constant 0 : index
    %558 = vector.load %arg14[%c0_201, %c0_202] : memref<8x128xf32, #tpu.memory_space<vmem>>, vector<8x128xf32>
    %559 = arith.truncf %558 : vector<8x128xf32> to vector<8x128xbf16>
    %cst_203 = arith.constant dense<0.000000e+00> : vector<8x384xf32>
    %560 = tpu.matmul %559, %335, %cst_203 {dimension_numbers = #tpu.dot_dimension_numbers<[1], [0], [0], [1], [0, 0, 1, 1], [], []>} : vector<8x128xbf16>, vector<128x384xbf16>, vector<8x384xf32> -> vector<8x384xf32>
    %c8_i32_204 = arith.constant 8 : i32
    %561 = arith.muli %c6_i32_200, %c8_i32_204 : i32
    %562 = tpu.assume_multiple %561, 8 : i32
    %563 = arith.index_cast %562 : i32 to index
    %c0_205 = arith.constant 0 : index
    %564 = vector.load %arg13[%563, %c0_205] : memref<64x384xf32, #tpu.memory_space<vmem>>, vector<8x384xf32>
    %565 = vector.extract_strided_slice %564 {offsets = [0, 0], sizes = [8, 128], strides = [1, 1]} : vector<8x384xf32> to vector<8x128xf32>
    %566 = vector.extract_strided_slice %560 {offsets = [0, 0], sizes = [8, 128], strides = [1, 1]} : vector<8x384xf32> to vector<8x128xf32>
    %567 = arith.addf %565, %566 : vector<8x128xf32>
    %568 = arith.negf %567 : vector<8x128xf32>
    %569 = math.exp %568 : vector<8x128xf32>
    %cst_206 = arith.constant 1.000000e+00 : f32
    %570 = vector.broadcast %cst_206 : f32 to vector<8x128xf32>
    %571 = arith.addf %570, %569 : vector<8x128xf32>
    %572 = arith.divf %570, %571 : vector<8x128xf32>
    %573 = vector.extract_strided_slice %564 {offsets = [0, 128], sizes = [8, 128], strides = [1, 1]} : vector<8x384xf32> to vector<8x128xf32>
    %574 = vector.extract_strided_slice %560 {offsets = [0, 128], sizes = [8, 128], strides = [1, 1]} : vector<8x384xf32> to vector<8x128xf32>
    %575 = arith.addf %573, %574 : vector<8x128xf32>
    %576 = arith.negf %575 : vector<8x128xf32>
    %577 = math.exp %576 : vector<8x128xf32>
    %cst_207 = arith.constant 1.000000e+00 : f32
    %578 = vector.broadcast %cst_207 : f32 to vector<8x128xf32>
    %579 = arith.addf %578, %577 : vector<8x128xf32>
    %580 = arith.divf %578, %579 : vector<8x128xf32>
    %581 = vector.extract_strided_slice %564 {offsets = [0, 256], sizes = [8, 128], strides = [1, 1]} : vector<8x384xf32> to vector<8x128xf32>
    %582 = vector.extract_strided_slice %560 {offsets = [0, 256], sizes = [8, 128], strides = [1, 1]} : vector<8x384xf32> to vector<8x128xf32>
    %583 = arith.addf %582, %339 : vector<8x128xf32>
    %584 = arith.mulf %572, %583 : vector<8x128xf32>
    %585 = arith.addf %581, %584 : vector<8x128xf32>
    %586 = math.tanh %585 : vector<8x128xf32>
    %cst_208 = arith.constant 1.000000e+00 : f32
    %587 = vector.broadcast %cst_208 : f32 to vector<8x128xf32>
    %588 = arith.subf %587, %580 : vector<8x128xf32>
    %589 = arith.mulf %588, %586 : vector<8x128xf32>
    %590 = arith.mulf %580, %558 : vector<8x128xf32>
    %591 = arith.addf %589, %590 : vector<8x128xf32>
    %c0_209 = arith.constant 0 : index
    %c0_210 = arith.constant 0 : index
    %592 = vector.load %arg14[%c0_209, %c0_210] : memref<8x128xf32, #tpu.memory_space<vmem>>, vector<8x128xf32>
    tpu.vector_store %arg14[%c0_209, %c0_210], %591 {strides = array<i32>} : memref<8x128xf32, #tpu.memory_space<vmem>>, vector<8x128xf32>,
    %c7_i32_211 = arith.constant 7 : i32
    %c0_212 = arith.constant 0 : index
    %c0_213 = arith.constant 0 : index
    %593 = vector.load %arg14[%c0_212, %c0_213] : memref<8x128xf32, #tpu.memory_space<vmem>>, vector<8x128xf32>
    %594 = arith.truncf %593 : vector<8x128xf32> to vector<8x128xbf16>
    %cst_214 = arith.constant dense<0.000000e+00> : vector<8x384xf32>
    %595 = tpu.matmul %594, %335, %cst_214 {dimension_numbers = #tpu.dot_dimension_numbers<[1], [0], [0], [1], [0, 0, 1, 1], [], []>} : vector<8x128xbf16>, vector<128x384xbf16>, vector<8x384xf32> -> vector<8x384xf32>
    %c8_i32_215 = arith.constant 8 : i32
    %596 = arith.muli %c7_i32_211, %c8_i32_215 : i32
    %597 = tpu.assume_multiple %596, 8 : i32
    %598 = arith.index_cast %597 : i32 to index
    %c0_216 = arith.constant 0 : index
    %599 = vector.load %arg13[%598, %c0_216] : memref<64x384xf32, #tpu.memory_space<vmem>>, vector<8x384xf32>
    %600 = vector.extract_strided_slice %599 {offsets = [0, 0], sizes = [8, 128], strides = [1, 1]} : vector<8x384xf32> to vector<8x128xf32>
    %601 = vector.extract_strided_slice %595 {offsets = [0, 0], sizes = [8, 128], strides = [1, 1]} : vector<8x384xf32> to vector<8x128xf32>
    %602 = arith.addf %600, %601 : vector<8x128xf32>
    %603 = arith.negf %602 : vector<8x128xf32>
    %604 = math.exp %603 : vector<8x128xf32>
    %cst_217 = arith.constant 1.000000e+00 : f32
    %605 = vector.broadcast %cst_217 : f32 to vector<8x128xf32>
    %606 = arith.addf %605, %604 : vector<8x128xf32>
    %607 = arith.divf %605, %606 : vector<8x128xf32>
    %608 = vector.extract_strided_slice %599 {offsets = [0, 128], sizes = [8, 128], strides = [1, 1]} : vector<8x384xf32> to vector<8x128xf32>
    %609 = vector.extract_strided_slice %595 {offsets = [0, 128], sizes = [8, 128], strides = [1, 1]} : vector<8x384xf32> to vector<8x128xf32>
    %610 = arith.addf %608, %609 : vector<8x128xf32>
    %611 = arith.negf %610 : vector<8x128xf32>
    %612 = math.exp %611 : vector<8x128xf32>
    %cst_218 = arith.constant 1.000000e+00 : f32
    %613 = vector.broadcast %cst_218 : f32 to vector<8x128xf32>
    %614 = arith.addf %613, %612 : vector<8x128xf32>
    %615 = arith.divf %613, %614 : vector<8x128xf32>
    %616 = vector.extract_strided_slice %599 {offsets = [0, 256], sizes = [8, 128], strides = [1, 1]} : vector<8x384xf32> to vector<8x128xf32>
    %617 = vector.extract_strided_slice %595 {offsets = [0, 256], sizes = [8, 128], strides = [1, 1]} : vector<8x384xf32> to vector<8x128xf32>
    %618 = arith.addf %617, %339 : vector<8x128xf32>
    %619 = arith.mulf %607, %618 : vector<8x128xf32>
    %620 = arith.addf %616, %619 : vector<8x128xf32>
    %621 = math.tanh %620 : vector<8x128xf32>
    %cst_219 = arith.constant 1.000000e+00 : f32
    %622 = vector.broadcast %cst_219 : f32 to vector<8x128xf32>
    %623 = arith.subf %622, %615 : vector<8x128xf32>
    %624 = arith.mulf %623, %621 : vector<8x128xf32>
    %625 = arith.mulf %615, %593 : vector<8x128xf32>
    %626 = arith.addf %624, %625 : vector<8x128xf32>
    %c0_220 = arith.constant 0 : index
    %c0_221 = arith.constant 0 : index
    %627 = vector.load %arg14[%c0_220, %c0_221] : memref<8x128xf32, #tpu.memory_space<vmem>>, vector<8x128xf32>
    tpu.vector_store %arg14[%c0_220, %c0_221], %626 {strides = array<i32>} : memref<8x128xf32, #tpu.memory_space<vmem>>, vector<8x128xf32>,
    %c8_i32_222 = arith.constant 8 : i32
    %c0_223 = arith.constant 0 : index
    %c0_224 = arith.constant 0 : index
    %628 = vector.load %arg14[%c0_223, %c0_224] : memref<8x128xf32, #tpu.memory_space<vmem>>, vector<8x128xf32>
    %c0_225 = arith.constant 0 : index
    %c0_226 = arith.constant 0 : index
    %629 = vector.load %arg9[%c0_225, %c0_226] : memref<128x5xf32, #tpu.memory_space<vmem>>, vector<128x5xf32>
    %cst_227 = arith.constant dense<0.000000e+00> : vector<8x5xf32>
    %630 = tpu.matmul %628, %629, %cst_227 {dimension_numbers = #tpu.dot_dimension_numbers<[1], [0], [0], [1], [0, 0, 1, 1], [], []>} : vector<8x128xf32>, vector<128x5xf32>, vector<8x5xf32> -> vector<8x5xf32>
    %c0_228 = arith.constant 0 : index
    %c0_229 = arith.constant 0 : index
    %631 = vector.load %arg10[%c0_228, %c0_229] : memref<1x5xf32, #tpu.memory_space<vmem>>, vector<1x5xf32>
    %632 = vector.broadcast %631 : vector<1x5xf32> to vector<8x5xf32>
    %633 = arith.addf %630, %632 : vector<8x5xf32>
    %cst_230 = arith.constant dense<0xFF800000> : vector<8xf32>
    %634 = vector.multi_reduction <maximumf>, %633, %cst_230 [1] : vector<8x5xf32> to vector<8xf32>
    %635 = vector.shape_cast %634 : vector<8xf32> to vector<8x1xf32>
    %636 = vector.broadcast %635 : vector<8x1xf32> to vector<8x5xf32>
    %637 = arith.subf %633, %636 : vector<8x5xf32>
    %638 = math.exp %637 : vector<8x5xf32>
    %cst_231 = arith.constant dense<0.000000e+00> : vector<8xf32>
    %639 = vector.multi_reduction <add>, %638, %cst_231 [1] : vector<8x5xf32> to vector<8xf32>
    %640 = vector.shape_cast %639 : vector<8xf32> to vector<8x1xf32>
    %641 = vector.broadcast %640 : vector<8x1xf32> to vector<8x5xf32>
    %642 = arith.divf %638, %641 : vector<8x5xf32>
    %c0_232 = arith.constant 0 : index
    %c0_233 = arith.constant 0 : index
    %643 = vector.load %arg11[%c0_232, %c0_233] : memref<8x5xf32, #tpu.memory_space<vmem>>, vector<8x5xf32>
    tpu.vector_store %arg11[%c0_232, %c0_233], %642 {strides = array<i32>} : memref<8x5xf32, #tpu.memory_space<vmem>>, vector<8x5xf32>,
    return
  }
}

</mosaic_0001>

<llo_original>
// kernel: _rnn_forward.1
$region0: #{_rnn_forward.1}
  #allocation0 [shape = 'u32[]', space=smem, size = 0x4, offset = 0x4, fixed_abs, tag = 'smem constant byte address 0x4 - core index']
  #allocation1 [shape = 'u32[144,128]{1,0:T(1,128)}', space=vmem, size = 0x12000, scoped, tag = 'internal scratch']
  #allocation2 [shape = 'f32[64,128]{1,0:T(8,128)}', space=vmem, size = 0x8000, scoped, tag = 'scratch operand']
  #allocation3 [shape = 'f32[64,384]{1,0:T(8,128)}', space=vmem, size = 0x18000, scoped, tag = 'scratch operand']
  #allocation4 [shape = 'f32[8,128]{1,0:T(8,128)}', space=vmem, size = 0x1000, scoped, tag = 'scratch operand']
  %s0 = inlined_call_operand.vmem [shape: f32[64,8], index: 0, kind: input, shape index: {}]
  %s1 = inlined_call_operand.vmem [shape: bf16[8,384], index: 1, kind: input, shape index: {}]
  %s2 = inlined_call_operand.vmem [shape: bf16[128,384], index: 2, kind: input, shape index: {}]
  %s3 = inlined_call_operand.vmem [shape: f32[1,384], index: 3, kind: input, shape index: {}]
  %s4 = inlined_call_operand.vmem [shape: f32[1,128], index: 4, kind: input, shape index: {}]
  %s5 = inlined_call_operand.hbm [shape: bf16[128,384], index: 5, kind: input, shape index: {}]
  %s6 = inlined_call_operand.hbm [shape: bf16[128,384], index: 6, kind: input, shape index: {}]
  %s7 = inlined_call_operand.vmem [shape: f32[1,384], index: 7, kind: input, shape index: {}]
  %s8 = inlined_call_operand.vmem [shape: f32[1,128], index: 8, kind: input, shape index: {}]
  %s9 = inlined_call_operand.vmem [shape: f32[128,5], index: 9, kind: input, shape index: {}]
  %s10 = inlined_call_operand.vmem [shape: f32[1,5], index: 10, kind: input, shape index: {}]
  %s11 = inlined_call_operand.vmem [shape: f32[8,5], index: 11, kind: output, shape index: {}]
  %s12 = sld [smem:[#allocation0]]
  $region62: #{_rnn_forward.1} parent=0
    _
  %s14 = ssub.s32 1, %s12
  %s15 = scalar_select 0, %s14, %s12
  $region1: #{_rnn_forward.1} parent=0
    #allocation5 [shape = 'u8[98304]{0}', space=vmem, size = 0x18000, scoped, tag = 'input window, operand 5, single buffered']
    #allocation6 [shape = 's32[1]{0}', space=sflag, size = 0x4, scoped, tag = 'scoped memory for _rnn_forward.1']
    #allocation7 [shape = 'u8[98304]{0}', space=vmem, size = 0x18000, scoped, tag = 'input window, operand 6, single buffered']
    #allocation8 [shape = 's32[1]{0}', space=sflag, size = 0x4, scoped, tag = 'scoped memory for _rnn_forward.1']
    %16 = vsyncpa [#allocation6], 0
    %17 = vsyncpa [#allocation8], 0
    // Predicated region
    $region2: #{_rnn_forward.1} parent=1 // pred_check
      _
    $region3: #{_rnn_forward.1} parent=1 // pred_check_branch
      %19 = sbr.rel (0) target = $region5
    $region4: #{_rnn_forward.1} parent=1 // pred_region
      _
    $region5: #{_rnn_forward.1} parent=1 // pred_fallthru
      _
    // Predicated region
    $region6: #{_rnn_forward.1} parent=1 // pred_check
      _
    $region7: #{_rnn_forward.1} parent=1 // pred_check_branch
      %21 = sbr.rel (0) target = $region9
    $region8: #{_rnn_forward.1} parent=1 // pred_region
      _
    $region9: #{_rnn_forward.1} parent=1 // pred_fallthru
      _
    // Predicated region
    $region10: #{_rnn_forward.1} parent=1 // pred_check
      _
    $region11: #{_rnn_forward.1} parent=1 // pred_check_branch
      %23 = sbr.rel (0) target = $region13
    $region12: #{_rnn_forward.1} parent=1 // pred_region
      _
    $region13: #{_rnn_forward.1} parent=1 // pred_fallthru
      _
    // Predicated region
    $region14: #{_rnn_forward.1} parent=1 // pred_check
      _
    $region15: #{_rnn_forward.1} parent=1 // pred_check_branch
      %25 = sbr.rel (0) target = $region17
    $region16: #{_rnn_forward.1} parent=1 // pred_region
      _
    $region17: #{_rnn_forward.1} parent=1 // pred_fallthru
      _
    // Predicated region
    $region18: #{_rnn_forward.1} parent=1 // pred_check
      _
    $region19: #{_rnn_forward.1} parent=1 // pred_check_branch
      %27 = sbr.rel (0) target = $region21
    $region20: #{_rnn_forward.1} parent=1 // pred_region
      _
    $region21: #{_rnn_forward.1} parent=1 // pred_fallthru
      _
    // Predicated region
    $region22: #{_rnn_forward.1} parent=1 // pred_check
      _
    $region23: #{_rnn_forward.1} parent=1 // pred_check_branch
      %29 = sbr.rel (0) target = $region25
    $region24: #{_rnn_forward.1} parent=1 // pred_region
      %s31 = ssub.s32 3072, 3072
      %32 = vsyncadd [#allocation6], %s31
      %s33 = sshll.u32 [#allocation5], 4
      %s34 = int_to_ptr.vmem [resolvable:$true] %s33
      %39 = dma.hbm_to_vmem [thread:$0]  %s5, 3072, %s34, [#allocation6], 192, 192, 12
    $region25: #{_rnn_forward.1} parent=1 // pred_fallthru
      _
    // Predicated region
    $region26: #{_rnn_forward.1} parent=1 // pred_check
      _
    $region27: #{_rnn_forward.1} parent=1 // pred_check_branch
      %41 = sbr.rel (0) target = $region29
    $region28: #{_rnn_forward.1} parent=1 // pred_region
      %s43 = ssub.s32 3072, 3072
      %44 = vsyncadd [#allocation8], %s43
      %s45 = sshll.u32 [#allocation7], 4
      %s46 = int_to_ptr.vmem [resolvable:$true] %s45
      %51 = dma.hbm_to_vmem [thread:$0]  %s6, 3072, %s46, [#allocation8], 192, 192, 12
    $region29: #{_rnn_forward.1} parent=1 // pred_fallthru
      _
    // Predicated region
    $region30: #{_rnn_forward.1} parent=1 // pred_check
      _
    $region31: #{_rnn_forward.1} parent=1 // pred_check_branch
      %53 = sbr.rel (0) target = $region33
    $region32: #{_rnn_forward.1} parent=1 // pred_region
      _
    $region33: #{_rnn_forward.1} parent=1 // pred_fallthru
      _
    // Predicated region
    $region34: #{_rnn_forward.1} parent=1 // pred_check
      _
    $region35: #{_rnn_forward.1} parent=1 // pred_check_branch
      %55 = sbr.rel (0) target = $region37
    $region36: #{_rnn_forward.1} parent=1 // pred_region
      _
    $region37: #{_rnn_forward.1} parent=1 // pred_fallthru
      _
    // Predicated region
    $region38: #{_rnn_forward.1} parent=1 // pred_check
      _
    $region39: #{_rnn_forward.1} parent=1 // pred_check_branch
      %57 = sbr.rel (0) target = $region41
    $region40: #{_rnn_forward.1} parent=1 // pred_region
      _
    $region41: #{_rnn_forward.1} parent=1 // pred_fallthru
      _
    // Predicated region
    $region42: #{_rnn_forward.1} parent=1 // pred_check
      _
    $region43: #{_rnn_forward.1} parent=1 // pred_check_branch
      %59 = sbr.rel (0) target = $region45
    $region44: #{_rnn_forward.1} parent=1 // pred_region
      _
    $region45: #{_rnn_forward.1} parent=1 // pred_fallthru
      _
    // Predicated region
    $region46: #{_rnn_forward.1} parent=1 // pred_check
      _
    $region47: #{_rnn_forward.1} parent=1 // pred_check_branch
      %61 = sbr.rel (0) target = $region49
    $region48: #{_rnn_forward.1} parent=1 // pred_region
      %62 = dma.done [#allocation6], 3072
    $region49: #{_rnn_forward.1} parent=1 // pred_fallthru
      _
    // Predicated region
    $region50: #{_rnn_forward.1} parent=1 // pred_check
      _
    $region51: #{_rnn_forward.1} parent=1 // pred_check_branch
      %64 = sbr.rel (0) target = $region53
    $region52: #{_rnn_forward.1} parent=1 // pred_region
      %65 = dma.done [#allocation8], 3072
    $region53: #{_rnn_forward.1} parent=1 // pred_fallthru
      _
    %v67 = vld [vmem:[%s1] sm:$0xff]
    %v68 = vld [vmem:[%s1 + $0x8] sm:$0xf]
    %v69 = vld [vmem:[%s2] sm:$0xff]
    %v70 = vld [vmem:[%s2 + $0x8] sm:$0xf]
    %v71 = vld [vmem:[%s2 + $0xc] sm:$0xff]
    %v72 = vld [vmem:[%s2 + $0x14] sm:$0xf]
    %v73 = vld [vmem:[%s2 + $0x18] sm:$0xff]
    %v74 = vld [vmem:[%s2 + $0x20] sm:$0xf]
    %v75 = vld [vmem:[%s2 + $0x24] sm:$0xff]
    %v76 = vld [vmem:[%s2 + $0x2c] sm:$0xf]
    %v77 = vld [vmem:[%s2 + $0x30] sm:$0xff]
    %v78 = vld [vmem:[%s2 + $0x38] sm:$0xf]
    %v79 = vld [vmem:[%s2 + $0x3c] sm:$0xff]
    %v80 = vld [vmem:[%s2 + $0x44] sm:$0xf]
    %v81 = vld [vmem:[%s2 + $0x48] sm:$0xff]
    %v82 = vld [vmem:[%s2 + $0x50] sm:$0xf]
    %v83 = vld [vmem:[%s2 + $0x54] sm:$0xff]
    %v84 = vld [vmem:[%s2 + $0x5c] sm:$0xf]
    %v85 = vld [vmem:[%s2 + $0x60] sm:$0xff]
    %v86 = vld [vmem:[%s2 + $0x68] sm:$0xf]
    %v87 = vld [vmem:[%s2 + $0x6c] sm:$0xff]
    %v88 = vld [vmem:[%s2 + $0x74] sm:$0xf]
    %v89 = vld [vmem:[%s2 + $0x78] sm:$0xff]
    %v90 = vld [vmem:[%s2 + $0x80] sm:$0xf]
    %v91 = vld [vmem:[%s2 + $0x84] sm:$0xff]
    %v92 = vld [vmem:[%s2 + $0x8c] sm:$0xf]
    %v93 = vld [vmem:[%s2 + $0x90] sm:$0xff]
    %v94 = vld [vmem:[%s2 + $0x98] sm:$0xf]
    %v95 = vld [vmem:[%s2 + $0x9c] sm:$0xff]
    %v96 = vld [vmem:[%s2 + $0xa4] sm:$0xf]
    %v97 = vld [vmem:[%s2 + $0xa8] sm:$0xff]
    %v98 = vld [vmem:[%s2 + $0xb0] sm:$0xf]
    %v99 = vld [vmem:[%s2 + $0xb4] sm:$0xff]
    %v100 = vld [vmem:[%s2 + $0xbc] sm:$0xf]
    %v101 = vld [vmem:[%s3] sm:$0x7]
    %v102 = vld [vmem:[%s4] sm:$0x1]
    %v104 = vlaneseq
    %v105 = vshrl.u32 %v104, 7
    %v106 = vsub.s32 0, %v105
    %v107 = vrot.slane %v102, %v106
    %109 = vst [vmem:[#allocation4] sm:$0xff] 0.0
    %v110 = vld [vmem:[%s0] sm:$0xff]
    %v111 = vld [vmem:[%s0 + $0x8] sm:$0xff]
    %v112 = vld [vmem:[%s0 + $0x10] sm:$0xff]
    %v113 = vld [vmem:[%s0 + $0x18] sm:$0xff]
    %v114 = vld [vmem:[%s0 + $0x20] sm:$0xff]
    %v115 = vld [vmem:[%s0 + $0x28] sm:$0xff]
    %v116 = vld [vmem:[%s0 + $0x30] sm:$0xff]
    %v117 = vld [vmem:[%s0 + $0x38] sm:$0xff]
    %v118 = vpack.c.bf16 %v111, %v110
    %v119 = vpack.c.bf16 %v113, %v112
    %v120 = vpack.c.bf16 %v115, %v114
    %v121 = vpack.c.bf16 %v117, %v116
    %v123 = vlaneseq
    %v124 = vshrl.u32 %v123, 7
    %v125 = vsub.s32 0, %v124
    %v126 = vrot.slane %v101, %v125
    %v127 = vlaneseq
    %v128 = vshrl.u32 %v127, 7
    %v129 = vsub.s32 1, %v128
    %v130 = vrot.slane %v101, %v129
    %v131 = vlaneseq
    %v132 = vshrl.u32 %v131, 7
    %v133 = vsub.s32 2, %v132
    %v134 = vrot.slane %v101, %v133
    %v140 = vunpack.c.l.b16 %v67
    %v141 = vunpack.c.h.b16 %v67
    %v142 = vunpack.c.l.b16 %v68
    %v143 = vpack.c.b16 %v140, %v140
    %v144 = vpack.c.b16 %v141, %v141
    %v145 = vpack.c.b16 %v142, %v142
    %vm146 = vcmask 64512
    %v148 = vsel %vm146, %v118, 0
    %v151 = vsel %vm146, %v119, 0
    %v154 = vsel %vm146, %v120, 0
    %v157 = vsel %vm146, %v121, 0
    %vm159 = vcmask 1043456
    %v161 = vsel %vm159, %v143, 0
    %v164 = vsel %vm159, %v144, 0
    %v167 = vsel %vm159, %v145, 0
    %169 = vmatprep.subr.bf16.mxu0 0
    %170 = vmatpush1.bf16.msra.mxu0 0
    %171 = vmatprep.subr.bf16.mxu0 0
    %172 = vmatpush1.bf16.msra.mxu0 0
    %173 = vmatprep.subr.bf16.mxu0 0
    %174 = vmatpush1.bf16.msra.mxu0 0
    %175 = vmatprep.subr.bf16.mxu0 0
    %176 = vmatpush1.bf16.msra.mxu0 0
    %177 = vmatprep.subr.bf16.mxu0 0
    %178 = vmatpush1.bf16.msra.mxu0 0
    %179 = vmatprep.subr.bf16.mxu0 0
    %180 = vmatpush1.bf16.msra.mxu0 0
    %181 = vmatprep.subr.bf16.mxu0 0
    %182 = vmatpush1.bf16.msra.mxu0 0
    %183 = vmatprep.subr.bf16.mxu0 %v164
    %184 = vmatpush1.bf16.msra.mxu0 %v161
    %185 = vmatprep.subr.bf16.mxu0 0
    %186 = vmatpush2.bf16.msra.mxu0 0
    %187 = vmatprep.subr.bf16.mxu0 0
    %188 = vmatpush2.bf16.msra.mxu0 0
    %189 = vmatprep.subr.bf16.mxu0 0
    %190 = vmatpush2.bf16.msra.mxu0 0
    %191 = vmatprep.subr.bf16.mxu0 0
    %192 = vmatpush2.bf16.msra.mxu0 0
    %193 = vmatprep.subr.bf16.mxu0 0
    %194 = vmatpush2.bf16.msra.mxu0 0
    %195 = vmatprep.subr.bf16.mxu0 0
    %196 = vmatpush2.bf16.msra.mxu0 0
    %197 = vmatprep.subr.bf16.mxu0 0
    %198 = vmatpush2.bf16.msra.mxu0 0
    %199 = vmatprep.subr.bf16.mxu0 0
    %200 = vmatpush2.bf16.msra.mxu0 0
    %201 = vmatprep.mubr.bf16.mxu0 0
    %202 = vmatmul.mubr.bf16.gmra.mxu0 %v148
    %v203 = vpop.f32.mrf.mxu0
    %v204 = vadd.f32 %v126, %v203
    %v205 = vpop.f32.mrf.mxu0
    %v206 = vadd.f32 %v130, %v205
    %v207 = vpop.f32.mrf.mxu0
    %v208 = vadd.f32 %v126, %v207
    %v209 = vpop.f32.mrf.mxu0
    %v210 = vadd.f32 %v130, %v209
    %211 = vmatprep.mubr.bf16.mxu0 0
    %212 = vmatmul.mubr.bf16.gmra.mxu0 %v151
    %v213 = vpop.f32.mrf.mxu0
    %v214 = vadd.f32 %v126, %v213
    %v215 = vpop.f32.mrf.mxu0
    %v216 = vadd.f32 %v130, %v215
    %v217 = vpop.f32.mrf.mxu0
    %v218 = vadd.f32 %v126, %v217
    %v219 = vpop.f32.mrf.mxu0
    %v220 = vadd.f32 %v130, %v219
    %221 = vmatprep.mubr.bf16.mxu0 0
    %222 = vmatmul.mubr.bf16.gmra.mxu0 %v154
    %v223 = vpop.f32.mrf.mxu0
    %v224 = vadd.f32 %v126, %v223
    %v225 = vpop.f32.mrf.mxu0
    %v226 = vadd.f32 %v130, %v225
    %v227 = vpop.f32.mrf.mxu0
    %v228 = vadd.f32 %v126, %v227
    %v229 = vpop.f32.mrf.mxu0
    %v230 = vadd.f32 %v130, %v229
    %231 = vmatprep.mubr.bf16.mxu0 0
    %232 = vmatmul.mubr.bf16.gmra.mxu0 %v157
    %v233 = vpop.f32.mrf.mxu0
    %v234 = vadd.f32 %v126, %v233
    %v235 = vpop.f32.mrf.mxu0
    %v236 = vadd.f32 %v130, %v235
    %v237 = vpop.f32.mrf.mxu0
    %v238 = vadd.f32 %v126, %v237
    %v239 = vpop.f32.mrf.mxu0
    %v240 = vadd.f32 %v130, %v239
    %241 = vdwg.mxu0
    %242 = vmatprep.subr.bf16.mxu0 0
    %243 = vmatpush1.bf16.msra.mxu0 0
    %244 = vmatprep.subr.bf16.mxu0 0
    %245 = vmatpush1.bf16.msra.mxu0 0
    %246 = vmatprep.subr.bf16.mxu0 0
    %247 = vmatpush1.bf16.msra.mxu0 0
    %248 = vmatprep.subr.bf16.mxu0 0
    %249 = vmatpush1.bf16.msra.mxu0 0
    %250 = vmatprep.subr.bf16.mxu0 0
    %251 = vmatpush1.bf16.msra.mxu0 0
    %252 = vmatprep.subr.bf16.mxu0 0
    %253 = vmatpush1.bf16.msra.mxu0 0
    %254 = vmatprep.subr.bf16.mxu0 0
    %255 = vmatpush1.bf16.msra.mxu0 0
    %256 = vmatprep.subr.bf16.mxu0 0
    %257 = vmatpush1.bf16.msra.mxu0 %v167
    %258 = vmatprep.subr.bf16.mxu0 0
    %259 = vmatpush2.bf16.msra.mxu0 0
    %260 = vmatprep.subr.bf16.mxu0 0
    %261 = vmatpush2.bf16.msra.mxu0 0
    %262 = vmatprep.subr.bf16.mxu0 0
    %263 = vmatpush2.bf16.msra.mxu0 0
    %264 = vmatprep.subr.bf16.mxu0 0
    %265 = vmatpush2.bf16.msra.mxu0 0
    %266 = vmatprep.subr.bf16.mxu0 0
    %267 = vmatpush2.bf16.msra.mxu0 0
    %268 = vmatprep.subr.bf16.mxu0 0
    %269 = vmatpush2.bf16.msra.mxu0 0
    %270 = vmatprep.subr.bf16.mxu0 0
    %271 = vmatpush2.bf16.msra.mxu0 0
    %272 = vmatprep.subr.bf16.mxu0 0
    %273 = vmatpush2.bf16.msra.mxu0 0
    %274 = vmatprep.mubr.bf16.mxu0 0
    %275 = vmatmul.mubr.bf16.gmra.mxu0 %v148
    %v276 = vpop.f32.mrf.mxu0
    %v277 = vadd.f32 %v134, %v276
    %v278 = vpop.f32.mrf.mxu0
    %v279 = vpop.f32.mrf.mxu0
    %v280 = vadd.f32 %v134, %v279
    %v281 = vpop.f32.mrf.mxu0
    %282 = vmatprep.mubr.bf16.mxu0 0
    %283 = vmatmul.mubr.bf16.gmra.mxu0 %v151
    %v284 = vpop.f32.mrf.mxu0
    %v285 = vadd.f32 %v134, %v284
    %v286 = vpop.f32.mrf.mxu0
    %v287 = vpop.f32.mrf.mxu0
    %v288 = vadd.f32 %v134, %v287
    %v289 = vpop.f32.mrf.mxu0
    %290 = vmatprep.mubr.bf16.mxu0 0
    %291 = vmatmul.mubr.bf16.gmra.mxu0 %v154
    %v292 = vpop.f32.mrf.mxu0
    %v293 = vadd.f32 %v134, %v292
    %v294 = vpop.f32.mrf.mxu0
    %v295 = vpop.f32.mrf.mxu0
    %v296 = vadd.f32 %v134, %v295
    %v297 = vpop.f32.mrf.mxu0
    %298 = vmatprep.mubr.bf16.mxu0 0
    %299 = vmatmul.mubr.bf16.gmra.mxu0 %v157
    %v300 = vpop.f32.mrf.mxu0
    %v301 = vadd.f32 %v134, %v300
    %v302 = vpop.f32.mrf.mxu0
    %v303 = vpop.f32.mrf.mxu0
    %v304 = vadd.f32 %v134, %v303
    %v305 = vpop.f32.mrf.mxu0
    %306 = vdwg.mxu0
    %307 = vst [vmem:[#allocation3] sm:$0xff] %v204
    %308 = vst [vmem:[#allocation3 + $0x8] sm:$0xff] %v206
    %309 = vst [vmem:[#allocation3 + $0x10] sm:$0xff] %v277
    %310 = vst [vmem:[#allocation3 + $0x18] sm:$0xff] %v208
    %311 = vst [vmem:[#allocation3 + $0x20] sm:$0xff] %v210
    %312 = vst [vmem:[#allocation3 + $0x28] sm:$0xff] %v280
    %313 = vst [vmem:[#allocation3 + $0x30] sm:$0xff] %v214
    %314 = vst [vmem:[#allocation3 + $0x38] sm:$0xff] %v216
    %315 = vst [vmem:[#allocation3 + $0x40] sm:$0xff] %v285
    %316 = vst [vmem:[#allocation3 + $0x48] sm:$0xff] %v218
    %317 = vst [vmem:[#allocation3 + $0x50] sm:$0xff] %v220
    %318 = vst [vmem:[#allocation3 + $0x58] sm:$0xff] %v288
    %319 = vst [vmem:[#allocation3 + $0x60] sm:$0xff] %v224
    %320 = vst [vmem:[#allocation3 + $0x68] sm:$0xff] %v226
    %321 = vst [vmem:[#allocation3 + $0x70] sm:$0xff] %v293
    %322 = vst [vmem:[#allocation3 + $0x78] sm:$0xff] %v228
    %323 = vst [vmem:[#allocation3 + $0x80] sm:$0xff] %v230
    %324 = vst [vmem:[#allocation3 + $0x88] sm:$0xff] %v296
    %325 = vst [vmem:[#allocation3 + $0x90] sm:$0xff] %v234
    %326 = vst [vmem:[#allocation3 + $0x98] sm:$0xff] %v236
    %327 = vst [vmem:[#allocation3 + $0xa0] sm:$0xff] %v301
    %328 = vst [vmem:[#allocation3 + $0xa8] sm:$0xff] %v238
    %329 = vst [vmem:[#allocation3 + $0xb0] sm:$0xff] %v240
    %330 = vst [vmem:[#allocation3 + $0xb8] sm:$0xff] %v304
    %v331 = vld [vmem:[#allocation4] sm:$0xff]
    %v332 = vpack.c.bf16 %v331, %v331
    %v365 = vunpack.c.l.b16 %v69
    %v366 = vunpack.c.h.b16 %v69
    %v367 = vunpack.c.l.b16 %v70
    %v368 = vunpack.c.l.b16 %v71
    %v369 = vunpack.c.h.b16 %v71
    %v370 = vunpack.c.l.b16 %v72
    %v371 = vunpack.c.l.b16 %v73
    %v372 = vunpack.c.h.b16 %v73
    %v373 = vunpack.c.l.b16 %v74
    %v374 = vunpack.c.l.b16 %v75
    %v375 = vunpack.c.h.b16 %v75
    %v376 = vunpack.c.l.b16 %v76
    %v377 = vunpack.c.l.b16 %v77
    %v378 = vunpack.c.h.b16 %v77
    %v379 = vunpack.c.l.b16 %v78
    %v380 = vunpack.c.l.b16 %v79
    %v381 = vunpack.c.h.b16 %v79
    %v382 = vunpack.c.l.b16 %v80
    %v383 = vunpack.c.l.b16 %v81
    %v384 = vunpack.c.h.b16 %v81
    %v385 = vunpack.c.l.b16 %v82
    %v386 = vunpack.c.l.b16 %v83
    %v387 = vunpack.c.h.b16 %v83
    %v388 = vunpack.c.l.b16 %v84
    %v389 = vunpack.c.l.b16 %v85
    %v390 = vunpack.c.h.b16 %v85
    %v391 = vunpack.c.l.b16 %v86
    %v392 = vunpack.c.l.b16 %v87
    %v393 = vunpack.c.h.b16 %v87
    %v394 = vunpack.c.l.b16 %v88
    %v395 = vunpack.c.l.b16 %v89
    %v396 = vunpack.c.h.b16 %v89
    %v397 = vunpack.c.l.b16 %v90
    %v398 = vunpack.c.l.b16 %v91
    %v399 = vunpack.c.h.b16 %v91
    %v400 = vunpack.c.l.b16 %v92
    %v401 = vunpack.c.l.b16 %v93
    %v402 = vunpack.c.h.b16 %v93
    %v403 = vunpack.c.l.b16 %v94
    %v404 = vunpack.c.l.b16 %v95
    %v405 = vunpack.c.h.b16 %v95
    %v406 = vunpack.c.l.b16 %v96
    %v407 = vunpack.c.l.b16 %v97
    %v408 = vunpack.c.h.b16 %v97
    %v409 = vunpack.c.l.b16 %v98
    %v410 = vunpack.c.l.b16 %v99
    %v411 = vunpack.c.h.b16 %v99
    %v412 = vunpack.c.l.b16 %v100
    %v413 = vpack.c.b16 %v368, %v365
    %v414 = vpack.c.b16 %v369, %v366
    %v415 = vpack.c.b16 %v370, %v367
    %v416 = vpack.c.b16 %v374, %v371
    %v417 = vpack.c.b16 %v375, %v372
    %v418 = vpack.c.b16 %v376, %v373
    %v419 = vpack.c.b16 %v380, %v377
    %v420 = vpack.c.b16 %v381, %v378
    %v421 = vpack.c.b16 %v382, %v379
    %v422 = vpack.c.b16 %v386, %v383
    %v423 = vpack.c.b16 %v387, %v384
    %v424 = vpack.c.b16 %v388, %v385
    %v425 = vpack.c.b16 %v392, %v389
    %v426 = vpack.c.b16 %v393, %v390
    %v427 = vpack.c.b16 %v394, %v391
    %v428 = vpack.c.b16 %v398, %v395
    %v429 = vpack.c.b16 %v399, %v396
    %v430 = vpack.c.b16 %v400, %v397
    %v431 = vpack.c.b16 %v404, %v401
    %v432 = vpack.c.b16 %v405, %v402
    %v433 = vpack.c.b16 %v406, %v403
    %v434 = vpack.c.b16 %v410, %v407
    %v435 = vpack.c.b16 %v411, %v408
    %v436 = vpack.c.b16 %v412, %v409
    %461 = vmatprep.subr.bf16.mxu0 %v435
    %462 = vmatpush1.bf16.msra.mxu0 %v434
    %463 = vmatprep.subr.bf16.mxu0 %v432
    %464 = vmatpush1.bf16.msra.mxu0 %v431
    %465 = vmatprep.subr.bf16.mxu0 %v429
    %466 = vmatpush1.bf16.msra.mxu0 %v428
    %467 = vmatprep.subr.bf16.mxu0 %v426
    %468 = vmatpush1.bf16.msra.mxu0 %v425
    %469 = vmatprep.subr.bf16.mxu0 %v423
    %470 = vmatpush1.bf16.msra.mxu0 %v422
    %471 = vmatprep.subr.bf16.mxu0 %v420
    %472 = vmatpush1.bf16.msra.mxu0 %v419
    %473 = vmatprep.subr.bf16.mxu0 %v417
    %474 = vmatpush1.bf16.msra.mxu0 %v416
    %475 = vmatprep.subr.bf16.mxu0 %v414
    %476 = vmatpush1.bf16.msra.mxu0 %v413
    %477 = vmatprep.subr.bf16.mxu0 0
    %478 = vmatpush2.bf16.msra.mxu0 0
    %479 = vmatprep.subr.bf16.mxu0 0
    %480 = vmatpush2.bf16.msra.mxu0 0
    %481 = vmatprep.subr.bf16.mxu0 0
    %482 = vmatpush2.bf16.msra.mxu0 0
    %483 = vmatprep.subr.bf16.mxu0 0
    %484 = vmatpush2.bf16.msra.mxu0 0
    %485 = vmatprep.subr.bf16.mxu0 0
    %486 = vmatpush2.bf16.msra.mxu0 0
    %487 = vmatprep.subr.bf16.mxu0 0
    %488 = vmatpush2.bf16.msra.mxu0 0
    %489 = vmatprep.subr.bf16.mxu0 0
    %490 = vmatpush2.bf16.msra.mxu0 0
    %491 = vmatprep.subr.bf16.mxu0 0
    %492 = vmatpush2.bf16.msra.mxu0 0
    %493 = vmatprep.mubr.bf16.mxu0 0
    %494 = vmatmul.mubr.bf16.gmra.mxu0 %v332
    %v495 = vpop.f32.mrf.mxu0
    %v496 = vadd.f32 0.0, %v495
    %v497 = vpop.f32.mrf.mxu0
    %v498 = vadd.f32 0.0, %v497
    %v499 = vpop.f32.mrf.mxu0
    %v500 = vpop.f32.mrf.mxu0
    %501 = vdwg.mxu0
    %502 = vmatprep.subr.bf16.mxu0 0
    %503 = vmatpush1.bf16.msra.mxu0 %v436
    %504 = vmatprep.subr.bf16.mxu0 0
    %505 = vmatpush1.bf16.msra.mxu0 %v433
    %506 = vmatprep.subr.bf16.mxu0 0
    %507 = vmatpush1.bf16.msra.mxu0 %v430
    %508 = vmatprep.subr.bf16.mxu0 0
    %509 = vmatpush1.bf16.msra.mxu0 %v427
    %510 = vmatprep.subr.bf16.mxu0 0
    %511 = vmatpush1.bf16.msra.mxu0 %v424
    %512 = vmatprep.subr.bf16.mxu0 0
    %513 = vmatpush1.bf16.msra.mxu0 %v421
    %514 = vmatprep.subr.bf16.mxu0 0
    %515 = vmatpush1.bf16.msra.mxu0 %v418
    %516 = vmatprep.subr.bf16.mxu0 0
    %517 = vmatpush1.bf16.msra.mxu0 %v415
    %518 = vmatprep.subr.bf16.mxu0 0
    %519 = vmatpush2.bf16.msra.mxu0 0
    %520 = vmatprep.subr.bf16.mxu0 0
    %521 = vmatpush2.bf16.msra.mxu0 0
    %522 = vmatprep.subr.bf16.mxu0 0
    %523 = vmatpush2.bf16.msra.mxu0 0
    %524 = vmatprep.subr.bf16.mxu0 0
    %525 = vmatpush2.bf16.msra.mxu0 0
    %526 = vmatprep.subr.bf16.mxu0 0
    %527 = vmatpush2.bf16.msra.mxu0 0
    %528 = vmatprep.subr.bf16.mxu0 0
    %529 = vmatpush2.bf16.msra.mxu0 0
    %530 = vmatprep.subr.bf16.mxu0 0
    %531 = vmatpush2.bf16.msra.mxu0 0
    %532 = vmatprep.subr.bf16.mxu0 0
    %533 = vmatpush2.bf16.msra.mxu0 0
    %534 = vmatprep.mubr.bf16.mxu0 0
    %535 = vmatmul.mubr.bf16.gmra.mxu0 %v332
    %v536 = vpop.f32.mrf.mxu0
    %v537 = vadd.f32 0.0, %v536
    %v538 = vpop.f32.mrf.mxu0
    %v539 = vpop.f32.mrf.mxu0
    %v540 = vpop.f32.mrf.mxu0
    %541 = vdwg.mxu0
    %s542 = smul.u32 0, 3
    %s543 = smul.addr %s542, 8
    %s544 = scalar_lea.vmem [#allocation3], %s543
    %v545 = vld [vmem:[%s544] sm:$0xff]
    %v546 = vld [vmem:[%s544 + $0x8] sm:$0xff]
    %v547 = vld [vmem:[%s544 + $0x10] sm:$0xff]
    %v548 = vadd.f32 %v545, %v496
    %v549 = vxor.u32 %v548, 2147483648
    %v550 = vmul.f32 %v549, 1.442695
    %v551 = vpow.pop %v550
    %v552 = vadd.f32 %v551, 1.0
    %v553 = vrcp.pop %v552
    %v554 = vmul.f32 1.0, %v553
    %v555 = vadd.f32 %v546, %v498
    %v556 = vxor.u32 %v555, 2147483648
    %v557 = vmul.f32 %v556, 1.442695
    %v558 = vpow.pop %v557
    %v559 = vadd.f32 %v558, 1.0
    %v560 = vrcp.pop %v559
    %v561 = vmul.f32 1.0, %v560
    %v562 = vadd.f32 %v537, %v107
    %v563 = vmul.f32 %v554, %v562
    %v564 = vadd.f32 %v547, %v563
    %v565 = vtanh.pop %v564
    %v566 = vsub.f32 1.0, %v561
    %v567 = vmul.f32 %v566, %v565
    %v568 = vmul.f32 %v561, %v331
    %v569 = vadd.f32 %v567, %v568
    %570 = vst [vmem:[#allocation4] sm:$0xff] %v569
    %571 = vst [vmem:[#allocation2] sm:$0xff] %v569
    %v572 = vld [vmem:[#allocation4] sm:$0xff]
    %v573 = vpack.c.bf16 %v572, %v572
    %574 = vmatprep.subr.bf16.mxu0 %v435
    %575 = vmatpush1.bf16.msra.mxu0 %v434
    %576 = vmatprep.subr.bf16.mxu0 %v432
    %577 = vmatpush1.bf16.msra.mxu0 %v431
    %578 = vmatprep.subr.bf16.mxu0 %v429
    %579 = vmatpush1.bf16.msra.mxu0 %v428
    %580 = vmatprep.subr.bf16.mxu0 %v426
    %581 = vmatpush1.bf16.msra.mxu0 %v425
    %582 = vmatprep.subr.bf16.mxu0 %v423
    %583 = vmatpush1.bf16.msra.mxu0 %v422
    %584 = vmatprep.subr.bf16.mxu0 %v420
    %585 = vmatpush1.bf16.msra.mxu0 %v419
    %586 = vmatprep.subr.bf16.mxu0 %v417
    %587 = vmatpush1.bf16.msra.mxu0 %v416
    %588 = vmatprep.subr.bf16.mxu0 %v414
    %589 = vmatpush1.bf16.msra.mxu0 %v413
    %590 = vmatprep.subr.bf16.mxu0 0
    %591 = vmatpush2.bf16.msra.mxu0 0
    %592 = vmatprep.subr.bf16.mxu0 0
    %593 = vmatpush2.bf16.msra.mxu0 0
    %594 = vmatprep.subr.bf16.mxu0 0
    %595 = vmatpush2.bf16.msra.mxu0 0
    %596 = vmatprep.subr.bf16.mxu0 0
    %597 = vmatpush2.bf16.msra.mxu0 0
    %598 = vmatprep.subr.bf16.mxu0 0
    %599 = vmatpush2.bf16.msra.mxu0 0
    %600 = vmatprep.subr.bf16.mxu0 0
    %601 = vmatpush2.bf16.msra.mxu0 0
    %602 = vmatprep.subr.bf16.mxu0 0
    %603 = vmatpush2.bf16.msra.mxu0 0
    %604 = vmatprep.subr.bf16.mxu0 0
    %605 = vmatpush2.bf16.msra.mxu0 0
    %606 = vmatprep.mubr.bf16.mxu0 0
    %607 = vmatmul.mubr.bf16.gmra.mxu0 %v573
    %v608 = vpop.f32.mrf.mxu0
    %v609 = vadd.f32 0.0, %v608
    %v610 = vpop.f32.mrf.mxu0
    %v611 = vadd.f32 0.0, %v610
    %v612 = vpop.f32.mrf.mxu0
    %v613 = vpop.f32.mrf.mxu0
    %614 = vdwg.mxu0
    %615 = vmatprep.subr.bf16.mxu0 0
    %616 = vmatpush1.bf16.msra.mxu0 %v436
    %617 = vmatprep.subr.bf16.mxu0 0
    %618 = vmatpush1.bf16.msra.mxu0 %v433
    %619 = vmatprep.subr.bf16.mxu0 0
    %620 = vmatpush1.bf16.msra.mxu0 %v430
    %621 = vmatprep.subr.bf16.mxu0 0
    %622 = vmatpush1.bf16.msra.mxu0 %v427
    %623 = vmatprep.subr.bf16.mxu0 0
    %624 = vmatpush1.bf16.msra.mxu0 %v424
    %625 = vmatprep.subr.bf16.mxu0 0
    %626 = vmatpush1.bf16.msra.mxu0 %v421
    %627 = vmatprep.subr.bf16.mxu0 0
    %628 = vmatpush1.bf16.msra.mxu0 %v418
    %629 = vmatprep.subr.bf16.mxu0 0
    %630 = vmatpush1.bf16.msra.mxu0 %v415
    %631 = vmatprep.subr.bf16.mxu0 0
    %632 = vmatpush2.bf16.msra.mxu0 0
    %633 = vmatprep.subr.bf16.mxu0 0
    %634 = vmatpush2.bf16.msra.mxu0 0
    %635 = vmatprep.subr.bf16.mxu0 0
    %636 = vmatpush2.bf16.msra.mxu0 0
    %637 = vmatprep.subr.bf16.mxu0 0
    %638 = vmatpush2.bf16.msra.mxu0 0
    %639 = vmatprep.subr.bf16.mxu0 0
    %640 = vmatpush2.bf16.msra.mxu0 0
    %641 = vmatprep.subr.bf16.mxu0 0
    %642 = vmatpush2.bf16.msra.mxu0 0
    %643 = vmatprep.subr.bf16.mxu0 0
    %644 = vmatpush2.bf16.msra.mxu0 0
    %645 = vmatprep.subr.bf16.mxu0 0
    %646 = vmatpush2.bf16.msra.mxu0 0
    %647 = vmatprep.mubr.bf16.mxu0 0
    %648 = vmatmul.mubr.bf16.gmra.mxu0 %v573
    %v649 = vpop.f32.mrf.mxu0
    %v650 = vadd.f32 0.0, %v649
    %v651 = vpop.f32.mrf.mxu0
    %v652 = vpop.f32.mrf.mxu0
    %v653 = vpop.f32.mrf.mxu0
    %654 = vdwg.mxu0
    %s655 = smul.u32 1, 3
    %s656 = smul.addr %s655, 8
    %s657 = scalar_lea.vmem [#allocation3], %s656
    %v658 = vld [vmem:[%s657] sm:$0xff]
    %v659 = vld [vmem:[%s657 + $0x8] sm:$0xff]
    %v660 = vld [vmem:[%s657 + $0x10] sm:$0xff]
    %v661 = vadd.f32 %v658, %v609
    %v662 = vxor.u32 %v661, 2147483648
    %v663 = vmul.f32 %v662, 1.442695
    %v664 = vpow.pop %v663
    %v665 = vadd.f32 %v664, 1.0
    %v666 = vrcp.pop %v665
    %v667 = vmul.f32 1.0, %v666
    %v668 = vadd.f32 %v659, %v611
    %v669 = vxor.u32 %v668, 2147483648
    %v670 = vmul.f32 %v669, 1.442695
    %v671 = vpow.pop %v670
    %v672 = vadd.f32 %v671, 1.0
    %v673 = vrcp.pop %v672
    %v674 = vmul.f32 1.0, %v673
    %v675 = vadd.f32 %v650, %v107
    %v676 = vmul.f32 %v667, %v675
    %v677 = vadd.f32 %v660, %v676
    %v678 = vtanh.pop %v677
    %v679 = vsub.f32 1.0, %v674
    %v680 = vmul.f32 %v679, %v678
    %v681 = vmul.f32 %v674, %v572
    %v682 = vadd.f32 %v680, %v681
    %683 = vst [vmem:[#allocation4] sm:$0xff] %v682
    %s684 = scalar_lea.vmem [#allocation2], 8
    %685 = vst [vmem:[%s684] sm:$0xff] %v682
    %v686 = vld [vmem:[#allocation4] sm:$0xff]
    %v687 = vpack.c.bf16 %v686, %v686
    %688 = vmatprep.subr.bf16.mxu0 %v435
    %689 = vmatpush1.bf16.msra.mxu0 %v434
    %690 = vmatprep.subr.bf16.mxu0 %v432
    %691 = vmatpush1.bf16.msra.mxu0 %v431
    %692 = vmatprep.subr.bf16.mxu0 %v429
    %693 = vmatpush1.bf16.msra.mxu0 %v428
    %694 = vmatprep.subr.bf16.mxu0 %v426
    %695 = vmatpush1.bf16.msra.mxu0 %v425
    %696 = vmatprep.subr.bf16.mxu0 %v423
    %697 = vmatpush1.bf16.msra.mxu0 %v422
    %698 = vmatprep.subr.bf16.mxu0 %v420
    %699 = vmatpush1.bf16.msra.mxu0 %v419
    %700 = vmatprep.subr.bf16.mxu0 %v417
    %701 = vmatpush1.bf16.msra.mxu0 %v416
    %702 = vmatprep.subr.bf16.mxu0 %v414
    %703 = vmatpush1.bf16.msra.mxu0 %v413
    %704 = vmatprep.subr.bf16.mxu0 0
    %705 = vmatpush2.bf16.msra.mxu0 0
    %706 = vmatprep.subr.bf16.mxu0 0
    %707 = vmatpush2.bf16.msra.mxu0 0
    %708 = vmatprep.subr.bf16.mxu0 0
    %709 = vmatpush2.bf16.msra.mxu0 0
    %710 = vmatprep.subr.bf16.mxu0 0
    %711 = vmatpush2.bf16.msra.mxu0 0
    %712 = vmatprep.subr.bf16.mxu0 0
    %713 = vmatpush2.bf16.msra.mxu0 0
    %714 = vmatprep.subr.bf16.mxu0 0
    %715 = vmatpush2.bf16.msra.mxu0 0
    %716 = vmatprep.subr.bf16.mxu0 0
    %717 = vmatpush2.bf16.msra.mxu0 0
    %718 = vmatprep.subr.bf16.mxu0 0
    %719 = vmatpush2.bf16.msra.mxu0 0
    %720 = vmatprep.mubr.bf16.mxu0 0
    %721 = vmatmul.mubr.bf16.gmra.mxu0 %v687
    %v722 = vpop.f32.mrf.mxu0
    %v723 = vadd.f32 0.0, %v722
    %v724 = vpop.f32.mrf.mxu0
    %v725 = vadd.f32 0.0, %v724
    %v726 = vpop.f32.mrf.mxu0
    %v727 = vpop.f32.mrf.mxu0
    %728 = vdwg.mxu0
    %729 = vmatprep.subr.bf16.mxu0 0
    %730 = vmatpush1.bf16.msra.mxu0 %v436
    %731 = vmatprep.subr.bf16.mxu0 0
    %732 = vmatpush1.bf16.msra.mxu0 %v433
    %733 = vmatprep.subr.bf16.mxu0 0
    %734 = vmatpush1.bf16.msra.mxu0 %v430
    %735 = vmatprep.subr.bf16.mxu0 0
    %736 = vmatpush1.bf16.msra.mxu0 %v427
    %737 = vmatprep.subr.bf16.mxu0 0
    %738 = vmatpush1.bf16.msra.mxu0 %v424
    %739 = vmatprep.subr.bf16.mxu0 0
    %740 = vmatpush1.bf16.msra.mxu0 %v421
    %741 = vmatprep.subr.bf16.mxu0 0
    %742 = vmatpush1.bf16.msra.mxu0 %v418
    %743 = vmatprep.subr.bf16.mxu0 0
    %744 = vmatpush1.bf16.msra.mxu0 %v415
    %745 = vmatprep.subr.bf16.mxu0 0
    %746 = vmatpush2.bf16.msra.mxu0 0
    %747 = vmatprep.subr.bf16.mxu0 0
    %748 = vmatpush2.bf16.msra.mxu0 0
    %749 = vmatprep.subr.bf16.mxu0 0
    %750 = vmatpush2.bf16.msra.mxu0 0
    %751 = vmatprep.subr.bf16.mxu0 0
    %752 = vmatpush2.bf16.msra.mxu0 0
    %753 = vmatprep.subr.bf16.mxu0 0
    %754 = vmatpush2.bf16.msra.mxu0 0
    %755 = vmatprep.subr.bf16.mxu0 0
    %756 = vmatpush2.bf16.msra.mxu0 0
    %757 = vmatprep.subr.bf16.mxu0 0
    %758 = vmatpush2.bf16.msra.mxu0 0
    %759 = vmatprep.subr.bf16.mxu0 0
    %760 = vmatpush2.bf16.msra.mxu0 0
    %761 = vmatprep.mubr.bf16.mxu0 0
    %762 = vmatmul.mubr.bf16.gmra.mxu0 %v687
    %v763 = vpop.f32.mrf.mxu0
    %v764 = vadd.f32 0.0, %v763
    %v765 = vpop.f32.mrf.mxu0
    %v766 = vpop.f32.mrf.mxu0
    %v767 = vpop.f32.mrf.mxu0
    %768 = vdwg.mxu0
    %s769 = smul.u32 2, 3
    %s770 = smul.addr %s769, 8
    %s771 = scalar_lea.vmem [#allocation3], %s770
    %v772 = vld [vmem:[%s771] sm:$0xff]
    %v773 = vld [vmem:[%s771 + $0x8] sm:$0xff]
    %v774 = vld [vmem:[%s771 + $0x10] sm:$0xff]
    %v775 = vadd.f32 %v772, %v723
    %v776 = vxor.u32 %v775, 2147483648
    %v777 = vmul.f32 %v776, 1.442695
    %v778 = vpow.pop %v777
    %v779 = vadd.f32 %v778, 1.0
    %v780 = vrcp.pop %v779
    %v781 = vmul.f32 1.0, %v780
    %v782 = vadd.f32 %v773, %v725
    %v783 = vxor.u32 %v782, 2147483648
    %v784 = vmul.f32 %v783, 1.442695
    %v785 = vpow.pop %v784
    %v786 = vadd.f32 %v785, 1.0
    %v787 = vrcp.pop %v786
    %v788 = vmul.f32 1.0, %v787
    %v789 = vadd.f32 %v764, %v107
    %v790 = vmul.f32 %v781, %v789
    %v791 = vadd.f32 %v774, %v790
    %v792 = vtanh.pop %v791
    %v793 = vsub.f32 1.0, %v788
    %v794 = vmul.f32 %v793, %v792
    %v795 = vmul.f32 %v788, %v686
    %v796 = vadd.f32 %v794, %v795
    %797 = vst [vmem:[#allocation4] sm:$0xff] %v796
    %s798 = scalar_lea.vmem [#allocation2], 16
    %799 = vst [vmem:[%s798] sm:$0xff] %v796
    %v800 = vld [vmem:[#allocation4] sm:$0xff]
    %v801 = vpack.c.bf16 %v800, %v800
    %802 = vmatprep.subr.bf16.mxu0 %v435
    %803 = vmatpush1.bf16.msra.mxu0 %v434
    %804 = vmatprep.subr.bf16.mxu0 %v432
    %805 = vmatpush1.bf16.msra.mxu0 %v431
    %806 = vmatprep.subr.bf16.mxu0 %v429
    %807 = vmatpush1.bf16.msra.mxu0 %v428
    %808 = vmatprep.subr.bf16.mxu0 %v426
    %809 = vmatpush1.bf16.msra.mxu0 %v425
    %810 = vmatprep.subr.bf16.mxu0 %v423
    %811 = vmatpush1.bf16.msra.mxu0 %v422
    %812 = vmatprep.subr.bf16.mxu0 %v420
    %813 = vmatpush1.bf16.msra.mxu0 %v419
    %814 = vmatprep.subr.bf16.mxu0 %v417
    %815 = vmatpush1.bf16.msra.mxu0 %v416
    %816 = vmatprep.subr.bf16.mxu0 %v414
    %817 = vmatpush1.bf16.msra.mxu0 %v413
    %818 = vmatprep.subr.bf16.mxu0 0
    %819 = vmatpush2.bf16.msra.mxu0 0
    %820 = vmatprep.subr.bf16.mxu0 0
    %821 = vmatpush2.bf16.msra.mxu0 0
    %822 = vmatprep.subr.bf16.mxu0 0
    %823 = vmatpush2.bf16.msra.mxu0 0
    %824 = vmatprep.subr.bf16.mxu0 0
    %825 = vmatpush2.bf16.msra.mxu0 0
    %826 = vmatprep.subr.bf16.mxu0 0
    %827 = vmatpush2.bf16.msra.mxu0 0
    %828 = vmatprep.subr.bf16.mxu0 0
    %829 = vmatpush2.bf16.msra.mxu0 0
    %830 = vmatprep.subr.bf16.mxu0 0
    %831 = vmatpush2.bf16.msra.mxu0 0
    %832 = vmatprep.subr.bf16.mxu0 0
    %833 = vmatpush2.bf16.msra.mxu0 0
    %834 = vmatprep.mubr.bf16.mxu0 0
    %835 = vmatmul.mubr.bf16.gmra.mxu0 %v801
    %v836 = vpop.f32.mrf.mxu0
    %v837 = vadd.f32 0.0, %v836
    %v838 = vpop.f32.mrf.mxu0
    %v839 = vadd.f32 0.0, %v838
    %v840 = vpop.f32.mrf.mxu0
    %v841 = vpop.f32.mrf.mxu0
    %842 = vdwg.mxu0
    %843 = vmatprep.subr.bf16.mxu0 0
    %844 = vmatpush1.bf16.msra.mxu0 %v436
    %845 = vmatprep.subr.bf16.mxu0 0
    %846 = vmatpush1.bf16.msra.mxu0 %v433
    %847 = vmatprep.subr.bf16.mxu0 0
    %848 = vmatpush1.bf16.msra.mxu0 %v430
    %849 = vmatprep.subr.bf16.mxu0 0
    %850 = vmatpush1.bf16.msra.mxu0 %v427
    %851 = vmatprep.subr.bf16.mxu0 0
    %852 = vmatpush1.bf16.msra.mxu0 %v424
    %853 = vmatprep.subr.bf16.mxu0 0
    %854 = vmatpush1.bf16.msra.mxu0 %v421
    %855 = vmatprep.subr.bf16.mxu0 0
    %856 = vmatpush1.bf16.msra.mxu0 %v418
    %857 = vmatprep.subr.bf16.mxu0 0
    %858 = vmatpush1.bf16.msra.mxu0 %v415
    %859 = vmatprep.subr.bf16.mxu0 0
    %860 = vmatpush2.bf16.msra.mxu0 0
    %861 = vmatprep.subr.bf16.mxu0 0
    %862 = vmatpush2.bf16.msra.mxu0 0
    %863 = vmatprep.subr.bf16.mxu0 0
    %864 = vmatpush2.bf16.msra.mxu0 0
    %865 = vmatprep.subr.bf16.mxu0 0
    %866 = vmatpush2.bf16.msra.mxu0 0
    %867 = vmatprep.subr.bf16.mxu0 0
    %868 = vmatpush2.bf16.msra.mxu0 0
    %869 = vmatprep.subr.bf16.mxu0 0
    %870 = vmatpush2.bf16.msra.mxu0 0
    %871 = vmatprep.subr.bf16.mxu0 0
    %872 = vmatpush2.bf16.msra.mxu0 0
    %873 = vmatprep.subr.bf16.mxu0 0
    %874 = vmatpush2.bf16.msra.mxu0 0
    %875 = vmatprep.mubr.bf16.mxu0 0
    %876 = vmatmul.mubr.bf16.gmra.mxu0 %v801
    %v877 = vpop.f32.mrf.mxu0
    %v878 = vadd.f32 0.0, %v877
    %v879 = vpop.f32.mrf.mxu0
    %v880 = vpop.f32.mrf.mxu0
    %v881 = vpop.f32.mrf.mxu0
    %882 = vdwg.mxu0
    %s883 = smul.u32 3, 3
    %s884 = smul.addr %s883, 8
    %s885 = scalar_lea.vmem [#allocation3], %s884
    %v886 = vld [vmem:[%s885] sm:$0xff]
    %v887 = vld [vmem:[%s885 + $0x8] sm:$0xff]
    %v888 = vld [vmem:[%s885 + $0x10] sm:$0xff]
    %v889 = vadd.f32 %v886, %v837
    %v890 = vxor.u32 %v889, 2147483648
    %v891 = vmul.f32 %v890, 1.442695
    %v892 = vpow.pop %v891
    %v893 = vadd.f32 %v892, 1.0
    %v894 = vrcp.pop %v893
    %v895 = vmul.f32 1.0, %v894
    %v896 = vadd.f32 %v887, %v839
    %v897 = vxor.u32 %v896, 2147483648
    %v898 = vmul.f32 %v897, 1.442695
    %v899 = vpow.pop %v898
    %v900 = vadd.f32 %v899, 1.0
    %v901 = vrcp.pop %v900
    %v902 = vmul.f32 1.0, %v901
    %v903 = vadd.f32 %v878, %v107
    %v904 = vmul.f32 %v895, %v903
    %v905 = vadd.f32 %v888, %v904
    %v906 = vtanh.pop %v905
    %v907 = vsub.f32 1.0, %v902
    %v908 = vmul.f32 %v907, %v906
    %v909 = vmul.f32 %v902, %v800
    %v910 = vadd.f32 %v908, %v909
    %911 = vst [vmem:[#allocation4] sm:$0xff] %v910
    %s912 = scalar_lea.vmem [#allocation2], 24
    %913 = vst [vmem:[%s912] sm:$0xff] %v910
    %v914 = vld [vmem:[#allocation4] sm:$0xff]
    %v915 = vpack.c.bf16 %v914, %v914
    %916 = vmatprep.subr.bf16.mxu0 %v435
    %917 = vmatpush1.bf16.msra.mxu0 %v434
    %918 = vmatprep.subr.bf16.mxu0 %v432
    %919 = vmatpush1.bf16.msra.mxu0 %v431
    %920 = vmatprep.subr.bf16.mxu0 %v429
    %921 = vmatpush1.bf16.msra.mxu0 %v428
    %922 = vmatprep.subr.bf16.mxu0 %v426
    %923 = vmatpush1.bf16.msra.mxu0 %v425
    %924 = vmatprep.subr.bf16.mxu0 %v423
    %925 = vmatpush1.bf16.msra.mxu0 %v422
    %926 = vmatprep.subr.bf16.mxu0 %v420
    %927 = vmatpush1.bf16.msra.mxu0 %v419
    %928 = vmatprep.subr.bf16.mxu0 %v417
    %929 = vmatpush1.bf16.msra.mxu0 %v416
    %930 = vmatprep.subr.bf16.mxu0 %v414
    %931 = vmatpush1.bf16.msra.mxu0 %v413
    %932 = vmatprep.subr.bf16.mxu0 0
    %933 = vmatpush2.bf16.msra.mxu0 0
    %934 = vmatprep.subr.bf16.mxu0 0
    %935 = vmatpush2.bf16.msra.mxu0 0
    %936 = vmatprep.subr.bf16.mxu0 0
    %937 = vmatpush2.bf16.msra.mxu0 0
    %938 = vmatprep.subr.bf16.mxu0 0
    %939 = vmatpush2.bf16.msra.mxu0 0
    %940 = vmatprep.subr.bf16.mxu0 0
    %941 = vmatpush2.bf16.msra.mxu0 0
    %942 = vmatprep.subr.bf16.mxu0 0
    %943 = vmatpush2.bf16.msra.mxu0 0
    %944 = vmatprep.subr.bf16.mxu0 0
    %945 = vmatpush2.bf16.msra.mxu0 0
    %946 = vmatprep.subr.bf16.mxu0 0
    %947 = vmatpush2.bf16.msra.mxu0 0
    %948 = vmatprep.mubr.bf16.mxu0 0
    %949 = vmatmul.mubr.bf16.gmra.mxu0 %v915
    %v950 = vpop.f32.mrf.mxu0
    %v951 = vadd.f32 0.0, %v950
    %v952 = vpop.f32.mrf.mxu0
    %v953 = vadd.f32 0.0, %v952
    %v954 = vpop.f32.mrf.mxu0
    %v955 = vpop.f32.mrf.mxu0
    %956 = vdwg.mxu0
    %957 = vmatprep.subr.bf16.mxu0 0
    %958 = vmatpush1.bf16.msra.mxu0 %v436
    %959 = vmatprep.subr.bf16.mxu0 0
    %960 = vmatpush1.bf16.msra.mxu0 %v433
    %961 = vmatprep.subr.bf16.mxu0 0
    %962 = vmatpush1.bf16.msra.mxu0 %v430
    %963 = vmatprep.subr.bf16.mxu0 0
    %964 = vmatpush1.bf16.msra.mxu0 %v427
    %965 = vmatprep.subr.bf16.mxu0 0
    %966 = vmatpush1.bf16.msra.mxu0 %v424
    %967 = vmatprep.subr.bf16.mxu0 0
    %968 = vmatpush1.bf16.msra.mxu0 %v421
    %969 = vmatprep.subr.bf16.mxu0 0
    %970 = vmatpush1.bf16.msra.mxu0 %v418
    %971 = vmatprep.subr.bf16.mxu0 0
    %972 = vmatpush1.bf16.msra.mxu0 %v415
    %973 = vmatprep.subr.bf16.mxu0 0
    %974 = vmatpush2.bf16.msra.mxu0 0
    %975 = vmatprep.subr.bf16.mxu0 0
    %976 = vmatpush2.bf16.msra.mxu0 0
    %977 = vmatprep.subr.bf16.mxu0 0
    %978 = vmatpush2.bf16.msra.mxu0 0
    %979 = vmatprep.subr.bf16.mxu0 0
    %980 = vmatpush2.bf16.msra.mxu0 0
    %981 = vmatprep.subr.bf16.mxu0 0
    %982 = vmatpush2.bf16.msra.mxu0 0
    %983 = vmatprep.subr.bf16.mxu0 0
    %984 = vmatpush2.bf16.msra.mxu0 0
    %985 = vmatprep.subr.bf16.mxu0 0
    %986 = vmatpush2.bf16.msra.mxu0 0
    %987 = vmatprep.subr.bf16.mxu0 0
    %988 = vmatpush2.bf16.msra.mxu0 0
    %989 = vmatprep.mubr.bf16.mxu0 0
    %990 = vmatmul.mubr.bf16.gmra.mxu0 %v915
    %v991 = vpop.f32.mrf.mxu0
    %v992 = vadd.f32 0.0, %v991
    %v993 = vpop.f32.mrf.mxu0
    %v994 = vpop.f32.mrf.mxu0
    %v995 = vpop.f32.mrf.mxu0
    %996 = vdwg.mxu0
    %s997 = smul.u32 4, 3
    %s998 = smul.addr %s997, 8
    %s999 = scalar_lea.vmem [#allocation3], %s998
    %v1000 = vld [vmem:[%s999] sm:$0xff]
    %v1001 = vld [vmem:[%s999 + $0x8] sm:$0xff]
    %v1002 = vld [vmem:[%s999 + $0x10] sm:$0xff]
    %v1003 = vadd.f32 %v1000, %v951
    %v1004 = vxor.u32 %v1003, 2147483648
    %v1005 = vmul.f32 %v1004, 1.442695
    %v1006 = vpow.pop %v1005
    %v1007 = vadd.f32 %v1006, 1.0
    %v1008 = vrcp.pop %v1007
    %v1009 = vmul.f32 1.0, %v1008
    %v1010 = vadd.f32 %v1001, %v953
    %v1011 = vxor.u32 %v1010, 2147483648
    %v1012 = vmul.f32 %v1011, 1.442695
    %v1013 = vpow.pop %v1012
    %v1014 = vadd.f32 %v1013, 1.0
    %v1015 = vrcp.pop %v1014
    %v1016 = vmul.f32 1.0, %v1015
    %v1017 = vadd.f32 %v992, %v107
    %v1018 = vmul.f32 %v1009, %v1017
    %v1019 = vadd.f32 %v1002, %v1018
    %v1020 = vtanh.pop %v1019
    %v1021 = vsub.f32 1.0, %v1016
    %v1022 = vmul.f32 %v1021, %v1020
    %v1023 = vmul.f32 %v1016, %v914
    %v1024 = vadd.f32 %v1022, %v1023
    %1025 = vst [vmem:[#allocation4] sm:$0xff] %v1024
    %s1026 = scalar_lea.vmem [#allocation2], 32
    %1027 = vst [vmem:[%s1026] sm:$0xff] %v1024
    %v1028 = vld [vmem:[#allocation4] sm:$0xff]
    %v1029 = vpack.c.bf16 %v1028, %v1028
    %1030 = vmatprep.subr.bf16.mxu0 %v435
    %1031 = vmatpush1.bf16.msra.mxu0 %v434
    %1032 = vmatprep.subr.bf16.mxu0 %v432
    %1033 = vmatpush1.bf16.msra.mxu0 %v431
    %1034 = vmatprep.subr.bf16.mxu0 %v429
    %1035 = vmatpush1.bf16.msra.mxu0 %v428
    %1036 = vmatprep.subr.bf16.mxu0 %v426
    %1037 = vmatpush1.bf16.msra.mxu0 %v425
    %1038 = vmatprep.subr.bf16.mxu0 %v423
    %1039 = vmatpush1.bf16.msra.mxu0 %v422
    %1040 = vmatprep.subr.bf16.mxu0 %v420
    %1041 = vmatpush1.bf16.msra.mxu0 %v419
    %1042 = vmatprep.subr.bf16.mxu0 %v417
    %1043 = vmatpush1.bf16.msra.mxu0 %v416
    %1044 = vmatprep.subr.bf16.mxu0 %v414
    %1045 = vmatpush1.bf16.msra.mxu0 %v413
    %1046 = vmatprep.subr.bf16.mxu0 0
    %1047 = vmatpush2.bf16.msra.mxu0 0
    %1048 = vmatprep.subr.bf16.mxu0 0
    %1049 = vmatpush2.bf16.msra.mxu0 0
    %1050 = vmatprep.subr.bf16.mxu0 0
    %1051 = vmatpush2.bf16.msra.mxu0 0
    %1052 = vmatprep.subr.bf16.mxu0 0
    %1053 = vmatpush2.bf16.msra.mxu0 0
    %1054 = vmatprep.subr.bf16.mxu0 0
    %1055 = vmatpush2.bf16.msra.mxu0 0
    %1056 = vmatprep.subr.bf16.mxu0 0
    %1057 = vmatpush2.bf16.msra.mxu0 0
    %1058 = vmatprep.subr.bf16.mxu0 0
    %1059 = vmatpush2.bf16.msra.mxu0 0
    %1060 = vmatprep.subr.bf16.mxu0 0
    %1061 = vmatpush2.bf16.msra.mxu0 0
    %1062 = vmatprep.mubr.bf16.mxu0 0
    %1063 = vmatmul.mubr.bf16.gmra.mxu0 %v1029
    %v1064 = vpop.f32.mrf.mxu0
    %v1065 = vadd.f32 0.0, %v1064
    %v1066 = vpop.f32.mrf.mxu0
    %v1067 = vadd.f32 0.0, %v1066
    %v1068 = vpop.f32.mrf.mxu0
    %v1069 = vpop.f32.mrf.mxu0
    %1070 = vdwg.mxu0
    %1071 = vmatprep.subr.bf16.mxu0 0
    %1072 = vmatpush1.bf16.msra.mxu0 %v436
    %1073 = vmatprep.subr.bf16.mxu0 0
    %1074 = vmatpush1.bf16.msra.mxu0 %v433
    %1075 = vmatprep.subr.bf16.mxu0 0
    %1076 = vmatpush1.bf16.msra.mxu0 %v430
    %1077 = vmatprep.subr.bf16.mxu0 0
    %1078 = vmatpush1.bf16.msra.mxu0 %v427
    %1079 = vmatprep.subr.bf16.mxu0 0
    %1080 = vmatpush1.bf16.msra.mxu0 %v424
    %1081 = vmatprep.subr.bf16.mxu0 0
    %1082 = vmatpush1.bf16.msra.mxu0 %v421
    %1083 = vmatprep.subr.bf16.mxu0 0
    %1084 = vmatpush1.bf16.msra.mxu0 %v418
    %1085 = vmatprep.subr.bf16.mxu0 0
    %1086 = vmatpush1.bf16.msra.mxu0 %v415
    %1087 = vmatprep.subr.bf16.mxu0 0
    %1088 = vmatpush2.bf16.msra.mxu0 0
    %1089 = vmatprep.subr.bf16.mxu0 0
    %1090 = vmatpush2.bf16.msra.mxu0 0
    %1091 = vmatprep.subr.bf16.mxu0 0
    %1092 = vmatpush2.bf16.msra.mxu0 0
    %1093 = vmatprep.subr.bf16.mxu0 0
    %1094 = vmatpush2.bf16.msra.mxu0 0
    %1095 = vmatprep.subr.bf16.mxu0 0
    %1096 = vmatpush2.bf16.msra.mxu0 0
    %1097 = vmatprep.subr.bf16.mxu0 0
    %1098 = vmatpush2.bf16.msra.mxu0 0
    %1099 = vmatprep.subr.bf16.mxu0 0
    %1100 = vmatpush2.bf16.msra.mxu0 0
    %1101 = vmatprep.subr.bf16.mxu0 0
    %1102 = vmatpush2.bf16.msra.mxu0 0
    %1103 = vmatprep.mubr.bf16.mxu0 0
    %1104 = vmatmul.mubr.bf16.gmra.mxu0 %v1029
    %v1105 = vpop.f32.mrf.mxu0
    %v1106 = vadd.f32 0.0, %v1105
    %v1107 = vpop.f32.mrf.mxu0
    %v1108 = vpop.f32.mrf.mxu0
    %v1109 = vpop.f32.mrf.mxu0
    %1110 = vdwg.mxu0
    %s1111 = smul.u32 5, 3
    %s1112 = smul.addr %s1111, 8
    %s1113 = scalar_lea.vmem [#allocation3], %s1112
    %v1114 = vld [vmem:[%s1113] sm:$0xff]
    %v1115 = vld [vmem:[%s1113 + $0x8] sm:$0xff]
    %v1116 = vld [vmem:[%s1113 + $0x10] sm:$0xff]
    %v1117 = vadd.f32 %v1114, %v1065
    %v1118 = vxor.u32 %v1117, 2147483648
    %v1119 = vmul.f32 %v1118, 1.442695
    %v1120 = vpow.pop %v1119
    %v1121 = vadd.f32 %v1120, 1.0
    %v1122 = vrcp.pop %v1121
    %v1123 = vmul.f32 1.0, %v1122
    %v1124 = vadd.f32 %v1115, %v1067
    %v1125 = vxor.u32 %v1124, 2147483648
    %v1126 = vmul.f32 %v1125, 1.442695
    %v1127 = vpow.pop %v1126
    %v1128 = vadd.f32 %v1127, 1.0
    %v1129 = vrcp.pop %v1128
    %v1130 = vmul.f32 1.0, %v1129
    %v1131 = vadd.f32 %v1106, %v107
    %v1132 = vmul.f32 %v1123, %v1131
    %v1133 = vadd.f32 %v1116, %v1132
    %v1134 = vtanh.pop %v1133
    %v1135 = vsub.f32 1.0, %v1130
    %v1136 = vmul.f32 %v1135, %v1134
    %v1137 = vmul.f32 %v1130, %v1028
    %v1138 = vadd.f32 %v1136, %v1137
    %1139 = vst [vmem:[#allocation4] sm:$0xff] %v1138
    %s1140 = scalar_lea.vmem [#allocation2], 40
    %1141 = vst [vmem:[%s1140] sm:$0xff] %v1138
    %v1142 = vld [vmem:[#allocation4] sm:$0xff]
    %v1143 = vpack.c.bf16 %v1142, %v1142
    %1144 = vmatprep.subr.bf16.mxu0 %v435
    %1145 = vmatpush1.bf16.msra.mxu0 %v434
    %1146 = vmatprep.subr.bf16.mxu0 %v432
    %1147 = vmatpush1.bf16.msra.mxu0 %v431
    %1148 = vmatprep.subr.bf16.mxu0 %v429
    %1149 = vmatpush1.bf16.msra.mxu0 %v428
    %1150 = vmatprep.subr.bf16.mxu0 %v426
    %1151 = vmatpush1.bf16.msra.mxu0 %v425
    %1152 = vmatprep.subr.bf16.mxu0 %v423
    %1153 = vmatpush1.bf16.msra.mxu0 %v422
    %1154 = vmatprep.subr.bf16.mxu0 %v420
    %1155 = vmatpush1.bf16.msra.mxu0 %v419
    %1156 = vmatprep.subr.bf16.mxu0 %v417
    %1157 = vmatpush1.bf16.msra.mxu0 %v416
    %1158 = vmatprep.subr.bf16.mxu0 %v414
    %1159 = vmatpush1.bf16.msra.mxu0 %v413
    %1160 = vmatprep.subr.bf16.mxu0 0
    %1161 = vmatpush2.bf16.msra.mxu0 0
    %1162 = vmatprep.subr.bf16.mxu0 0
    %1163 = vmatpush2.bf16.msra.mxu0 0
    %1164 = vmatprep.subr.bf16.mxu0 0
    %1165 = vmatpush2.bf16.msra.mxu0 0
    %1166 = vmatprep.subr.bf16.mxu0 0
    %1167 = vmatpush2.bf16.msra.mxu0 0
    %1168 = vmatprep.subr.bf16.mxu0 0
    %1169 = vmatpush2.bf16.msra.mxu0 0
    %1170 = vmatprep.subr.bf16.mxu0 0
    %1171 = vmatpush2.bf16.msra.mxu0 0
    %1172 = vmatprep.subr.bf16.mxu0 0
    %1173 = vmatpush2.bf16.msra.mxu0 0
    %1174 = vmatprep.subr.bf16.mxu0 0
    %1175 = vmatpush2.bf16.msra.mxu0 0
    %1176 = vmatprep.mubr.bf16.mxu0 0
    %1177 = vmatmul.mubr.bf16.gmra.mxu0 %v1143
    %v1178 = vpop.f32.mrf.mxu0
    %v1179 = vadd.f32 0.0, %v1178
    %v1180 = vpop.f32.mrf.mxu0
    %v1181 = vadd.f32 0.0, %v1180
    %v1182 = vpop.f32.mrf.mxu0
    %v1183 = vpop.f32.mrf.mxu0
    %1184 = vdwg.mxu0
    %1185 = vmatprep.subr.bf16.mxu0 0
    %1186 = vmatpush1.bf16.msra.mxu0 %v436
    %1187 = vmatprep.subr.bf16.mxu0 0
    %1188 = vmatpush1.bf16.msra.mxu0 %v433
    %1189 = vmatprep.subr.bf16.mxu0 0
    %1190 = vmatpush1.bf16.msra.mxu0 %v430
    %1191 = vmatprep.subr.bf16.mxu0 0
    %1192 = vmatpush1.bf16.msra.mxu0 %v427
    %1193 = vmatprep.subr.bf16.mxu0 0
    %1194 = vmatpush1.bf16.msra.mxu0 %v424
    %1195 = vmatprep.subr.bf16.mxu0 0
    %1196 = vmatpush1.bf16.msra.mxu0 %v421
    %1197 = vmatprep.subr.bf16.mxu0 0
    %1198 = vmatpush1.bf16.msra.mxu0 %v418
    %1199 = vmatprep.subr.bf16.mxu0 0
    %1200 = vmatpush1.bf16.msra.mxu0 %v415
    %1201 = vmatprep.subr.bf16.mxu0 0
    %1202 = vmatpush2.bf16.msra.mxu0 0
    %1203 = vmatprep.subr.bf16.mxu0 0
    %1204 = vmatpush2.bf16.msra.mxu0 0
    %1205 = vmatprep.subr.bf16.mxu0 0
    %1206 = vmatpush2.bf16.msra.mxu0 0
    %1207 = vmatprep.subr.bf16.mxu0 0
    %1208 = vmatpush2.bf16.msra.mxu0 0
    %1209 = vmatprep.subr.bf16.mxu0 0
    %1210 = vmatpush2.bf16.msra.mxu0 0
    %1211 = vmatprep.subr.bf16.mxu0 0
    %1212 = vmatpush2.bf16.msra.mxu0 0
    %1213 = vmatprep.subr.bf16.mxu0 0
    %1214 = vmatpush2.bf16.msra.mxu0 0
    %1215 = vmatprep.subr.bf16.mxu0 0
    %1216 = vmatpush2.bf16.msra.mxu0 0
    %1217 = vmatprep.mubr.bf16.mxu0 0
    %1218 = vmatmul.mubr.bf16.gmra.mxu0 %v1143
    %v1219 = vpop.f32.mrf.mxu0
    %v1220 = vadd.f32 0.0, %v1219
    %v1221 = vpop.f32.mrf.mxu0
    %v1222 = vpop.f32.mrf.mxu0
    %v1223 = vpop.f32.mrf.mxu0
    %1224 = vdwg.mxu0
    %s1225 = smul.u32 6, 3
    %s1226 = smul.addr %s1225, 8
    %s1227 = scalar_lea.vmem [#allocation3], %s1226
    %v1228 = vld [vmem:[%s1227] sm:$0xff]
    %v1229 = vld [vmem:[%s1227 + $0x8] sm:$0xff]
    %v1230 = vld [vmem:[%s1227 + $0x10] sm:$0xff]
    %v1231 = vadd.f32 %v1228, %v1179
    %v1232 = vxor.u32 %v1231, 2147483648
    %v1233 = vmul.f32 %v1232, 1.442695
    %v1234 = vpow.pop %v1233
    %v1235 = vadd.f32 %v1234, 1.0
    %v1236 = vrcp.pop %v1235
    %v1237 = vmul.f32 1.0, %v1236
    %v1238 = vadd.f32 %v1229, %v1181
    %v1239 = vxor.u32 %v1238, 2147483648
    %v1240 = vmul.f32 %v1239, 1.442695
    %v1241 = vpow.pop %v1240
    %v1242 = vadd.f32 %v1241, 1.0
    %v1243 = vrcp.pop %v1242
    %v1244 = vmul.f32 1.0, %v1243
    %v1245 = vadd.f32 %v1220, %v107
    %v1246 = vmul.f32 %v1237, %v1245
    %v1247 = vadd.f32 %v1230, %v1246
    %v1248 = vtanh.pop %v1247
    %v1249 = vsub.f32 1.0, %v1244
    %v1250 = vmul.f32 %v1249, %v1248
    %v1251 = vmul.f32 %v1244, %v1142
    %v1252 = vadd.f32 %v1250, %v1251
    %1253 = vst [vmem:[#allocation4] sm:$0xff] %v1252
    %s1254 = scalar_lea.vmem [#allocation2], 48
    %1255 = vst [vmem:[%s1254] sm:$0xff] %v1252
    %v1256 = vld [vmem:[#allocation4] sm:$0xff]
    %v1257 = vpack.c.bf16 %v1256, %v1256
    %1258 = vmatprep.subr.bf16.mxu0 %v435
    %1259 = vmatpush1.bf16.msra.mxu0 %v434
    %1260 = vmatprep.subr.bf16.mxu0 %v432
    %1261 = vmatpush1.bf16.msra.mxu0 %v431
    %1262 = vmatprep.subr.bf16.mxu0 %v429
    %1263 = vmatpush1.bf16.msra.mxu0 %v428
    %1264 = vmatprep.subr.bf16.mxu0 %v426
    %1265 = vmatpush1.bf16.msra.mxu0 %v425
    %1266 = vmatprep.subr.bf16.mxu0 %v423
    %1267 = vmatpush1.bf16.msra.mxu0 %v422
    %1268 = vmatprep.subr.bf16.mxu0 %v420
    %1269 = vmatpush1.bf16.msra.mxu0 %v419
    %1270 = vmatprep.subr.bf16.mxu0 %v417
    %1271 = vmatpush1.bf16.msra.mxu0 %v416
    %1272 = vmatprep.subr.bf16.mxu0 %v414
    %1273 = vmatpush1.bf16.msra.mxu0 %v413
    %1274 = vmatprep.subr.bf16.mxu0 0
    %1275 = vmatpush2.bf16.msra.mxu0 0
    %1276 = vmatprep.subr.bf16.mxu0 0
    %1277 = vmatpush2.bf16.msra.mxu0 0
    %1278 = vmatprep.subr.bf16.mxu0 0
    %1279 = vmatpush2.bf16.msra.mxu0 0
    %1280 = vmatprep.subr.bf16.mxu0 0
    %1281 = vmatpush2.bf16.msra.mxu0 0
    %1282 = vmatprep.subr.bf16.mxu0 0
    %1283 = vmatpush2.bf16.msra.mxu0 0
    %1284 = vmatprep.subr.bf16.mxu0 0
    %1285 = vmatpush2.bf16.msra.mxu0 0
    %1286 = vmatprep.subr.bf16.mxu0 0
    %1287 = vmatpush2.bf16.msra.mxu0 0
    %1288 = vmatprep.subr.bf16.mxu0 0
    %1289 = vmatpush2.bf16.msra.mxu0 0
    %1290 = vmatprep.mubr.bf16.mxu0 0
    %1291 = vmatmul.mubr.bf16.gmra.mxu0 %v1257
    %v1292 = vpop.f32.mrf.mxu0
    %v1293 = vadd.f32 0.0, %v1292
    %v1294 = vpop.f32.mrf.mxu0
    %v1295 = vadd.f32 0.0, %v1294
    %v1296 = vpop.f32.mrf.mxu0
    %v1297 = vpop.f32.mrf.mxu0
    %1298 = vdwg.mxu0
    %1299 = vmatprep.subr.bf16.mxu0 0
    %1300 = vmatpush1.bf16.msra.mxu0 %v436
    %1301 = vmatprep.subr.bf16.mxu0 0
    %1302 = vmatpush1.bf16.msra.mxu0 %v433
    %1303 = vmatprep.subr.bf16.mxu0 0
    %1304 = vmatpush1.bf16.msra.mxu0 %v430
    %1305 = vmatprep.subr.bf16.mxu0 0
    %1306 = vmatpush1.bf16.msra.mxu0 %v427
    %1307 = vmatprep.subr.bf16.mxu0 0
    %1308 = vmatpush1.bf16.msra.mxu0 %v424
    %1309 = vmatprep.subr.bf16.mxu0 0
    %1310 = vmatpush1.bf16.msra.mxu0 %v421
    %1311 = vmatprep.subr.bf16.mxu0 0
    %1312 = vmatpush1.bf16.msra.mxu0 %v418
    %1313 = vmatprep.subr.bf16.mxu0 0
    %1314 = vmatpush1.bf16.msra.mxu0 %v415
    %1315 = vmatprep.subr.bf16.mxu0 0
    %1316 = vmatpush2.bf16.msra.mxu0 0
    %1317 = vmatprep.subr.bf16.mxu0 0
    %1318 = vmatpush2.bf16.msra.mxu0 0
    %1319 = vmatprep.subr.bf16.mxu0 0
    %1320 = vmatpush2.bf16.msra.mxu0 0
    %1321 = vmatprep.subr.bf16.mxu0 0
    %1322 = vmatpush2.bf16.msra.mxu0 0
    %1323 = vmatprep.subr.bf16.mxu0 0
    %1324 = vmatpush2.bf16.msra.mxu0 0
    %1325 = vmatprep.subr.bf16.mxu0 0
    %1326 = vmatpush2.bf16.msra.mxu0 0
    %1327 = vmatprep.subr.bf16.mxu0 0
    %1328 = vmatpush2.bf16.msra.mxu0 0
    %1329 = vmatprep.subr.bf16.mxu0 0
    %1330 = vmatpush2.bf16.msra.mxu0 0
    %1331 = vmatprep.mubr.bf16.mxu0 0
    %1332 = vmatmul.mubr.bf16.gmra.mxu0 %v1257
    %v1333 = vpop.f32.mrf.mxu0
    %v1334 = vadd.f32 0.0, %v1333
    %v1335 = vpop.f32.mrf.mxu0
    %v1336 = vpop.f32.mrf.mxu0
    %v1337 = vpop.f32.mrf.mxu0
    %1338 = vdwg.mxu0
    %s1339 = smul.u32 7, 3
    %s1340 = smul.addr %s1339, 8
    %s1341 = scalar_lea.vmem [#allocation3], %s1340
    %v1342 = vld [vmem:[%s1341] sm:$0xff]
    %v1343 = vld [vmem:[%s1341 + $0x8] sm:$0xff]
    %v1344 = vld [vmem:[%s1341 + $0x10] sm:$0xff]
    %v1345 = vadd.f32 %v1342, %v1293
    %v1346 = vxor.u32 %v1345, 2147483648
    %v1347 = vmul.f32 %v1346, 1.442695
    %v1348 = vpow.pop %v1347
    %v1349 = vadd.f32 %v1348, 1.0
    %v1350 = vrcp.pop %v1349
    %v1351 = vmul.f32 1.0, %v1350
    %v1352 = vadd.f32 %v1343, %v1295
    %v1353 = vxor.u32 %v1352, 2147483648
    %v1354 = vmul.f32 %v1353, 1.442695
    %v1355 = vpow.pop %v1354
    %v1356 = vadd.f32 %v1355, 1.0
    %v1357 = vrcp.pop %v1356
    %v1358 = vmul.f32 1.0, %v1357
    %v1359 = vadd.f32 %v1334, %v107
    %v1360 = vmul.f32 %v1351, %v1359
    %v1361 = vadd.f32 %v1344, %v1360
    %v1362 = vtanh.pop %v1361
    %v1363 = vsub.f32 1.0, %v1358
    %v1364 = vmul.f32 %v1363, %v1362
    %v1365 = vmul.f32 %v1358, %v1256
    %v1366 = vadd.f32 %v1364, %v1365
    %1367 = vst [vmem:[#allocation4] sm:$0xff] %v1366
    %s1368 = scalar_lea.vmem [#allocation2], 56
    %1369 = vst [vmem:[%s1368] sm:$0xff] %v1366
    %v1370 = vld [vmem:[#allocation5] sm:$0xff]
    %v1371 = vld [vmem:[#allocation5 + $0x8] sm:$0xf]
    %v1372 = vld [vmem:[#allocation5 + $0xc] sm:$0xff]
    %v1373 = vld [vmem:[#allocation5 + $0x14] sm:$0xf]
    %v1374 = vld [vmem:[#allocation5 + $0x18] sm:$0xff]
    %v1375 = vld [vmem:[#allocation5 + $0x20] sm:$0xf]
    %v1376 = vld [vmem:[#allocation5 + $0x24] sm:$0xff]
    %v1377 = vld [vmem:[#allocation5 + $0x2c] sm:$0xf]
    %v1378 = vld [vmem:[#allocation5 + $0x30] sm:$0xff]
    %v1379 = vld [vmem:[#allocation5 + $0x38] sm:$0xf]
    %v1380 = vld [vmem:[#allocation5 + $0x3c] sm:$0xff]
    %v1381 = vld [vmem:[#allocation5 + $0x44] sm:$0xf]
    %v1382 = vld [vmem:[#allocation5 + $0x48] sm:$0xff]
    %v1383 = vld [vmem:[#allocation5 + $0x50] sm:$0xf]
    %v1384 = vld [vmem:[#allocation5 + $0x54] sm:$0xff]
    %v1385 = vld [vmem:[#allocation5 + $0x5c] sm:$0xf]
    %v1386 = vld [vmem:[#allocation5 + $0x60] sm:$0xff]
    %v1387 = vld [vmem:[#allocation5 + $0x68] sm:$0xf]
    %v1388 = vld [vmem:[#allocation5 + $0x6c] sm:$0xff]
    %v1389 = vld [vmem:[#allocation5 + $0x74] sm:$0xf]
    %v1390 = vld [vmem:[#allocation5 + $0x78] sm:$0xff]
    %v1391 = vld [vmem:[#allocation5 + $0x80] sm:$0xf]
    %v1392 = vld [vmem:[#allocation5 + $0x84] sm:$0xff]
    %v1393 = vld [vmem:[#allocation5 + $0x8c] sm:$0xf]
    %v1394 = vld [vmem:[#allocation5 + $0x90] sm:$0xff]
    %v1395 = vld [vmem:[#allocation5 + $0x98] sm:$0xf]
    %v1396 = vld [vmem:[#allocation5 + $0x9c] sm:$0xff]
    %v1397 = vld [vmem:[#allocation5 + $0xa4] sm:$0xf]
    %v1398 = vld [vmem:[#allocation5 + $0xa8] sm:$0xff]
    %v1399 = vld [vmem:[#allocation5 + $0xb0] sm:$0xf]
    %v1400 = vld [vmem:[#allocation5 + $0xb4] sm:$0xff]
    %v1401 = vld [vmem:[#allocation5 + $0xbc] sm:$0xf]
    %v1402 = vld [vmem:[#allocation7] sm:$0xff]
    %v1403 = vld [vmem:[#allocation7 + $0x8] sm:$0xf]
    %v1404 = vld [vmem:[#allocation7 + $0xc] sm:$0xff]
    %v1405 = vld [vmem:[#allocation7 + $0x14] sm:$0xf]
    %v1406 = vld [vmem:[#allocation7 + $0x18] sm:$0xff]
    %v1407 = vld [vmem:[#allocation7 + $0x20] sm:$0xf]
    %v1408 = vld [vmem:[#allocation7 + $0x24] sm:$0xff]
    %v1409 = vld [vmem:[#allocation7 + $0x2c] sm:$0xf]
    %v1410 = vld [vmem:[#allocation7 + $0x30] sm:$0xff]
    %v1411 = vld [vmem:[#allocation7 + $0x38] sm:$0xf]
    %v1412 = vld [vmem:[#allocation7 + $0x3c] sm:$0xff]
    %v1413 = vld [vmem:[#allocation7 + $0x44] sm:$0xf]
    %v1414 = vld [vmem:[#allocation7 + $0x48] sm:$0xff]
    %v1415 = vld [vmem:[#allocation7 + $0x50] sm:$0xf]
    %v1416 = vld [vmem:[#allocation7 + $0x54] sm:$0xff]
    %v1417 = vld [vmem:[#allocation7 + $0x5c] sm:$0xf]
    %v1418 = vld [vmem:[#allocation7 + $0x60] sm:$0xff]
    %v1419 = vld [vmem:[#allocation7 + $0x68] sm:$0xf]
    %v1420 = vld [vmem:[#allocation7 + $0x6c] sm:$0xff]
    %v1421 = vld [vmem:[#allocation7 + $0x74] sm:$0xf]
    %v1422 = vld [vmem:[#allocation7 + $0x78] sm:$0xff]
    %v1423 = vld [vmem:[#allocation7 + $0x80] sm:$0xf]
    %v1424 = vld [vmem:[#allocation7 + $0x84] sm:$0xff]
    %v1425 = vld [vmem:[#allocation7 + $0x8c] sm:$0xf]
    %v1426 = vld [vmem:[#allocation7 + $0x90] sm:$0xff]
    %v1427 = vld [vmem:[#allocation7 + $0x98] sm:$0xf]
    %v1428 = vld [vmem:[#allocation7 + $0x9c] sm:$0xff]
    %v1429 = vld [vmem:[#allocation7 + $0xa4] sm:$0xf]
    %v1430 = vld [vmem:[#allocation7 + $0xa8] sm:$0xff]
    %v1431 = vld [vmem:[#allocation7 + $0xb0] sm:$0xf]
    %v1432 = vld [vmem:[#allocation7 + $0xb4] sm:$0xff]
    %v1433 = vld [vmem:[#allocation7 + $0xbc] sm:$0xf]
    %v1434 = vld [vmem:[%s7] sm:$0x7]
    %v1435 = vld [vmem:[%s8] sm:$0x1]
    %v1437 = vlaneseq
    %v1438 = vshrl.u32 %v1437, 7
    %v1439 = vsub.s32 0, %v1438
    %v1440 = vrot.slane %v1435, %v1439
    %1442 = vst [vmem:[#allocation4] sm:$0xff] 0.0
    %v1443 = vld [vmem:[#allocation2] sm:$0xff]
    %v1444 = vld [vmem:[#allocation2 + $0x8] sm:$0xff]
    %v1445 = vld [vmem:[#allocation2 + $0x10] sm:$0xff]
    %v1446 = vld [vmem:[#allocation2 + $0x18] sm:$0xff]
    %v1447 = vld [vmem:[#allocation2 + $0x20] sm:$0xff]
    %v1448 = vld [vmem:[#allocation2 + $0x28] sm:$0xff]
    %v1449 = vld [vmem:[#allocation2 + $0x30] sm:$0xff]
    %v1450 = vld [vmem:[#allocation2 + $0x38] sm:$0xff]
    %v1451 = vpack.c.bf16 %v1444, %v1443
    %v1452 = vpack.c.bf16 %v1446, %v1445
    %v1453 = vpack.c.bf16 %v1448, %v1447
    %v1454 = vpack.c.bf16 %v1450, %v1449
    %v1456 = vlaneseq
    %v1457 = vshrl.u32 %v1456, 7
    %v1458 = vsub.s32 0, %v1457
    %v1459 = vrot.slane %v1434, %v1458
    %v1460 = vlaneseq
    %v1461 = vshrl.u32 %v1460, 7
    %v1462 = vsub.s32 1, %v1461
    %v1463 = vrot.slane %v1434, %v1462
    %v1464 = vlaneseq
    %v1465 = vshrl.u32 %v1464, 7
    %v1466 = vsub.s32 2, %v1465
    %v1467 = vrot.slane %v1434, %v1466
    %v1503 = vunpack.c.l.b16 %v1370
    %v1504 = vunpack.c.h.b16 %v1370
    %v1505 = vunpack.c.l.b16 %v1371
    %v1506 = vunpack.c.l.b16 %v1372
    %v1507 = vunpack.c.h.b16 %v1372
    %v1508 = vunpack.c.l.b16 %v1373
    %v1509 = vunpack.c.l.b16 %v1374
    %v1510 = vunpack.c.h.b16 %v1374
    %v1511 = vunpack.c.l.b16 %v1375
    %v1512 = vunpack.c.l.b16 %v1376
    %v1513 = vunpack.c.h.b16 %v1376
    %v1514 = vunpack.c.l.b16 %v1377
    %v1515 = vunpack.c.l.b16 %v1378
    %v1516 = vunpack.c.h.b16 %v1378
    %v1517 = vunpack.c.l.b16 %v1379
    %v1518 = vunpack.c.l.b16 %v1380
    %v1519 = vunpack.c.h.b16 %v1380
    %v1520 = vunpack.c.l.b16 %v1381
    %v1521 = vunpack.c.l.b16 %v1382
    %v1522 = vunpack.c.h.b16 %v1382
    %v1523 = vunpack.c.l.b16 %v1383
    %v1524 = vunpack.c.l.b16 %v1384
    %v1525 = vunpack.c.h.b16 %v1384
    %v1526 = vunpack.c.l.b16 %v1385
    %v1527 = vunpack.c.l.b16 %v1386
    %v1528 = vunpack.c.h.b16 %v1386
    %v1529 = vunpack.c.l.b16 %v1387
    %v1530 = vunpack.c.l.b16 %v1388
    %v1531 = vunpack.c.h.b16 %v1388
    %v1532 = vunpack.c.l.b16 %v1389
    %v1533 = vunpack.c.l.b16 %v1390
    %v1534 = vunpack.c.h.b16 %v1390
    %v1535 = vunpack.c.l.b16 %v1391
    %v1536 = vunpack.c.l.b16 %v1392
    %v1537 = vunpack.c.h.b16 %v1392
    %v1538 = vunpack.c.l.b16 %v1393
    %v1539 = vunpack.c.l.b16 %v1394
    %v1540 = vunpack.c.h.b16 %v1394
    %v1541 = vunpack.c.l.b16 %v1395
    %v1542 = vunpack.c.l.b16 %v1396
    %v1543 = vunpack.c.h.b16 %v1396
    %v1544 = vunpack.c.l.b16 %v1397
    %v1545 = vunpack.c.l.b16 %v1398
    %v1546 = vunpack.c.h.b16 %v1398
    %v1547 = vunpack.c.l.b16 %v1399
    %v1548 = vunpack.c.l.b16 %v1400
    %v1549 = vunpack.c.h.b16 %v1400
    %v1550 = vunpack.c.l.b16 %v1401
    %v1551 = vpack.c.b16 %v1506, %v1503
    %v1552 = vpack.c.b16 %v1507, %v1504
    %v1553 = vpack.c.b16 %v1508, %v1505
    %v1554 = vpack.c.b16 %v1512, %v1509
    %v1555 = vpack.c.b16 %v1513, %v1510
    %v1556 = vpack.c.b16 %v1514, %v1511
    %v1557 = vpack.c.b16 %v1518, %v1515
    %v1558 = vpack.c.b16 %v1519, %v1516
    %v1559 = vpack.c.b16 %v1520, %v1517
    %v1560 = vpack.c.b16 %v1524, %v1521
    %v1561 = vpack.c.b16 %v1525, %v1522
    %v1562 = vpack.c.b16 %v1526, %v1523
    %v1563 = vpack.c.b16 %v1530, %v1527
    %v1564 = vpack.c.b16 %v1531, %v1528
    %v1565 = vpack.c.b16 %v1532, %v1529
    %v1566 = vpack.c.b16 %v1536, %v1533
    %v1567 = vpack.c.b16 %v1537, %v1534
    %v1568 = vpack.c.b16 %v1538, %v1535
    %v1569 = vpack.c.b16 %v1542, %v1539
    %v1570 = vpack.c.b16 %v1543, %v1540
    %v1571 = vpack.c.b16 %v1544, %v1541
    %v1572 = vpack.c.b16 %v1548, %v1545
    %v1573 = vpack.c.b16 %v1549, %v1546
    %v1574 = vpack.c.b16 %v1550, %v1547
    %1599 = vmatprep.subr.bf16.mxu0 %v1573
    %1600 = vmatpush1.bf16.msra.mxu0 %v1572
    %1601 = vmatprep.subr.bf16.mxu0 %v1570
    %1602 = vmatpush1.bf16.msra.mxu0 %v1569
    %1603 = vmatprep.subr.bf16.mxu0 %v1567
    %1604 = vmatpush1.bf16.msra.mxu0 %v1566
    %1605 = vmatprep.subr.bf16.mxu0 %v1564
    %1606 = vmatpush1.bf16.msra.mxu0 %v1563
    %1607 = vmatprep.subr.bf16.mxu0 %v1561
    %1608 = vmatpush1.bf16.msra.mxu0 %v1560
    %1609 = vmatprep.subr.bf16.mxu0 %v1558
    %1610 = vmatpush1.bf16.msra.mxu0 %v1557
    %1611 = vmatprep.subr.bf16.mxu0 %v1555
    %1612 = vmatpush1.bf16.msra.mxu0 %v1554
    %1613 = vmatprep.subr.bf16.mxu0 %v1552
    %1614 = vmatpush1.bf16.msra.mxu0 %v1551
    %1615 = vmatprep.subr.bf16.mxu0 0
    %1616 = vmatpush2.bf16.msra.mxu0 0
    %1617 = vmatprep.subr.bf16.mxu0 0
    %1618 = vmatpush2.bf16.msra.mxu0 0
    %1619 = vmatprep.subr.bf16.mxu0 0
    %1620 = vmatpush2.bf16.msra.mxu0 0
    %1621 = vmatprep.subr.bf16.mxu0 0
    %1622 = vmatpush2.bf16.msra.mxu0 0
    %1623 = vmatprep.subr.bf16.mxu0 0
    %1624 = vmatpush2.bf16.msra.mxu0 0
    %1625 = vmatprep.subr.bf16.mxu0 0
    %1626 = vmatpush2.bf16.msra.mxu0 0
    %1627 = vmatprep.subr.bf16.mxu0 0
    %1628 = vmatpush2.bf16.msra.mxu0 0
    %1629 = vmatprep.subr.bf16.mxu0 0
    %1630 = vmatpush2.bf16.msra.mxu0 0
    %1631 = vmatprep.mubr.bf16.mxu0 0
    %1632 = vmatmul.mubr.bf16.gmra.mxu0 %v1451
    %v1633 = vpop.f32.mrf.mxu0
    %v1634 = vadd.f32 %v1459, %v1633
    %v1635 = vpop.f32.mrf.mxu0
    %v1636 = vadd.f32 %v1463, %v1635
    %v1637 = vpop.f32.mrf.mxu0
    %v1638 = vadd.f32 %v1459, %v1637
    %v1639 = vpop.f32.mrf.mxu0
    %v1640 = vadd.f32 %v1463, %v1639
    %1641 = vmatprep.mubr.bf16.mxu0 0
    %1642 = vmatmul.mubr.bf16.gmra.mxu0 %v1452
    %v1643 = vpop.f32.mrf.mxu0
    %v1644 = vadd.f32 %v1459, %v1643
    %v1645 = vpop.f32.mrf.mxu0
    %v1646 = vadd.f32 %v1463, %v1645
    %v1647 = vpop.f32.mrf.mxu0
    %v1648 = vadd.f32 %v1459, %v1647
    %v1649 = vpop.f32.mrf.mxu0
    %v1650 = vadd.f32 %v1463, %v1649
    %1651 = vmatprep.mubr.bf16.mxu0 0
    %1652 = vmatmul.mubr.bf16.gmra.mxu0 %v1453
    %v1653 = vpop.f32.mrf.mxu0
    %v1654 = vadd.f32 %v1459, %v1653
    %v1655 = vpop.f32.mrf.mxu0
    %v1656 = vadd.f32 %v1463, %v1655
    %v1657 = vpop.f32.mrf.mxu0
    %v1658 = vadd.f32 %v1459, %v1657
    %v1659 = vpop.f32.mrf.mxu0
    %v1660 = vadd.f32 %v1463, %v1659
    %1661 = vmatprep.mubr.bf16.mxu0 0
    %1662 = vmatmul.mubr.bf16.gmra.mxu0 %v1454
    %v1663 = vpop.f32.mrf.mxu0
    %v1664 = vadd.f32 %v1459, %v1663
    %v1665 = vpop.f32.mrf.mxu0
    %v1666 = vadd.f32 %v1463, %v1665
    %v1667 = vpop.f32.mrf.mxu0
    %v1668 = vadd.f32 %v1459, %v1667
    %v1669 = vpop.f32.mrf.mxu0
    %v1670 = vadd.f32 %v1463, %v1669
    %1671 = vdwg.mxu0
    %1672 = vmatprep.subr.bf16.mxu0 0
    %1673 = vmatpush1.bf16.msra.mxu0 %v1574
    %1674 = vmatprep.subr.bf16.mxu0 0
    %1675 = vmatpush1.bf16.msra.mxu0 %v1571
    %1676 = vmatprep.subr.bf16.mxu0 0
    %1677 = vmatpush1.bf16.msra.mxu0 %v1568
    %1678 = vmatprep.subr.bf16.mxu0 0
    %1679 = vmatpush1.bf16.msra.mxu0 %v1565
    %1680 = vmatprep.subr.bf16.mxu0 0
    %1681 = vmatpush1.bf16.msra.mxu0 %v1562
    %1682 = vmatprep.subr.bf16.mxu0 0
    %1683 = vmatpush1.bf16.msra.mxu0 %v1559
    %1684 = vmatprep.subr.bf16.mxu0 0
    %1685 = vmatpush1.bf16.msra.mxu0 %v1556
    %1686 = vmatprep.subr.bf16.mxu0 0
    %1687 = vmatpush1.bf16.msra.mxu0 %v1553
    %1688 = vmatprep.subr.bf16.mxu0 0
    %1689 = vmatpush2.bf16.msra.mxu0 0
    %1690 = vmatprep.subr.bf16.mxu0 0
    %1691 = vmatpush2.bf16.msra.mxu0 0
    %1692 = vmatprep.subr.bf16.mxu0 0
    %1693 = vmatpush2.bf16.msra.mxu0 0
    %1694 = vmatprep.subr.bf16.mxu0 0
    %1695 = vmatpush2.bf16.msra.mxu0 0
    %1696 = vmatprep.subr.bf16.mxu0 0
    %1697 = vmatpush2.bf16.msra.mxu0 0
    %1698 = vmatprep.subr.bf16.mxu0 0
    %1699 = vmatpush2.bf16.msra.mxu0 0
    %1700 = vmatprep.subr.bf16.mxu0 0
    %1701 = vmatpush2.bf16.msra.mxu0 0
    %1702 = vmatprep.subr.bf16.mxu0 0
    %1703 = vmatpush2.bf16.msra.mxu0 0
    %1704 = vmatprep.mubr.bf16.mxu0 0
    %1705 = vmatmul.mubr.bf16.gmra.mxu0 %v1451
    %v1706 = vpop.f32.mrf.mxu0
    %v1707 = vadd.f32 %v1467, %v1706
    %v1708 = vpop.f32.mrf.mxu0
    %v1709 = vpop.f32.mrf.mxu0
    %v1710 = vadd.f32 %v1467, %v1709
    %v1711 = vpop.f32.mrf.mxu0
    %1712 = vmatprep.mubr.bf16.mxu0 0
    %1713 = vmatmul.mubr.bf16.gmra.mxu0 %v1452
    %v1714 = vpop.f32.mrf.mxu0
    %v1715 = vadd.f32 %v1467, %v1714
    %v1716 = vpop.f32.mrf.mxu0
    %v1717 = vpop.f32.mrf.mxu0
    %v1718 = vadd.f32 %v1467, %v1717
    %v1719 = vpop.f32.mrf.mxu0
    %1720 = vmatprep.mubr.bf16.mxu0 0
    %1721 = vmatmul.mubr.bf16.gmra.mxu0 %v1453
    %v1722 = vpop.f32.mrf.mxu0
    %v1723 = vadd.f32 %v1467, %v1722
    %v1724 = vpop.f32.mrf.mxu0
    %v1725 = vpop.f32.mrf.mxu0
    %v1726 = vadd.f32 %v1467, %v1725
    %v1727 = vpop.f32.mrf.mxu0
    %1728 = vmatprep.mubr.bf16.mxu0 0
    %1729 = vmatmul.mubr.bf16.gmra.mxu0 %v1454
    %v1730 = vpop.f32.mrf.mxu0
    %v1731 = vadd.f32 %v1467, %v1730
    %v1732 = vpop.f32.mrf.mxu0
    %v1733 = vpop.f32.mrf.mxu0
    %v1734 = vadd.f32 %v1467, %v1733
    %v1735 = vpop.f32.mrf.mxu0
    %1736 = vdwg.mxu0
    %1737 = vst [vmem:[#allocation3] sm:$0xff] %v1634
    %1738 = vst [vmem:[#allocation3 + $0x8] sm:$0xff] %v1636
    %1739 = vst [vmem:[#allocation3 + $0x10] sm:$0xff] %v1707
    %1740 = vst [vmem:[#allocation3 + $0x18] sm:$0xff] %v1638
    %1741 = vst [vmem:[#allocation3 + $0x20] sm:$0xff] %v1640
    %1742 = vst [vmem:[#allocation3 + $0x28] sm:$0xff] %v1710
    %1743 = vst [vmem:[#allocation3 + $0x30] sm:$0xff] %v1644
    %1744 = vst [vmem:[#allocation3 + $0x38] sm:$0xff] %v1646
    %1745 = vst [vmem:[#allocation3 + $0x40] sm:$0xff] %v1715
    %1746 = vst [vmem:[#allocation3 + $0x48] sm:$0xff] %v1648
    %1747 = vst [vmem:[#allocation3 + $0x50] sm:$0xff] %v1650
    %1748 = vst [vmem:[#allocation3 + $0x58] sm:$0xff] %v1718
    %1749 = vst [vmem:[#allocation3 + $0x60] sm:$0xff] %v1654
    %1750 = vst [vmem:[#allocation3 + $0x68] sm:$0xff] %v1656
    %1751 = vst [vmem:[#allocation3 + $0x70] sm:$0xff] %v1723
    %1752 = vst [vmem:[#allocation3 + $0x78] sm:$0xff] %v1658
    %1753 = vst [vmem:[#allocation3 + $0x80] sm:$0xff] %v1660
    %1754 = vst [vmem:[#allocation3 + $0x88] sm:$0xff] %v1726
    %1755 = vst [vmem:[#allocation3 + $0x90] sm:$0xff] %v1664
    %1756 = vst [vmem:[#allocation3 + $0x98] sm:$0xff] %v1666
    %1757 = vst [vmem:[#allocation3 + $0xa0] sm:$0xff] %v1731
    %1758 = vst [vmem:[#allocation3 + $0xa8] sm:$0xff] %v1668
    %1759 = vst [vmem:[#allocation3 + $0xb0] sm:$0xff] %v1670
    %1760 = vst [vmem:[#allocation3 + $0xb8] sm:$0xff] %v1734
    %v1761 = vld [vmem:[#allocation4] sm:$0xff]
    %v1762 = vpack.c.bf16 %v1761, %v1761
    %v1795 = vunpack.c.l.b16 %v1402
    %v1796 = vunpack.c.h.b16 %v1402
    %v1797 = vunpack.c.l.b16 %v1403
    %v1798 = vunpack.c.l.b16 %v1404
    %v1799 = vunpack.c.h.b16 %v1404
    %v1800 = vunpack.c.l.b16 %v1405
    %v1801 = vunpack.c.l.b16 %v1406
    %v1802 = vunpack.c.h.b16 %v1406
    %v1803 = vunpack.c.l.b16 %v1407
    %v1804 = vunpack.c.l.b16 %v1408
    %v1805 = vunpack.c.h.b16 %v1408
    %v1806 = vunpack.c.l.b16 %v1409
    %v1807 = vunpack.c.l.b16 %v1410
    %v1808 = vunpack.c.h.b16 %v1410
    %v1809 = vunpack.c.l.b16 %v1411
    %v1810 = vunpack.c.l.b16 %v1412
    %v1811 = vunpack.c.h.b16 %v1412
    %v1812 = vunpack.c.l.b16 %v1413
    %v1813 = vunpack.c.l.b16 %v1414
    %v1814 = vunpack.c.h.b16 %v1414
    %v1815 = vunpack.c.l.b16 %v1415
    %v1816 = vunpack.c.l.b16 %v1416
    %v1817 = vunpack.c.h.b16 %v1416
    %v1818 = vunpack.c.l.b16 %v1417
    %v1819 = vunpack.c.l.b16 %v1418
    %v1820 = vunpack.c.h.b16 %v1418
    %v1821 = vunpack.c.l.b16 %v1419
    %v1822 = vunpack.c.l.b16 %v1420
    %v1823 = vunpack.c.h.b16 %v1420
    %v1824 = vunpack.c.l.b16 %v1421
    %v1825 = vunpack.c.l.b16 %v1422
    %v1826 = vunpack.c.h.b16 %v1422
    %v1827 = vunpack.c.l.b16 %v1423
    %v1828 = vunpack.c.l.b16 %v1424
    %v1829 = vunpack.c.h.b16 %v1424
    %v1830 = vunpack.c.l.b16 %v1425
    %v1831 = vunpack.c.l.b16 %v1426
    %v1832 = vunpack.c.h.b16 %v1426
    %v1833 = vunpack.c.l.b16 %v1427
    %v1834 = vunpack.c.l.b16 %v1428
    %v1835 = vunpack.c.h.b16 %v1428
    %v1836 = vunpack.c.l.b16 %v1429
    %v1837 = vunpack.c.l.b16 %v1430
    %v1838 = vunpack.c.h.b16 %v1430
    %v1839 = vunpack.c.l.b16 %v1431
    %v1840 = vunpack.c.l.b16 %v1432
    %v1841 = vunpack.c.h.b16 %v1432
    %v1842 = vunpack.c.l.b16 %v1433
    %v1843 = vpack.c.b16 %v1798, %v1795
    %v1844 = vpack.c.b16 %v1799, %v1796
    %v1845 = vpack.c.b16 %v1800, %v1797
    %v1846 = vpack.c.b16 %v1804, %v1801
    %v1847 = vpack.c.b16 %v1805, %v1802
    %v1848 = vpack.c.b16 %v1806, %v1803
    %v1849 = vpack.c.b16 %v1810, %v1807
    %v1850 = vpack.c.b16 %v1811, %v1808
    %v1851 = vpack.c.b16 %v1812, %v1809
    %v1852 = vpack.c.b16 %v1816, %v1813
    %v1853 = vpack.c.b16 %v1817, %v1814
    %v1854 = vpack.c.b16 %v1818, %v1815
    %v1855 = vpack.c.b16 %v1822, %v1819
    %v1856 = vpack.c.b16 %v1823, %v1820
    %v1857 = vpack.c.b16 %v1824, %v1821
    %v1858 = vpack.c.b16 %v1828, %v1825
    %v1859 = vpack.c.b16 %v1829, %v1826
    %v1860 = vpack.c.b16 %v1830, %v1827
    %v1861 = vpack.c.b16 %v1834, %v1831
    %v1862 = vpack.c.b16 %v1835, %v1832
    %v1863 = vpack.c.b16 %v1836, %v1833
    %v1864 = vpack.c.b16 %v1840, %v1837
    %v1865 = vpack.c.b16 %v1841, %v1838
    %v1866 = vpack.c.b16 %v1842, %v1839
    %1891 = vmatprep.subr.bf16.mxu0 %v1865
    %1892 = vmatpush1.bf16.msra.mxu0 %v1864
    %1893 = vmatprep.subr.bf16.mxu0 %v1862
    %1894 = vmatpush1.bf16.msra.mxu0 %v1861
    %1895 = vmatprep.subr.bf16.mxu0 %v1859
    %1896 = vmatpush1.bf16.msra.mxu0 %v1858
    %1897 = vmatprep.subr.bf16.mxu0 %v1856
    %1898 = vmatpush1.bf16.msra.mxu0 %v1855
    %1899 = vmatprep.subr.bf16.mxu0 %v1853
    %1900 = vmatpush1.bf16.msra.mxu0 %v1852
    %1901 = vmatprep.subr.bf16.mxu0 %v1850
    %1902 = vmatpush1.bf16.msra.mxu0 %v1849
    %1903 = vmatprep.subr.bf16.mxu0 %v1847
    %1904 = vmatpush1.bf16.msra.mxu0 %v1846
    %1905 = vmatprep.subr.bf16.mxu0 %v1844
    %1906 = vmatpush1.bf16.msra.mxu0 %v1843
    %1907 = vmatprep.subr.bf16.mxu0 0
    %1908 = vmatpush2.bf16.msra.mxu0 0
    %1909 = vmatprep.subr.bf16.mxu0 0
    %1910 = vmatpush2.bf16.msra.mxu0 0
    %1911 = vmatprep.subr.bf16.mxu0 0
    %1912 = vmatpush2.bf16.msra.mxu0 0
    %1913 = vmatprep.subr.bf16.mxu0 0
    %1914 = vmatpush2.bf16.msra.mxu0 0
    %1915 = vmatprep.subr.bf16.mxu0 0
    %1916 = vmatpush2.bf16.msra.mxu0 0
    %1917 = vmatprep.subr.bf16.mxu0 0
    %1918 = vmatpush2.bf16.msra.mxu0 0
    %1919 = vmatprep.subr.bf16.mxu0 0
    %1920 = vmatpush2.bf16.msra.mxu0 0
    %1921 = vmatprep.subr.bf16.mxu0 0
    %1922 = vmatpush2.bf16.msra.mxu0 0
    %1923 = vmatprep.mubr.bf16.mxu0 0
    %1924 = vmatmul.mubr.bf16.gmra.mxu0 %v1762
    %v1925 = vpop.f32.mrf.mxu0
    %v1926 = vadd.f32 0.0, %v1925
    %v1927 = vpop.f32.mrf.mxu0
    %v1928 = vadd.f32 0.0, %v1927
    %v1929 = vpop.f32.mrf.mxu0
    %v1930 = vpop.f32.mrf.mxu0
    %1931 = vdwg.mxu0
    %1932 = vmatprep.subr.bf16.mxu0 0
    %1933 = vmatpush1.bf16.msra.mxu0 %v1866
    %1934 = vmatprep.subr.bf16.mxu0 0
    %1935 = vmatpush1.bf16.msra.mxu0 %v1863
    %1936 = vmatprep.subr.bf16.mxu0 0
    %1937 = vmatpush1.bf16.msra.mxu0 %v1860
    %1938 = vmatprep.subr.bf16.mxu0 0
    %1939 = vmatpush1.bf16.msra.mxu0 %v1857
    %1940 = vmatprep.subr.bf16.mxu0 0
    %1941 = vmatpush1.bf16.msra.mxu0 %v1854
    %1942 = vmatprep.subr.bf16.mxu0 0
    %1943 = vmatpush1.bf16.msra.mxu0 %v1851
    %1944 = vmatprep.subr.bf16.mxu0 0
    %1945 = vmatpush1.bf16.msra.mxu0 %v1848
    %1946 = vmatprep.subr.bf16.mxu0 0
    %1947 = vmatpush1.bf16.msra.mxu0 %v1845
    %1948 = vmatprep.subr.bf16.mxu0 0
    %1949 = vmatpush2.bf16.msra.mxu0 0
    %1950 = vmatprep.subr.bf16.mxu0 0
    %1951 = vmatpush2.bf16.msra.mxu0 0
    %1952 = vmatprep.subr.bf16.mxu0 0
    %1953 = vmatpush2.bf16.msra.mxu0 0
    %1954 = vmatprep.subr.bf16.mxu0 0
    %1955 = vmatpush2.bf16.msra.mxu0 0
    %1956 = vmatprep.subr.bf16.mxu0 0
    %1957 = vmatpush2.bf16.msra.mxu0 0
    %1958 = vmatprep.subr.bf16.mxu0 0
    %1959 = vmatpush2.bf16.msra.mxu0 0
    %1960 = vmatprep.subr.bf16.mxu0 0
    %1961 = vmatpush2.bf16.msra.mxu0 0
    %1962 = vmatprep.subr.bf16.mxu0 0
    %1963 = vmatpush2.bf16.msra.mxu0 0
    %1964 = vmatprep.mubr.bf16.mxu0 0
    %1965 = vmatmul.mubr.bf16.gmra.mxu0 %v1762
    %v1966 = vpop.f32.mrf.mxu0
    %v1967 = vadd.f32 0.0, %v1966
    %v1968 = vpop.f32.mrf.mxu0
    %v1969 = vpop.f32.mrf.mxu0
    %v1970 = vpop.f32.mrf.mxu0
    %1971 = vdwg.mxu0
    %v1972 = vld [vmem:[%s544] sm:$0xff]
    %v1973 = vld [vmem:[%s544 + $0x8] sm:$0xff]
    %v1974 = vld [vmem:[%s544 + $0x10] sm:$0xff]
    %v1975 = vadd.f32 %v1972, %v1926
    %v1976 = vxor.u32 %v1975, 2147483648
    %v1977 = vmul.f32 %v1976, 1.442695
    %v1978 = vpow.pop %v1977
    %v1979 = vadd.f32 %v1978, 1.0
    %v1980 = vrcp.pop %v1979
    %v1981 = vmul.f32 1.0, %v1980
    %v1982 = vadd.f32 %v1973, %v1928
    %v1983 = vxor.u32 %v1982, 2147483648
    %v1984 = vmul.f32 %v1983, 1.442695
    %v1985 = vpow.pop %v1984
    %v1986 = vadd.f32 %v1985, 1.0
    %v1987 = vrcp.pop %v1986
    %v1988 = vmul.f32 1.0, %v1987
    %v1989 = vadd.f32 %v1967, %v1440
    %v1990 = vmul.f32 %v1981, %v1989
    %v1991 = vadd.f32 %v1974, %v1990
    %v1992 = vtanh.pop %v1991
    %v1993 = vsub.f32 1.0, %v1988
    %v1994 = vmul.f32 %v1993, %v1992
    %v1995 = vmul.f32 %v1988, %v1761
    %v1996 = vadd.f32 %v1994, %v1995
    %1997 = vst [vmem:[#allocation4] sm:$0xff] %v1996
    %v1998 = vld [vmem:[#allocation4] sm:$0xff]
    %v1999 = vpack.c.bf16 %v1998, %v1998
    %2000 = vmatprep.subr.bf16.mxu0 %v1865
    %2001 = vmatpush1.bf16.msra.mxu0 %v1864
    %2002 = vmatprep.subr.bf16.mxu0 %v1862
    %2003 = vmatpush1.bf16.msra.mxu0 %v1861
    %2004 = vmatprep.subr.bf16.mxu0 %v1859
    %2005 = vmatpush1.bf16.msra.mxu0 %v1858
    %2006 = vmatprep.subr.bf16.mxu0 %v1856
    %2007 = vmatpush1.bf16.msra.mxu0 %v1855
    %2008 = vmatprep.subr.bf16.mxu0 %v1853
    %2009 = vmatpush1.bf16.msra.mxu0 %v1852
    %2010 = vmatprep.subr.bf16.mxu0 %v1850
    %2011 = vmatpush1.bf16.msra.mxu0 %v1849
    %2012 = vmatprep.subr.bf16.mxu0 %v1847
    %2013 = vmatpush1.bf16.msra.mxu0 %v1846
    %2014 = vmatprep.subr.bf16.mxu0 %v1844
    %2015 = vmatpush1.bf16.msra.mxu0 %v1843
    %2016 = vmatprep.subr.bf16.mxu0 0
    %2017 = vmatpush2.bf16.msra.mxu0 0
    %2018 = vmatprep.subr.bf16.mxu0 0
    %2019 = vmatpush2.bf16.msra.mxu0 0
    %2020 = vmatprep.subr.bf16.mxu0 0
    %2021 = vmatpush2.bf16.msra.mxu0 0
    %2022 = vmatprep.subr.bf16.mxu0 0
    %2023 = vmatpush2.bf16.msra.mxu0 0
    %2024 = vmatprep.subr.bf16.mxu0 0
    %2025 = vmatpush2.bf16.msra.mxu0 0
    %2026 = vmatprep.subr.bf16.mxu0 0
    %2027 = vmatpush2.bf16.msra.mxu0 0
    %2028 = vmatprep.subr.bf16.mxu0 0
    %2029 = vmatpush2.bf16.msra.mxu0 0
    %2030 = vmatprep.subr.bf16.mxu0 0
    %2031 = vmatpush2.bf16.msra.mxu0 0
    %2032 = vmatprep.mubr.bf16.mxu0 0
    %2033 = vmatmul.mubr.bf16.gmra.mxu0 %v1999
    %v2034 = vpop.f32.mrf.mxu0
    %v2035 = vadd.f32 0.0, %v2034
    %v2036 = vpop.f32.mrf.mxu0
    %v2037 = vadd.f32 0.0, %v2036
    %v2038 = vpop.f32.mrf.mxu0
    %v2039 = vpop.f32.mrf.mxu0
    %2040 = vdwg.mxu0
    %2041 = vmatprep.subr.bf16.mxu0 0
    %2042 = vmatpush1.bf16.msra.mxu0 %v1866
    %2043 = vmatprep.subr.bf16.mxu0 0
    %2044 = vmatpush1.bf16.msra.mxu0 %v1863
    %2045 = vmatprep.subr.bf16.mxu0 0
    %2046 = vmatpush1.bf16.msra.mxu0 %v1860
    %2047 = vmatprep.subr.bf16.mxu0 0
    %2048 = vmatpush1.bf16.msra.mxu0 %v1857
    %2049 = vmatprep.subr.bf16.mxu0 0
    %2050 = vmatpush1.bf16.msra.mxu0 %v1854
    %2051 = vmatprep.subr.bf16.mxu0 0
    %2052 = vmatpush1.bf16.msra.mxu0 %v1851
    %2053 = vmatprep.subr.bf16.mxu0 0
    %2054 = vmatpush1.bf16.msra.mxu0 %v1848
    %2055 = vmatprep.subr.bf16.mxu0 0
    %2056 = vmatpush1.bf16.msra.mxu0 %v1845
    %2057 = vmatprep.subr.bf16.mxu0 0
    %2058 = vmatpush2.bf16.msra.mxu0 0
    %2059 = vmatprep.subr.bf16.mxu0 0
    %2060 = vmatpush2.bf16.msra.mxu0 0
    %2061 = vmatprep.subr.bf16.mxu0 0
    %2062 = vmatpush2.bf16.msra.mxu0 0
    %2063 = vmatprep.subr.bf16.mxu0 0
    %2064 = vmatpush2.bf16.msra.mxu0 0
    %2065 = vmatprep.subr.bf16.mxu0 0
    %2066 = vmatpush2.bf16.msra.mxu0 0
    %2067 = vmatprep.subr.bf16.mxu0 0
    %2068 = vmatpush2.bf16.msra.mxu0 0
    %2069 = vmatprep.subr.bf16.mxu0 0
    %2070 = vmatpush2.bf16.msra.mxu0 0
    %2071 = vmatprep.subr.bf16.mxu0 0
    %2072 = vmatpush2.bf16.msra.mxu0 0
    %2073 = vmatprep.mubr.bf16.mxu0 0
    %2074 = vmatmul.mubr.bf16.gmra.mxu0 %v1999
    %v2075 = vpop.f32.mrf.mxu0
    %v2076 = vadd.f32 0.0, %v2075
    %v2077 = vpop.f32.mrf.mxu0
    %v2078 = vpop.f32.mrf.mxu0
    %v2079 = vpop.f32.mrf.mxu0
    %2080 = vdwg.mxu0
    %v2081 = vld [vmem:[%s657] sm:$0xff]
    %v2082 = vld [vmem:[%s657 + $0x8] sm:$0xff]
    %v2083 = vld [vmem:[%s657 + $0x10] sm:$0xff]
    %v2084 = vadd.f32 %v2081, %v2035
    %v2085 = vxor.u32 %v2084, 2147483648
    %v2086 = vmul.f32 %v2085, 1.442695
    %v2087 = vpow.pop %v2086
    %v2088 = vadd.f32 %v2087, 1.0
    %v2089 = vrcp.pop %v2088
    %v2090 = vmul.f32 1.0, %v2089
    %v2091 = vadd.f32 %v2082, %v2037
    %v2092 = vxor.u32 %v2091, 2147483648
    %v2093 = vmul.f32 %v2092, 1.442695
    %v2094 = vpow.pop %v2093
    %v2095 = vadd.f32 %v2094, 1.0
    %v2096 = vrcp.pop %v2095
    %v2097 = vmul.f32 1.0, %v2096
    %v2098 = vadd.f32 %v2076, %v1440
    %v2099 = vmul.f32 %v2090, %v2098
    %v2100 = vadd.f32 %v2083, %v2099
    %v2101 = vtanh.pop %v2100
    %v2102 = vsub.f32 1.0, %v2097
    %v2103 = vmul.f32 %v2102, %v2101
    %v2104 = vmul.f32 %v2097, %v1998
    %v2105 = vadd.f32 %v2103, %v2104
    %2106 = vst [vmem:[#allocation4] sm:$0xff] %v2105
    %v2107 = vld [vmem:[#allocation4] sm:$0xff]
    %v2108 = vpack.c.bf16 %v2107, %v2107
    %2109 = vmatprep.subr.bf16.mxu0 %v1865
    %2110 = vmatpush1.bf16.msra.mxu0 %v1864
    %2111 = vmatprep.subr.bf16.mxu0 %v1862
    %2112 = vmatpush1.bf16.msra.mxu0 %v1861
    %2113 = vmatprep.subr.bf16.mxu0 %v1859
    %2114 = vmatpush1.bf16.msra.mxu0 %v1858
    %2115 = vmatprep.subr.bf16.mxu0 %v1856
    %2116 = vmatpush1.bf16.msra.mxu0 %v1855
    %2117 = vmatprep.subr.bf16.mxu0 %v1853
    %2118 = vmatpush1.bf16.msra.mxu0 %v1852
    %2119 = vmatprep.subr.bf16.mxu0 %v1850
    %2120 = vmatpush1.bf16.msra.mxu0 %v1849
    %2121 = vmatprep.subr.bf16.mxu0 %v1847
    %2122 = vmatpush1.bf16.msra.mxu0 %v1846
    %2123 = vmatprep.subr.bf16.mxu0 %v1844
    %2124 = vmatpush1.bf16.msra.mxu0 %v1843
    %2125 = vmatprep.subr.bf16.mxu0 0
    %2126 = vmatpush2.bf16.msra.mxu0 0
    %2127 = vmatprep.subr.bf16.mxu0 0
    %2128 = vmatpush2.bf16.msra.mxu0 0
    %2129 = vmatprep.subr.bf16.mxu0 0
    %2130 = vmatpush2.bf16.msra.mxu0 0
    %2131 = vmatprep.subr.bf16.mxu0 0
    %2132 = vmatpush2.bf16.msra.mxu0 0
    %2133 = vmatprep.subr.bf16.mxu0 0
    %2134 = vmatpush2.bf16.msra.mxu0 0
    %2135 = vmatprep.subr.bf16.mxu0 0
    %2136 = vmatpush2.bf16.msra.mxu0 0
    %2137 = vmatprep.subr.bf16.mxu0 0
    %2138 = vmatpush2.bf16.msra.mxu0 0
    %2139 = vmatprep.subr.bf16.mxu0 0
    %2140 = vmatpush2.bf16.msra.mxu0 0
    %2141 = vmatprep.mubr.bf16.mxu0 0
    %2142 = vmatmul.mubr.bf16.gmra.mxu0 %v2108
    %v2143 = vpop.f32.mrf.mxu0
    %v2144 = vadd.f32 0.0, %v2143
    %v2145 = vpop.f32.mrf.mxu0
    %v2146 = vadd.f32 0.0, %v2145
    %v2147 = vpop.f32.mrf.mxu0
    %v2148 = vpop.f32.mrf.mxu0
    %2149 = vdwg.mxu0
    %2150 = vmatprep.subr.bf16.mxu0 0
    %2151 = vmatpush1.bf16.msra.mxu0 %v1866
    %2152 = vmatprep.subr.bf16.mxu0 0
    %2153 = vmatpush1.bf16.msra.mxu0 %v1863
    %2154 = vmatprep.subr.bf16.mxu0 0
    %2155 = vmatpush1.bf16.msra.mxu0 %v1860
    %2156 = vmatprep.subr.bf16.mxu0 0
    %2157 = vmatpush1.bf16.msra.mxu0 %v1857
    %2158 = vmatprep.subr.bf16.mxu0 0
    %2159 = vmatpush1.bf16.msra.mxu0 %v1854
    %2160 = vmatprep.subr.bf16.mxu0 0
    %2161 = vmatpush1.bf16.msra.mxu0 %v1851
    %2162 = vmatprep.subr.bf16.mxu0 0
    %2163 = vmatpush1.bf16.msra.mxu0 %v1848
    %2164 = vmatprep.subr.bf16.mxu0 0
    %2165 = vmatpush1.bf16.msra.mxu0 %v1845
    %2166 = vmatprep.subr.bf16.mxu0 0
    %2167 = vmatpush2.bf16.msra.mxu0 0
    %2168 = vmatprep.subr.bf16.mxu0 0
    %2169 = vmatpush2.bf16.msra.mxu0 0
    %2170 = vmatprep.subr.bf16.mxu0 0
    %2171 = vmatpush2.bf16.msra.mxu0 0
    %2172 = vmatprep.subr.bf16.mxu0 0
    %2173 = vmatpush2.bf16.msra.mxu0 0
    %2174 = vmatprep.subr.bf16.mxu0 0
    %2175 = vmatpush2.bf16.msra.mxu0 0
    %2176 = vmatprep.subr.bf16.mxu0 0
    %2177 = vmatpush2.bf16.msra.mxu0 0
    %2178 = vmatprep.subr.bf16.mxu0 0
    %2179 = vmatpush2.bf16.msra.mxu0 0
    %2180 = vmatprep.subr.bf16.mxu0 0
    %2181 = vmatpush2.bf16.msra.mxu0 0
    %2182 = vmatprep.mubr.bf16.mxu0 0
    %2183 = vmatmul.mubr.bf16.gmra.mxu0 %v2108
    %v2184 = vpop.f32.mrf.mxu0
    %v2185 = vadd.f32 0.0, %v2184
    %v2186 = vpop.f32.mrf.mxu0
    %v2187 = vpop.f32.mrf.mxu0
    %v2188 = vpop.f32.mrf.mxu0
    %2189 = vdwg.mxu0
    %v2190 = vld [vmem:[%s771] sm:$0xff]
    %v2191 = vld [vmem:[%s771 + $0x8] sm:$0xff]
    %v2192 = vld [vmem:[%s771 + $0x10] sm:$0xff]
    %v2193 = vadd.f32 %v2190, %v2144
    %v2194 = vxor.u32 %v2193, 2147483648
    %v2195 = vmul.f32 %v2194, 1.442695
    %v2196 = vpow.pop %v2195
    %v2197 = vadd.f32 %v2196, 1.0
    %v2198 = vrcp.pop %v2197
    %v2199 = vmul.f32 1.0, %v2198
    %v2200 = vadd.f32 %v2191, %v2146
    %v2201 = vxor.u32 %v2200, 2147483648
    %v2202 = vmul.f32 %v2201, 1.442695
    %v2203 = vpow.pop %v2202
    %v2204 = vadd.f32 %v2203, 1.0
    %v2205 = vrcp.pop %v2204
    %v2206 = vmul.f32 1.0, %v2205
    %v2207 = vadd.f32 %v2185, %v1440
    %v2208 = vmul.f32 %v2199, %v2207
    %v2209 = vadd.f32 %v2192, %v2208
    %v2210 = vtanh.pop %v2209
    %v2211 = vsub.f32 1.0, %v2206
    %v2212 = vmul.f32 %v2211, %v2210
    %v2213 = vmul.f32 %v2206, %v2107
    %v2214 = vadd.f32 %v2212, %v2213
    %2215 = vst [vmem:[#allocation4] sm:$0xff] %v2214
    %v2216 = vld [vmem:[#allocation4] sm:$0xff]
    %v2217 = vpack.c.bf16 %v2216, %v2216
    %2218 = vmatprep.subr.bf16.mxu0 %v1865
    %2219 = vmatpush1.bf16.msra.mxu0 %v1864
    %2220 = vmatprep.subr.bf16.mxu0 %v1862
    %2221 = vmatpush1.bf16.msra.mxu0 %v1861
    %2222 = vmatprep.subr.bf16.mxu0 %v1859
    %2223 = vmatpush1.bf16.msra.mxu0 %v1858
    %2224 = vmatprep.subr.bf16.mxu0 %v1856
    %2225 = vmatpush1.bf16.msra.mxu0 %v1855
    %2226 = vmatprep.subr.bf16.mxu0 %v1853
    %2227 = vmatpush1.bf16.msra.mxu0 %v1852
    %2228 = vmatprep.subr.bf16.mxu0 %v1850
    %2229 = vmatpush1.bf16.msra.mxu0 %v1849
    %2230 = vmatprep.subr.bf16.mxu0 %v1847
    %2231 = vmatpush1.bf16.msra.mxu0 %v1846
    %2232 = vmatprep.subr.bf16.mxu0 %v1844
    %2233 = vmatpush1.bf16.msra.mxu0 %v1843
    %2234 = vmatprep.subr.bf16.mxu0 0
    %2235 = vmatpush2.bf16.msra.mxu0 0
    %2236 = vmatprep.subr.bf16.mxu0 0
    %2237 = vmatpush2.bf16.msra.mxu0 0
    %2238 = vmatprep.subr.bf16.mxu0 0
    %2239 = vmatpush2.bf16.msra.mxu0 0
    %2240 = vmatprep.subr.bf16.mxu0 0
    %2241 = vmatpush2.bf16.msra.mxu0 0
    %2242 = vmatprep.subr.bf16.mxu0 0
    %2243 = vmatpush2.bf16.msra.mxu0 0
    %2244 = vmatprep.subr.bf16.mxu0 0
    %2245 = vmatpush2.bf16.msra.mxu0 0
    %2246 = vmatprep.subr.bf16.mxu0 0
    %2247 = vmatpush2.bf16.msra.mxu0 0
    %2248 = vmatprep.subr.bf16.mxu0 0
    %2249 = vmatpush2.bf16.msra.mxu0 0
    %2250 = vmatprep.mubr.bf16.mxu0 0
    %2251 = vmatmul.mubr.bf16.gmra.mxu0 %v2217
    %v2252 = vpop.f32.mrf.mxu0
    %v2253 = vadd.f32 0.0, %v2252
    %v2254 = vpop.f32.mrf.mxu0
    %v2255 = vadd.f32 0.0, %v2254
    %v2256 = vpop.f32.mrf.mxu0
    %v2257 = vpop.f32.mrf.mxu0
    %2258 = vdwg.mxu0
    %2259 = vmatprep.subr.bf16.mxu0 0
    %2260 = vmatpush1.bf16.msra.mxu0 %v1866
    %2261 = vmatprep.subr.bf16.mxu0 0
    %2262 = vmatpush1.bf16.msra.mxu0 %v1863
    %2263 = vmatprep.subr.bf16.mxu0 0
    %2264 = vmatpush1.bf16.msra.mxu0 %v1860
    %2265 = vmatprep.subr.bf16.mxu0 0
    %2266 = vmatpush1.bf16.msra.mxu0 %v1857
    %2267 = vmatprep.subr.bf16.mxu0 0
    %2268 = vmatpush1.bf16.msra.mxu0 %v1854
    %2269 = vmatprep.subr.bf16.mxu0 0
    %2270 = vmatpush1.bf16.msra.mxu0 %v1851
    %2271 = vmatprep.subr.bf16.mxu0 0
    %2272 = vmatpush1.bf16.msra.mxu0 %v1848
    %2273 = vmatprep.subr.bf16.mxu0 0
    %2274 = vmatpush1.bf16.msra.mxu0 %v1845
    %2275 = vmatprep.subr.bf16.mxu0 0
    %2276 = vmatpush2.bf16.msra.mxu0 0
    %2277 = vmatprep.subr.bf16.mxu0 0
    %2278 = vmatpush2.bf16.msra.mxu0 0
    %2279 = vmatprep.subr.bf16.mxu0 0
    %2280 = vmatpush2.bf16.msra.mxu0 0
    %2281 = vmatprep.subr.bf16.mxu0 0
    %2282 = vmatpush2.bf16.msra.mxu0 0
    %2283 = vmatprep.subr.bf16.mxu0 0
    %2284 = vmatpush2.bf16.msra.mxu0 0
    %2285 = vmatprep.subr.bf16.mxu0 0
    %2286 = vmatpush2.bf16.msra.mxu0 0
    %2287 = vmatprep.subr.bf16.mxu0 0
    %2288 = vmatpush2.bf16.msra.mxu0 0
    %2289 = vmatprep.subr.bf16.mxu0 0
    %2290 = vmatpush2.bf16.msra.mxu0 0
    %2291 = vmatprep.mubr.bf16.mxu0 0
    %2292 = vmatmul.mubr.bf16.gmra.mxu0 %v2217
    %v2293 = vpop.f32.mrf.mxu0
    %v2294 = vadd.f32 0.0, %v2293
    %v2295 = vpop.f32.mrf.mxu0
    %v2296 = vpop.f32.mrf.mxu0
    %v2297 = vpop.f32.mrf.mxu0
    %2298 = vdwg.mxu0
    %v2299 = vld [vmem:[%s885] sm:$0xff]
    %v2300 = vld [vmem:[%s885 + $0x8] sm:$0xff]
    %v2301 = vld [vmem:[%s885 + $0x10] sm:$0xff]
    %v2302 = vadd.f32 %v2299, %v2253
    %v2303 = vxor.u32 %v2302, 2147483648
    %v2304 = vmul.f32 %v2303, 1.442695
    %v2305 = vpow.pop %v2304
    %v2306 = vadd.f32 %v2305, 1.0
    %v2307 = vrcp.pop %v2306
    %v2308 = vmul.f32 1.0, %v2307
    %v2309 = vadd.f32 %v2300, %v2255
    %v2310 = vxor.u32 %v2309, 2147483648
    %v2311 = vmul.f32 %v2310, 1.442695
    %v2312 = vpow.pop %v2311
    %v2313 = vadd.f32 %v2312, 1.0
    %v2314 = vrcp.pop %v2313
    %v2315 = vmul.f32 1.0, %v2314
    %v2316 = vadd.f32 %v2294, %v1440
    %v2317 = vmul.f32 %v2308, %v2316
    %v2318 = vadd.f32 %v2301, %v2317
    %v2319 = vtanh.pop %v2318
    %v2320 = vsub.f32 1.0, %v2315
    %v2321 = vmul.f32 %v2320, %v2319
    %v2322 = vmul.f32 %v2315, %v2216
    %v2323 = vadd.f32 %v2321, %v2322
    %2324 = vst [vmem:[#allocation4] sm:$0xff] %v2323
    %v2325 = vld [vmem:[#allocation4] sm:$0xff]
    %v2326 = vpack.c.bf16 %v2325, %v2325
    %2327 = vmatprep.subr.bf16.mxu0 %v1865
    %2328 = vmatpush1.bf16.msra.mxu0 %v1864
    %2329 = vmatprep.subr.bf16.mxu0 %v1862
    %2330 = vmatpush1.bf16.msra.mxu0 %v1861
    %2331 = vmatprep.subr.bf16.mxu0 %v1859
    %2332 = vmatpush1.bf16.msra.mxu0 %v1858
    %2333 = vmatprep.subr.bf16.mxu0 %v1856
    %2334 = vmatpush1.bf16.msra.mxu0 %v1855
    %2335 = vmatprep.subr.bf16.mxu0 %v1853
    %2336 = vmatpush1.bf16.msra.mxu0 %v1852
    %2337 = vmatprep.subr.bf16.mxu0 %v1850
    %2338 = vmatpush1.bf16.msra.mxu0 %v1849
    %2339 = vmatprep.subr.bf16.mxu0 %v1847
    %2340 = vmatpush1.bf16.msra.mxu0 %v1846
    %2341 = vmatprep.subr.bf16.mxu0 %v1844
    %2342 = vmatpush1.bf16.msra.mxu0 %v1843
    %2343 = vmatprep.subr.bf16.mxu0 0
    %2344 = vmatpush2.bf16.msra.mxu0 0
    %2345 = vmatprep.subr.bf16.mxu0 0
    %2346 = vmatpush2.bf16.msra.mxu0 0
    %2347 = vmatprep.subr.bf16.mxu0 0
    %2348 = vmatpush2.bf16.msra.mxu0 0
    %2349 = vmatprep.subr.bf16.mxu0 0
    %2350 = vmatpush2.bf16.msra.mxu0 0
    %2351 = vmatprep.subr.bf16.mxu0 0
    %2352 = vmatpush2.bf16.msra.mxu0 0
    %2353 = vmatprep.subr.bf16.mxu0 0
    %2354 = vmatpush2.bf16.msra.mxu0 0
    %2355 = vmatprep.subr.bf16.mxu0 0
    %2356 = vmatpush2.bf16.msra.mxu0 0
    %2357 = vmatprep.subr.bf16.mxu0 0
    %2358 = vmatpush2.bf16.msra.mxu0 0
    %2359 = vmatprep.mubr.bf16.mxu0 0
    %2360 = vmatmul.mubr.bf16.gmra.mxu0 %v2326
    %v2361 = vpop.f32.mrf.mxu0
    %v2362 = vadd.f32 0.0, %v2361
    %v2363 = vpop.f32.mrf.mxu0
    %v2364 = vadd.f32 0.0, %v2363
    %v2365 = vpop.f32.mrf.mxu0
    %v2366 = vpop.f32.mrf.mxu0
    %2367 = vdwg.mxu0
    %2368 = vmatprep.subr.bf16.mxu0 0
    %2369 = vmatpush1.bf16.msra.mxu0 %v1866
    %2370 = vmatprep.subr.bf16.mxu0 0
    %2371 = vmatpush1.bf16.msra.mxu0 %v1863
    %2372 = vmatprep.subr.bf16.mxu0 0
    %2373 = vmatpush1.bf16.msra.mxu0 %v1860
    %2374 = vmatprep.subr.bf16.mxu0 0
    %2375 = vmatpush1.bf16.msra.mxu0 %v1857
    %2376 = vmatprep.subr.bf16.mxu0 0
    %2377 = vmatpush1.bf16.msra.mxu0 %v1854
    %2378 = vmatprep.subr.bf16.mxu0 0
    %2379 = vmatpush1.bf16.msra.mxu0 %v1851
    %2380 = vmatprep.subr.bf16.mxu0 0
    %2381 = vmatpush1.bf16.msra.mxu0 %v1848
    %2382 = vmatprep.subr.bf16.mxu0 0
    %2383 = vmatpush1.bf16.msra.mxu0 %v1845
    %2384 = vmatprep.subr.bf16.mxu0 0
    %2385 = vmatpush2.bf16.msra.mxu0 0
    %2386 = vmatprep.subr.bf16.mxu0 0
    %2387 = vmatpush2.bf16.msra.mxu0 0
    %2388 = vmatprep.subr.bf16.mxu0 0
    %2389 = vmatpush2.bf16.msra.mxu0 0
    %2390 = vmatprep.subr.bf16.mxu0 0
    %2391 = vmatpush2.bf16.msra.mxu0 0
    %2392 = vmatprep.subr.bf16.mxu0 0
    %2393 = vmatpush2.bf16.msra.mxu0 0
    %2394 = vmatprep.subr.bf16.mxu0 0
    %2395 = vmatpush2.bf16.msra.mxu0 0
    %2396 = vmatprep.subr.bf16.mxu0 0
    %2397 = vmatpush2.bf16.msra.mxu0 0
    %2398 = vmatprep.subr.bf16.mxu0 0
    %2399 = vmatpush2.bf16.msra.mxu0 0
    %2400 = vmatprep.mubr.bf16.mxu0 0
    %2401 = vmatmul.mubr.bf16.gmra.mxu0 %v2326
    %v2402 = vpop.f32.mrf.mxu0
    %v2403 = vadd.f32 0.0, %v2402
    %v2404 = vpop.f32.mrf.mxu0
    %v2405 = vpop.f32.mrf.mxu0
    %v2406 = vpop.f32.mrf.mxu0
    %2407 = vdwg.mxu0
    %v2408 = vld [vmem:[%s999] sm:$0xff]
    %v2409 = vld [vmem:[%s999 + $0x8] sm:$0xff]
    %v2410 = vld [vmem:[%s999 + $0x10] sm:$0xff]
    %v2411 = vadd.f32 %v2408, %v2362
    %v2412 = vxor.u32 %v2411, 2147483648
    %v2413 = vmul.f32 %v2412, 1.442695
    %v2414 = vpow.pop %v2413
    %v2415 = vadd.f32 %v2414, 1.0
    %v2416 = vrcp.pop %v2415
    %v2417 = vmul.f32 1.0, %v2416
    %v2418 = vadd.f32 %v2409, %v2364
    %v2419 = vxor.u32 %v2418, 2147483648
    %v2420 = vmul.f32 %v2419, 1.442695
    %v2421 = vpow.pop %v2420
    %v2422 = vadd.f32 %v2421, 1.0
    %v2423 = vrcp.pop %v2422
    %v2424 = vmul.f32 1.0, %v2423
    %v2425 = vadd.f32 %v2403, %v1440
    %v2426 = vmul.f32 %v2417, %v2425
    %v2427 = vadd.f32 %v2410, %v2426
    %v2428 = vtanh.pop %v2427
    %v2429 = vsub.f32 1.0, %v2424
    %v2430 = vmul.f32 %v2429, %v2428
    %v2431 = vmul.f32 %v2424, %v2325
    %v2432 = vadd.f32 %v2430, %v2431
    %2433 = vst [vmem:[#allocation4] sm:$0xff] %v2432
    %v2434 = vld [vmem:[#allocation4] sm:$0xff]
    %v2435 = vpack.c.bf16 %v2434, %v2434
    %2436 = vmatprep.subr.bf16.mxu0 %v1865
    %2437 = vmatpush1.bf16.msra.mxu0 %v1864
    %2438 = vmatprep.subr.bf16.mxu0 %v1862
    %2439 = vmatpush1.bf16.msra.mxu0 %v1861
    %2440 = vmatprep.subr.bf16.mxu0 %v1859
    %2441 = vmatpush1.bf16.msra.mxu0 %v1858
    %2442 = vmatprep.subr.bf16.mxu0 %v1856
    %2443 = vmatpush1.bf16.msra.mxu0 %v1855
    %2444 = vmatprep.subr.bf16.mxu0 %v1853
    %2445 = vmatpush1.bf16.msra.mxu0 %v1852
    %2446 = vmatprep.subr.bf16.mxu0 %v1850
    %2447 = vmatpush1.bf16.msra.mxu0 %v1849
    %2448 = vmatprep.subr.bf16.mxu0 %v1847
    %2449 = vmatpush1.bf16.msra.mxu0 %v1846
    %2450 = vmatprep.subr.bf16.mxu0 %v1844
    %2451 = vmatpush1.bf16.msra.mxu0 %v1843
    %2452 = vmatprep.subr.bf16.mxu0 0
    %2453 = vmatpush2.bf16.msra.mxu0 0
    %2454 = vmatprep.subr.bf16.mxu0 0
    %2455 = vmatpush2.bf16.msra.mxu0 0
    %2456 = vmatprep.subr.bf16.mxu0 0
    %2457 = vmatpush2.bf16.msra.mxu0 0
    %2458 = vmatprep.subr.bf16.mxu0 0
    %2459 = vmatpush2.bf16.msra.mxu0 0
    %2460 = vmatprep.subr.bf16.mxu0 0
    %2461 = vmatpush2.bf16.msra.mxu0 0
    %2462 = vmatprep.subr.bf16.mxu0 0
    %2463 = vmatpush2.bf16.msra.mxu0 0
    %2464 = vmatprep.subr.bf16.mxu0 0
    %2465 = vmatpush2.bf16.msra.mxu0 0
    %2466 = vmatprep.subr.bf16.mxu0 0
    %2467 = vmatpush2.bf16.msra.mxu0 0
    %2468 = vmatprep.mubr.bf16.mxu0 0
    %2469 = vmatmul.mubr.bf16.gmra.mxu0 %v2435
    %v2470 = vpop.f32.mrf.mxu0
    %v2471 = vadd.f32 0.0, %v2470
    %v2472 = vpop.f32.mrf.mxu0
    %v2473 = vadd.f32 0.0, %v2472
    %v2474 = vpop.f32.mrf.mxu0
    %v2475 = vpop.f32.mrf.mxu0
    %2476 = vdwg.mxu0
    %2477 = vmatprep.subr.bf16.mxu0 0
    %2478 = vmatpush1.bf16.msra.mxu0 %v1866
    %2479 = vmatprep.subr.bf16.mxu0 0
    %2480 = vmatpush1.bf16.msra.mxu0 %v1863
    %2481 = vmatprep.subr.bf16.mxu0 0
    %2482 = vmatpush1.bf16.msra.mxu0 %v1860
    %2483 = vmatprep.subr.bf16.mxu0 0
    %2484 = vmatpush1.bf16.msra.mxu0 %v1857
    %2485 = vmatprep.subr.bf16.mxu0 0
    %2486 = vmatpush1.bf16.msra.mxu0 %v1854
    %2487 = vmatprep.subr.bf16.mxu0 0
    %2488 = vmatpush1.bf16.msra.mxu0 %v1851
    %2489 = vmatprep.subr.bf16.mxu0 0
    %2490 = vmatpush1.bf16.msra.mxu0 %v1848
    %2491 = vmatprep.subr.bf16.mxu0 0
    %2492 = vmatpush1.bf16.msra.mxu0 %v1845
    %2493 = vmatprep.subr.bf16.mxu0 0
    %2494 = vmatpush2.bf16.msra.mxu0 0
    %2495 = vmatprep.subr.bf16.mxu0 0
    %2496 = vmatpush2.bf16.msra.mxu0 0
    %2497 = vmatprep.subr.bf16.mxu0 0
    %2498 = vmatpush2.bf16.msra.mxu0 0
    %2499 = vmatprep.subr.bf16.mxu0 0
    %2500 = vmatpush2.bf16.msra.mxu0 0
    %2501 = vmatprep.subr.bf16.mxu0 0
    %2502 = vmatpush2.bf16.msra.mxu0 0
    %2503 = vmatprep.subr.bf16.mxu0 0
    %2504 = vmatpush2.bf16.msra.mxu0 0
    %2505 = vmatprep.subr.bf16.mxu0 0
    %2506 = vmatpush2.bf16.msra.mxu0 0
    %2507 = vmatprep.subr.bf16.mxu0 0
    %2508 = vmatpush2.bf16.msra.mxu0 0
    %2509 = vmatprep.mubr.bf16.mxu0 0
    %2510 = vmatmul.mubr.bf16.gmra.mxu0 %v2435
    %v2511 = vpop.f32.mrf.mxu0
    %v2512 = vadd.f32 0.0, %v2511
    %v2513 = vpop.f32.mrf.mxu0
    %v2514 = vpop.f32.mrf.mxu0
    %v2515 = vpop.f32.mrf.mxu0
    %2516 = vdwg.mxu0
    %v2517 = vld [vmem:[%s1113] sm:$0xff]
    %v2518 = vld [vmem:[%s1113 + $0x8] sm:$0xff]
    %v2519 = vld [vmem:[%s1113 + $0x10] sm:$0xff]
    %v2520 = vadd.f32 %v2517, %v2471
    %v2521 = vxor.u32 %v2520, 2147483648
    %v2522 = vmul.f32 %v2521, 1.442695
    %v2523 = vpow.pop %v2522
    %v2524 = vadd.f32 %v2523, 1.0
    %v2525 = vrcp.pop %v2524
    %v2526 = vmul.f32 1.0, %v2525
    %v2527 = vadd.f32 %v2518, %v2473
    %v2528 = vxor.u32 %v2527, 2147483648
    %v2529 = vmul.f32 %v2528, 1.442695
    %v2530 = vpow.pop %v2529
    %v2531 = vadd.f32 %v2530, 1.0
    %v2532 = vrcp.pop %v2531
    %v2533 = vmul.f32 1.0, %v2532
    %v2534 = vadd.f32 %v2512, %v1440
    %v2535 = vmul.f32 %v2526, %v2534
    %v2536 = vadd.f32 %v2519, %v2535
    %v2537 = vtanh.pop %v2536
    %v2538 = vsub.f32 1.0, %v2533
    %v2539 = vmul.f32 %v2538, %v2537
    %v2540 = vmul.f32 %v2533, %v2434
    %v2541 = vadd.f32 %v2539, %v2540
    %2542 = vst [vmem:[#allocation4] sm:$0xff] %v2541
    %v2543 = vld [vmem:[#allocation4] sm:$0xff]
    %v2544 = vpack.c.bf16 %v2543, %v2543
    %2545 = vmatprep.subr.bf16.mxu0 %v1865
    %2546 = vmatpush1.bf16.msra.mxu0 %v1864
    %2547 = vmatprep.subr.bf16.mxu0 %v1862
    %2548 = vmatpush1.bf16.msra.mxu0 %v1861
    %2549 = vmatprep.subr.bf16.mxu0 %v1859
    %2550 = vmatpush1.bf16.msra.mxu0 %v1858
    %2551 = vmatprep.subr.bf16.mxu0 %v1856
    %2552 = vmatpush1.bf16.msra.mxu0 %v1855
    %2553 = vmatprep.subr.bf16.mxu0 %v1853
    %2554 = vmatpush1.bf16.msra.mxu0 %v1852
    %2555 = vmatprep.subr.bf16.mxu0 %v1850
    %2556 = vmatpush1.bf16.msra.mxu0 %v1849
    %2557 = vmatprep.subr.bf16.mxu0 %v1847
    %2558 = vmatpush1.bf16.msra.mxu0 %v1846
    %2559 = vmatprep.subr.bf16.mxu0 %v1844
    %2560 = vmatpush1.bf16.msra.mxu0 %v1843
    %2561 = vmatprep.subr.bf16.mxu0 0
    %2562 = vmatpush2.bf16.msra.mxu0 0
    %2563 = vmatprep.subr.bf16.mxu0 0
    %2564 = vmatpush2.bf16.msra.mxu0 0
    %2565 = vmatprep.subr.bf16.mxu0 0
    %2566 = vmatpush2.bf16.msra.mxu0 0
    %2567 = vmatprep.subr.bf16.mxu0 0
    %2568 = vmatpush2.bf16.msra.mxu0 0
    %2569 = vmatprep.subr.bf16.mxu0 0
    %2570 = vmatpush2.bf16.msra.mxu0 0
    %2571 = vmatprep.subr.bf16.mxu0 0
    %2572 = vmatpush2.bf16.msra.mxu0 0
    %2573 = vmatprep.subr.bf16.mxu0 0
    %2574 = vmatpush2.bf16.msra.mxu0 0
    %2575 = vmatprep.subr.bf16.mxu0 0
    %2576 = vmatpush2.bf16.msra.mxu0 0
    %2577 = vmatprep.mubr.bf16.mxu0 0
    %2578 = vmatmul.mubr.bf16.gmra.mxu0 %v2544
    %v2579 = vpop.f32.mrf.mxu0
    %v2580 = vadd.f32 0.0, %v2579
    %v2581 = vpop.f32.mrf.mxu0
    %v2582 = vadd.f32 0.0, %v2581
    %v2583 = vpop.f32.mrf.mxu0
    %v2584 = vpop.f32.mrf.mxu0
    %2585 = vdwg.mxu0
    %2586 = vmatprep.subr.bf16.mxu0 0
    %2587 = vmatpush1.bf16.msra.mxu0 %v1866
    %2588 = vmatprep.subr.bf16.mxu0 0
    %2589 = vmatpush1.bf16.msra.mxu0 %v1863
    %2590 = vmatprep.subr.bf16.mxu0 0
    %2591 = vmatpush1.bf16.msra.mxu0 %v1860
    %2592 = vmatprep.subr.bf16.mxu0 0
    %2593 = vmatpush1.bf16.msra.mxu0 %v1857
    %2594 = vmatprep.subr.bf16.mxu0 0
    %2595 = vmatpush1.bf16.msra.mxu0 %v1854
    %2596 = vmatprep.subr.bf16.mxu0 0
    %2597 = vmatpush1.bf16.msra.mxu0 %v1851
    %2598 = vmatprep.subr.bf16.mxu0 0
    %2599 = vmatpush1.bf16.msra.mxu0 %v1848
    %2600 = vmatprep.subr.bf16.mxu0 0
    %2601 = vmatpush1.bf16.msra.mxu0 %v1845
    %2602 = vmatprep.subr.bf16.mxu0 0
    %2603 = vmatpush2.bf16.msra.mxu0 0
    %2604 = vmatprep.subr.bf16.mxu0 0
    %2605 = vmatpush2.bf16.msra.mxu0 0
    %2606 = vmatprep.subr.bf16.mxu0 0
    %2607 = vmatpush2.bf16.msra.mxu0 0
    %2608 = vmatprep.subr.bf16.mxu0 0
    %2609 = vmatpush2.bf16.msra.mxu0 0
    %2610 = vmatprep.subr.bf16.mxu0 0
    %2611 = vmatpush2.bf16.msra.mxu0 0
    %2612 = vmatprep.subr.bf16.mxu0 0
    %2613 = vmatpush2.bf16.msra.mxu0 0
    %2614 = vmatprep.subr.bf16.mxu0 0
    %2615 = vmatpush2.bf16.msra.mxu0 0
    %2616 = vmatprep.subr.bf16.mxu0 0
    %2617 = vmatpush2.bf16.msra.mxu0 0
    %2618 = vmatprep.mubr.bf16.mxu0 0
    %2619 = vmatmul.mubr.bf16.gmra.mxu0 %v2544
    %v2620 = vpop.f32.mrf.mxu0
    %v2621 = vadd.f32 0.0, %v2620
    %v2622 = vpop.f32.mrf.mxu0
    %v2623 = vpop.f32.mrf.mxu0
    %v2624 = vpop.f32.mrf.mxu0
    %2625 = vdwg.mxu0
    %v2626 = vld [vmem:[%s1227] sm:$0xff]
    %v2627 = vld [vmem:[%s1227 + $0x8] sm:$0xff]
    %v2628 = vld [vmem:[%s1227 + $0x10] sm:$0xff]
    %v2629 = vadd.f32 %v2626, %v2580
    %v2630 = vxor.u32 %v2629, 2147483648
    %v2631 = vmul.f32 %v2630, 1.442695
    %v2632 = vpow.pop %v2631
    %v2633 = vadd.f32 %v2632, 1.0
    %v2634 = vrcp.pop %v2633
    %v2635 = vmul.f32 1.0, %v2634
    %v2636 = vadd.f32 %v2627, %v2582
    %v2637 = vxor.u32 %v2636, 2147483648
    %v2638 = vmul.f32 %v2637, 1.442695
    %v2639 = vpow.pop %v2638
    %v2640 = vadd.f32 %v2639, 1.0
    %v2641 = vrcp.pop %v2640
    %v2642 = vmul.f32 1.0, %v2641
    %v2643 = vadd.f32 %v2621, %v1440
    %v2644 = vmul.f32 %v2635, %v2643
    %v2645 = vadd.f32 %v2628, %v2644
    %v2646 = vtanh.pop %v2645
    %v2647 = vsub.f32 1.0, %v2642
    %v2648 = vmul.f32 %v2647, %v2646
    %v2649 = vmul.f32 %v2642, %v2543
    %v2650 = vadd.f32 %v2648, %v2649
    %2651 = vst [vmem:[#allocation4] sm:$0xff] %v2650
    %v2652 = vld [vmem:[#allocation4] sm:$0xff]
    %v2653 = vpack.c.bf16 %v2652, %v2652
    %2654 = vmatprep.subr.bf16.mxu0 %v1865
    %2655 = vmatpush1.bf16.msra.mxu0 %v1864
    %2656 = vmatprep.subr.bf16.mxu0 %v1862
    %2657 = vmatpush1.bf16.msra.mxu0 %v1861
    %2658 = vmatprep.subr.bf16.mxu0 %v1859
    %2659 = vmatpush1.bf16.msra.mxu0 %v1858
    %2660 = vmatprep.subr.bf16.mxu0 %v1856
    %2661 = vmatpush1.bf16.msra.mxu0 %v1855
    %2662 = vmatprep.subr.bf16.mxu0 %v1853
    %2663 = vmatpush1.bf16.msra.mxu0 %v1852
    %2664 = vmatprep.subr.bf16.mxu0 %v1850
    %2665 = vmatpush1.bf16.msra.mxu0 %v1849
    %2666 = vmatprep.subr.bf16.mxu0 %v1847
    %2667 = vmatpush1.bf16.msra.mxu0 %v1846
    %2668 = vmatprep.subr.bf16.mxu0 %v1844
    %2669 = vmatpush1.bf16.msra.mxu0 %v1843
    %2670 = vmatprep.subr.bf16.mxu0 0
    %2671 = vmatpush2.bf16.msra.mxu0 0
    %2672 = vmatprep.subr.bf16.mxu0 0
    %2673 = vmatpush2.bf16.msra.mxu0 0
    %2674 = vmatprep.subr.bf16.mxu0 0
    %2675 = vmatpush2.bf16.msra.mxu0 0
    %2676 = vmatprep.subr.bf16.mxu0 0
    %2677 = vmatpush2.bf16.msra.mxu0 0
    %2678 = vmatprep.subr.bf16.mxu0 0
    %2679 = vmatpush2.bf16.msra.mxu0 0
    %2680 = vmatprep.subr.bf16.mxu0 0
    %2681 = vmatpush2.bf16.msra.mxu0 0
    %2682 = vmatprep.subr.bf16.mxu0 0
    %2683 = vmatpush2.bf16.msra.mxu0 0
    %2684 = vmatprep.subr.bf16.mxu0 0
    %2685 = vmatpush2.bf16.msra.mxu0 0
    %2686 = vmatprep.mubr.bf16.mxu0 0
    %2687 = vmatmul.mubr.bf16.gmra.mxu0 %v2653
    %v2688 = vpop.f32.mrf.mxu0
    %v2689 = vadd.f32 0.0, %v2688
    %v2690 = vpop.f32.mrf.mxu0
    %v2691 = vadd.f32 0.0, %v2690
    %v2692 = vpop.f32.mrf.mxu0
    %v2693 = vpop.f32.mrf.mxu0
    %2694 = vdwg.mxu0
    %2695 = vmatprep.subr.bf16.mxu0 0
    %2696 = vmatpush1.bf16.msra.mxu0 %v1866
    %2697 = vmatprep.subr.bf16.mxu0 0
    %2698 = vmatpush1.bf16.msra.mxu0 %v1863
    %2699 = vmatprep.subr.bf16.mxu0 0
    %2700 = vmatpush1.bf16.msra.mxu0 %v1860
    %2701 = vmatprep.subr.bf16.mxu0 0
    %2702 = vmatpush1.bf16.msra.mxu0 %v1857
    %2703 = vmatprep.subr.bf16.mxu0 0
    %2704 = vmatpush1.bf16.msra.mxu0 %v1854
    %2705 = vmatprep.subr.bf16.mxu0 0
    %2706 = vmatpush1.bf16.msra.mxu0 %v1851
    %2707 = vmatprep.subr.bf16.mxu0 0
    %2708 = vmatpush1.bf16.msra.mxu0 %v1848
    %2709 = vmatprep.subr.bf16.mxu0 0
    %2710 = vmatpush1.bf16.msra.mxu0 %v1845
    %2711 = vmatprep.subr.bf16.mxu0 0
    %2712 = vmatpush2.bf16.msra.mxu0 0
    %2713 = vmatprep.subr.bf16.mxu0 0
    %2714 = vmatpush2.bf16.msra.mxu0 0
    %2715 = vmatprep.subr.bf16.mxu0 0
    %2716 = vmatpush2.bf16.msra.mxu0 0
    %2717 = vmatprep.subr.bf16.mxu0 0
    %2718 = vmatpush2.bf16.msra.mxu0 0
    %2719 = vmatprep.subr.bf16.mxu0 0
    %2720 = vmatpush2.bf16.msra.mxu0 0
    %2721 = vmatprep.subr.bf16.mxu0 0
    %2722 = vmatpush2.bf16.msra.mxu0 0
    %2723 = vmatprep.subr.bf16.mxu0 0
    %2724 = vmatpush2.bf16.msra.mxu0 0
    %2725 = vmatprep.subr.bf16.mxu0 0
    %2726 = vmatpush2.bf16.msra.mxu0 0
    %2727 = vmatprep.mubr.bf16.mxu0 0
    %2728 = vmatmul.mubr.bf16.gmra.mxu0 %v2653
    %v2729 = vpop.f32.mrf.mxu0
    %v2730 = vadd.f32 0.0, %v2729
    %v2731 = vpop.f32.mrf.mxu0
    %v2732 = vpop.f32.mrf.mxu0
    %v2733 = vpop.f32.mrf.mxu0
    %2734 = vdwg.mxu0
    %v2735 = vld [vmem:[%s1341] sm:$0xff]
    %v2736 = vld [vmem:[%s1341 + $0x8] sm:$0xff]
    %v2737 = vld [vmem:[%s1341 + $0x10] sm:$0xff]
    %v2738 = vadd.f32 %v2735, %v2689
    %v2739 = vxor.u32 %v2738, 2147483648
    %v2740 = vmul.f32 %v2739, 1.442695
    %v2741 = vpow.pop %v2740
    %v2742 = vadd.f32 %v2741, 1.0
    %v2743 = vrcp.pop %v2742
    %v2744 = vmul.f32 1.0, %v2743
    %v2745 = vadd.f32 %v2736, %v2691
    %v2746 = vxor.u32 %v2745, 2147483648
    %v2747 = vmul.f32 %v2746, 1.442695
    %v2748 = vpow.pop %v2747
    %v2749 = vadd.f32 %v2748, 1.0
    %v2750 = vrcp.pop %v2749
    %v2751 = vmul.f32 1.0, %v2750
    %v2752 = vadd.f32 %v2730, %v1440
    %v2753 = vmul.f32 %v2744, %v2752
    %v2754 = vadd.f32 %v2737, %v2753
    %v2755 = vtanh.pop %v2754
    %v2756 = vsub.f32 1.0, %v2751
    %v2757 = vmul.f32 %v2756, %v2755
    %v2758 = vmul.f32 %v2751, %v2652
    %v2759 = vadd.f32 %v2757, %v2758
    %2760 = vst [vmem:[#allocation4] sm:$0xff] %v2759
    %v2761 = vld [vmem:[#allocation4] sm:$0xff]
    %v2762 = vld [vmem:[%s9] sm:$0xff]
    %v2763 = vld [vmem:[%s9 + $0x8] sm:$0xff]
    %v2764 = vld [vmem:[%s9 + $0x10] sm:$0xff]
    %v2765 = vld [vmem:[%s9 + $0x18] sm:$0xff]
    %v2766 = vld [vmem:[%s9 + $0x20] sm:$0xff]
    %v2767 = vld [vmem:[%s9 + $0x28] sm:$0xff]
    %v2768 = vld [vmem:[%s9 + $0x30] sm:$0xff]
    %v2769 = vld [vmem:[%s9 + $0x38] sm:$0xff]
    %v2770 = vld [vmem:[%s9 + $0x40] sm:$0xff]
    %v2771 = vld [vmem:[%s9 + $0x48] sm:$0xff]
    %v2772 = vld [vmem:[%s9 + $0x50] sm:$0xff]
    %v2773 = vld [vmem:[%s9 + $0x58] sm:$0xff]
    %v2774 = vld [vmem:[%s9 + $0x60] sm:$0xff]
    %v2775 = vld [vmem:[%s9 + $0x68] sm:$0xff]
    %v2776 = vld [vmem:[%s9 + $0x70] sm:$0xff]
    %v2777 = vld [vmem:[%s9 + $0x78] sm:$0xff]
    %v2778 = vld [vmem:[%s10] sm:$0x1]
    %v2780 = vlaneseq
    %v2781 = vshrl.u32 %v2780, 7
    %v2782 = vsub.s32 0, %v2781
    %v2783 = vrot.slane %v2778, %v2782
    %2785 = vmatprep.subr.mxu0 0.0
    %2786 = vmatpush1.msra.mxu0 %v2777
    %2787 = vmatprep.subr.mxu0 0.0
    %2788 = vmatpush1.msra.mxu0 %v2776
    %2789 = vmatprep.subr.mxu0 0.0
    %2790 = vmatpush1.msra.mxu0 %v2775
    %2791 = vmatprep.subr.mxu0 0.0
    %2792 = vmatpush1.msra.mxu0 %v2774
    %2793 = vmatprep.subr.mxu0 0.0
    %2794 = vmatpush1.msra.mxu0 %v2773
    %2795 = vmatprep.subr.mxu0 0.0
    %2796 = vmatpush1.msra.mxu0 %v2772
    %2797 = vmatprep.subr.mxu0 0.0
    %2798 = vmatpush1.msra.mxu0 %v2771
    %2799 = vmatprep.subr.mxu0 0.0
    %2800 = vmatpush1.msra.mxu0 %v2770
    %2801 = vmatprep.subr.mxu0 0.0
    %2802 = vmatpush1.msra.mxu0 %v2769
    %2803 = vmatprep.subr.mxu0 0.0
    %2804 = vmatpush1.msra.mxu0 %v2768
    %2805 = vmatprep.subr.mxu0 0.0
    %2806 = vmatpush1.msra.mxu0 %v2767
    %2807 = vmatprep.subr.mxu0 0.0
    %2808 = vmatpush1.msra.mxu0 %v2766
    %2809 = vmatprep.subr.mxu0 0.0
    %2810 = vmatpush1.msra.mxu0 %v2765
    %2811 = vmatprep.subr.mxu0 0.0
    %2812 = vmatpush1.msra.mxu0 %v2764
    %2813 = vmatprep.subr.mxu0 0.0
    %2814 = vmatpush1.msra.mxu0 %v2763
    %2815 = vmatprep.subr.mxu0 0.0
    %2816 = vmatpush1.msra.mxu0 %v2762
    %2817 = vmatprep.subr.mxu0 0.0
    %2818 = vmatpush2.msra.mxu0 0.0
    %2819 = vmatprep.subr.mxu0 0.0
    %2820 = vmatpush2.msra.mxu0 0.0
    %2821 = vmatprep.subr.mxu0 0.0
    %2822 = vmatpush2.msra.mxu0 0.0
    %2823 = vmatprep.subr.mxu0 0.0
    %2824 = vmatpush2.msra.mxu0 0.0
    %2825 = vmatprep.subr.mxu0 0.0
    %2826 = vmatpush2.msra.mxu0 0.0
    %2827 = vmatprep.subr.mxu0 0.0
    %2828 = vmatpush2.msra.mxu0 0.0
    %2829 = vmatprep.subr.mxu0 0.0
    %2830 = vmatpush2.msra.mxu0 0.0
    %2831 = vmatprep.subr.mxu0 0.0
    %2832 = vmatpush2.msra.mxu0 0.0
    %2833 = vmatprep.subr.mxu0 0.0
    %2834 = vmatpush2.msra.mxu0 0.0
    %2835 = vmatprep.subr.mxu0 0.0
    %2836 = vmatpush2.msra.mxu0 0.0
    %2837 = vmatprep.subr.mxu0 0.0
    %2838 = vmatpush2.msra.mxu0 0.0
    %2839 = vmatprep.subr.mxu0 0.0
    %2840 = vmatpush2.msra.mxu0 0.0
    %2841 = vmatprep.subr.mxu0 0.0
    %2842 = vmatpush2.msra.mxu0 0.0
    %2843 = vmatprep.subr.mxu0 0.0
    %2844 = vmatpush2.msra.mxu0 0.0
    %2845 = vmatprep.subr.mxu0 0.0
    %2846 = vmatpush2.msra.mxu0 0.0
    %2847 = vmatprep.subr.mxu0 0.0
    %2848 = vmatpush2.msra.mxu0 0.0
    %2849 = vmatprep.mubr.f32.mxu0 0.0
    %2850 = vmatmul.mubr.f32.gmra.mxu0 %v2761
    %v2851 = vpop.f32.mrf.mxu0
    %v2852 = vadd.f32 %v2783, %v2851
    %v2853 = vpop.f32.mrf.mxu0
    %2854 = vdwg.mxu0
    %vm2855 = vcmask 39936
    %v2856 = vsel %vm2855, %v2852, -inf
    %2857 = vmax.xlane.f32.xlu0 %v2856
    %v2858 = vpop.xlane.xlu0 %2857
    %v2859 = vsub.f32 %v2852, %v2858
    %v2860 = vmul.f32 %v2859, 1.442695
    %v2861 = vpow.pop %v2860
    %v2862 = vsel %vm2855, %v2861, 0.0
    %2863 = vadd.xlane.f32.xlu0 %v2862
    %v2864 = vpop.xlane.xlu0 %2863
    %v2865 = vrcp.pop %v2864
    %v2866 = vmul.f32 %v2861, %v2865
    %2867 = vst.msk [vmem:[%s11] sm:$0xff] %vm2855, %v2866
    // Predicated region
    $region54: #{_rnn_forward.1} parent=1 // pred_check
      _
    $region55: #{_rnn_forward.1} parent=1 // pred_check_branch
      %2869 = sbr.rel (0) target = $region57
    $region56: #{_rnn_forward.1} parent=1 // pred_region
      _
    $region57: #{_rnn_forward.1} parent=1 // pred_fallthru
      _
    // Predicated region
    $region58: #{_rnn_forward.1} parent=1 // pred_check
      _
    $region59: #{_rnn_forward.1} parent=1 // pred_check_branch
      %2871 = sbr.rel (0) target = $region61
    $region60: #{_rnn_forward.1} parent=1 // pred_region
      _
    $region61: #{_rnn_forward.1} parent=1 // pred_fallthru
      _
    %2872 = vsyncpa [#allocation6], 1
    %2873 = vsyncpa [#allocation8], 1

</llo_original>
